<compile_context>
chip_gen: v7x
topology: tpu7x:2x2x1
jax: 0.10.0
libtpu: 0.0.40
codegen_flags: <defaults>
</compile_context>

<pallas_src>
import math
from functools import partial

import jax
import jax.numpy as jnp
from jax import lax
from jax.experimental import pallas as pl
from jax.experimental.pallas import tpu as pltpu


def _mhsa_kernel(x_ref, wq_ref, wk_ref, wv_ref, o_ref, *, norm_fact):
    # x_ref : (B_blk, n, dim_in)                      input dtype
    # wq_ref/wk_ref : (nh, dk, dim_in)   wv_ref : (nh, dv, dim_in)
    # o_ref : (B_blk, n, nh*dv)
    b_blk, n, dim_in = x_ref.shape
    nh, dk, _ = wq_ref.shape
    dv = wv_ref.shape[1]

    x = x_ref[...]
    cd = x.dtype
    # Flatten batch into the matmul M dim (layout-free when n % 8 == 0).
    x2 = x.reshape(b_blk * n, dim_in)

    # Contract dim_in of x with dim_in of W (folds nn.Linear's W^T, no wrapper
    # transpose and no explicit k.T / XLU transpose anywhere).
    cdims = (((1,), (1,)), ((), ()))

    for h in range(nh):                 # static unrolled head loop
        # Per-head weight = leading-axis select (address offset, no lane slicing).
        q = lax.dot_general(x2, wq_ref[h], cdims,
                            preferred_element_type=jnp.float32)    # (M, dk) f32
        k = lax.dot_general(x2, wk_ref[h], cdims,
                            preferred_element_type=jnp.float32)    # (M, dk) f32
        v = lax.dot_general(x2, wv_ref[h], cdims,
                            preferred_element_type=jnp.float32)    # (M, dv) f32

        # Fold 1/sqrt(dk) into q (M*dk elements instead of the (n, n) scores).
        q = (q * norm_fact).astype(cd)
        k = k.astype(cd)
        v = v.astype(cd)

        q3 = q.reshape(b_blk, n, dk)
        k3 = k.reshape(b_blk, n, dk)
        v3 = v.reshape(b_blk, n, dv)

        # scores = q @ k^T per batch element (transpose folded into the einsum).
        s = jnp.einsum("bqd,bkd->bqk", q3, k3,
                       preferred_element_type=jnp.float32)         # (B, n, n) f32

        # softmax over the last axis (matches torch.softmax(dist, dim=-1)).
        s = s - jnp.max(s, axis=-1, keepdims=True)
        p = jnp.exp(s)
        p = p * pl.reciprocal(jnp.sum(p, axis=-1, keepdims=True), approx=False)

        att = jnp.einsum("bqk,bkd->bqd", p.astype(cd), v3,
                         preferred_element_type=jnp.float32)       # (B, n, dv) f32

        # Direct store into this head's lanes of the output VMEM slab; Pallas
        # writes the full lane-dense (B_blk, n, dim_v) block back once per step.
        o_ref[:, :, h * dv:(h + 1) * dv] = att.astype(o_ref.dtype)


def _pick_batch_block(batch, n, dim_in, itemsize, target_bytes=1 << 20):
    """Largest divisor of `batch` whose x tile is <= ~target_bytes and whose
    per-step f32 score tile stays modest."""
    per_batch_x = max(1, n * dim_in * itemsize)
    per_batch_scores = max(1, 4 * n * n)              # f32 (n, n) per batch elem
    cap = min(target_bytes // per_batch_x, (8 << 20) // per_batch_scores)
    bb = int(max(1, min(batch, cap)))
    while batch % bb != 0:
        bb -= 1
    return bb


def _build_call(batch, n, dim_in, dim_k, dim_v, num_heads, dtype, b_blk,
                norm_fact, single_buffer_weights):
    dk = dim_k // num_heads
    dv = dim_v // num_heads

    w_kwargs = {}
    if single_buffer_weights and hasattr(pl, "Buffered"):
        # Weights are grid-invariant (constant index_map): no need for the
        # default double buffering -> halves their VMEM footprint.
        w_kwargs["pipeline_mode"] = pl.Buffered(1)

    def w_spec(rows):
        return pl.BlockSpec((num_heads, rows, dim_in), lambda b: (0, 0, 0),
                            **w_kwargs)

    itemsize = jnp.dtype(dtype).itemsize
    flops = batch * (2 * n * dim_in * (2 * dim_k + dim_v)     # Q/K/V projections
                     + 2 * n * n * (dim_k + dim_v))           # scores + PV
    cost = pl.CostEstimate(
        flops=flops,
        transcendentals=batch * num_heads * n * n,            # exp in softmax
        bytes_accessed=itemsize * (batch * n * dim_in
                                   + dim_in * (2 * dim_k + dim_v)
                                   + batch * n * dim_v),
    )

    return pl.pallas_call(
        partial(_mhsa_kernel, norm_fact=norm_fact),
        out_shape=jax.ShapeDtypeStruct((batch, n, dim_v), dtype),
        grid_spec=pltpu.PrefetchScalarGridSpec(
            num_scalar_prefetch=0,
            grid=(batch // b_blk,),
            in_specs=[
                pl.BlockSpec((b_blk, n, dim_in), lambda b: (b, 0, 0)),  # x
                w_spec(dk),                                             # Wq (head-major)
                w_spec(dk),                                             # Wk (head-major)
                w_spec(dv),                                             # Wv (head-major)
            ],
            out_specs=pl.BlockSpec((b_blk, n, dim_v), lambda b: (b, 0, 0)),
        ),
        compiler_params=pltpu.CompilerParams(
            dimension_semantics=("parallel",),
            vmem_limit_bytes=48 * 1024 * 1024,   # safe below v7x's 64 MiB physical
        ),
        cost_estimate=cost,
    )


def multi_head_self_attention(x, wq, wk, wv, num_heads):
    """x: (batch, n, dim_in); wq/wk: (dim_k, dim_in); wv: (dim_v, dim_in)
    (PyTorch nn.Linear weight layout, bias=False).  Returns (batch, n, dim_v)."""
    batch, n, dim_in = x.shape
    dim_k = wq.shape[0]
    dim_v = wv.shape[0]
    assert dim_k % num_heads == 0 and dim_v % num_heads == 0
    dk = dim_k // num_heads
    dv = dim_v // num_heads
    norm_fact = 1.0 / math.sqrt(dk)

    # Head-major weight layout: pure leading-dim split (free view, no transpose;
    # the nn.Linear W^T is folded into dot_general inside the kernel).
    wq_hm = wq.reshape(num_heads, dk, dim_in)
    wk_hm = wk.reshape(num_heads, dk, dim_in)
    wv_hm = wv.reshape(num_heads, dv, dim_in)

    b_blk = _pick_batch_block(batch, n, dim_in, jnp.dtype(x.dtype).itemsize)

    args = (batch, n, dim_in, dim_k, dim_v, num_heads, x.dtype, b_blk, norm_fact)
    try:
        out = _build_call(*args, single_buffer_weights=True)(x, wq_hm, wk_hm, wv_hm)
        return jax.block_until_ready(out)
    except Exception:
        # pl.Buffered(1) (single-buffered weights) not supported on this
        # JAX/TPU combination -> retry with the default double buffering.
        out = _build_call(*args, single_buffer_weights=False)(x, wq_hm, wk_hm, wv_hm)
        return jax.block_until_ready(out)


def _reference(x, wq, wk, wv, num_heads):
    """Pure-JAX re-implementation of the PyTorch forward for validation."""
    batch, n, dim_in = x.shape
    dim_k = wq.shape[0]
    dim_v = wv.shape[0]
    dk = dim_k // num_heads
    dv = dim_v // num_heads
    norm_fact = 1.0 / math.sqrt(dk)

    q = (x @ wq.T).reshape(batch, n, num_heads, dk).transpose(0, 2, 1, 3)
    k = (x @ wk.T).reshape(batch, n, num_heads, dk).transpose(0, 2, 1, 3)
    v = (x @ wv.T).reshape(batch, n, num_heads, dv).transpose(0, 2, 1, 3)
    dist = jnp.einsum("bhqd,bhkd->bhqk", q, k) * norm_fact
    dist = jax.nn.softmax(dist, axis=-1)
    att = jnp.einsum("bhqk,bhkd->bhqd", dist, v)
    return att.transpose(0, 2, 1, 3).reshape(batch, n, dim_v)


if __name__ == "__main__":
    # Small, deterministic example consistent with the module's forward.
    batch, n, dim_in = 2, 8, 32
    dim_k, dim_v, num_heads = 64, 64, 4

    key = jax.random.PRNGKey(0)
    kx, kq, kk, kv = jax.random.split(key, 4)
    x = jax.random.normal(kx, (batch, n, dim_in), dtype=jnp.float32)
    # nn.Linear weight shapes: (out_features, in_features), bias=False.
    wq = jax.random.normal(kq, (dim_k, dim_in), dtype=jnp.float32) * 0.1
    wk = jax.random.normal(kk, (dim_k, dim_in), dtype=jnp.float32) * 0.1
    wv = jax.random.normal(kv, (dim_v, dim_in), dtype=jnp.float32) * 0.1

    out = multi_head_self_attention(x, wq, wk, wv, num_heads)
    out = jax.block_until_ready(out)

    ref = _reference(x, wq, wk, wv, num_heads)
    assert out.shape == (batch, n, dim_v)
    # MXU default precision on f32 operands => modest tolerance.
    assert jnp.allclose(out, ref, atol=1e-2, rtol=1e-2), "mismatch vs reference"
    print("KERNEL_OK")
</pallas_src>

<mosaic_0001>
module attributes {stable_mosaic.version = 11 : i64} {
  func.func @_mhsa_kernel(%arg0: i32, %arg1: memref<2x8x32xf32, #tpu.memory_space<vmem>>, %arg2: memref<4x16x32xf32, #tpu.memory_space<vmem>>, %arg3: memref<4x16x32xf32, #tpu.memory_space<vmem>>, %arg4: memref<4x16x32xf32, #tpu.memory_space<vmem>>, %arg5: memref<2x8x64xf32, #tpu.memory_space<vmem>>) attributes {dimension_semantics = [#tpu.dimension_semantics<parallel>], iteration_bounds = array<i64: 1>, scalar_prefetch = 0 : i64, scratch_operands = 0 : i64, tpu.core_type = #tpu.core_type<tc>, window_params = [{transform_indices = @transform_0, window_bounds = array<i64: 2, 8, 32>}, {pipeline_mode = #tpu.pipeline_mode<synchronous>, transform_indices = @transform_1, window_bounds = array<i64: 4, 16, 32>}, {pipeline_mode = #tpu.pipeline_mode<synchronous>, transform_indices = @transform_2, window_bounds = array<i64: 4, 16, 32>}, {pipeline_mode = #tpu.pipeline_mode<synchronous>, transform_indices = @transform_3, window_bounds = array<i64: 4, 16, 32>}, {transform_indices = @transform_4, window_bounds = array<i64: 2, 8, 64>}]} {
    %c0 = arith.constant 0 : index
    %c0_0 = arith.constant 0 : index
    %c0_1 = arith.constant 0 : index
    %0 = vector.load %arg1[%c0, %c0_0, %c0_1] : memref<2x8x32xf32, #tpu.memory_space<vmem>>, vector<2x8x32xf32>
    %1 = vector.shape_cast %0 : vector<2x8x32xf32> to vector<16x32xf32>
    %c0_2 = arith.constant 0 : index
    %c0_3 = arith.constant 0 : index
    %c0_4 = arith.constant 0 : index
    %2 = vector.load %arg2[%c0_2, %c0_3, %c0_4] : memref<4x16x32xf32, #tpu.memory_space<vmem>>, vector<1x16x32xf32>
    %3 = vector.shape_cast %2 : vector<1x16x32xf32> to vector<16x32xf32>
    %cst = arith.constant dense<0.000000e+00> : vector<16x16xf32>
    %4 = tpu.matmul %1, %3, %cst {dimension_numbers = #tpu.dot_dimension_numbers<[1], [1], [0], [0], [0, 0, 1, 0], [], []>} : vector<16x32xf32>, vector<16x32xf32>, vector<16x16xf32> -> vector<16x16xf32>
    %c0_5 = arith.constant 0 : index
    %c0_6 = arith.constant 0 : index
    %c0_7 = arith.constant 0 : index
    %5 = vector.load %arg3[%c0_5, %c0_6, %c0_7] : memref<4x16x32xf32, #tpu.memory_space<vmem>>, vector<1x16x32xf32>
    %6 = vector.shape_cast %5 : vector<1x16x32xf32> to vector<16x32xf32>
    %cst_8 = arith.constant dense<0.000000e+00> : vector<16x16xf32>
    %7 = tpu.matmul %1, %6, %cst_8 {dimension_numbers = #tpu.dot_dimension_numbers<[1], [1], [0], [0], [0, 0, 1, 0], [], []>} : vector<16x32xf32>, vector<16x32xf32>, vector<16x16xf32> -> vector<16x16xf32>
    %c0_9 = arith.constant 0 : index
    %c0_10 = arith.constant 0 : index
    %c0_11 = arith.constant 0 : index
    %8 = vector.load %arg4[%c0_9, %c0_10, %c0_11] : memref<4x16x32xf32, #tpu.memory_space<vmem>>, vector<1x16x32xf32>
    %9 = vector.shape_cast %8 : vector<1x16x32xf32> to vector<16x32xf32>
    %cst_12 = arith.constant dense<0.000000e+00> : vector<16x16xf32>
    %10 = tpu.matmul %1, %9, %cst_12 {dimension_numbers = #tpu.dot_dimension_numbers<[1], [1], [0], [0], [0, 0, 1, 0], [], []>} : vector<16x32xf32>, vector<16x32xf32>, vector<16x16xf32> -> vector<16x16xf32>
    %cst_13 = arith.constant 2.500000e-01 : f32
    %11 = vector.broadcast %cst_13 : f32 to vector<16x16xf32>
    %12 = arith.mulf %4, %11 : vector<16x16xf32>
    %13 = vector.shape_cast %12 : vector<16x16xf32> to vector<2x8x16xf32>
    %14 = vector.shape_cast %7 : vector<16x16xf32> to vector<2x8x16xf32>
    %15 = vector.shape_cast %10 : vector<16x16xf32> to vector<2x8x16xf32>
    "tpu.trace_start"() <{level = 10 : i32, message = "bqd,bkd->bqk"}> : () -> ()
    %cst_14 = arith.constant dense<0.000000e+00> : vector<2x8x8xf32>
    %16 = tpu.matmul %13, %14, %cst_14 {dimension_numbers = #tpu.dot_dimension_numbers<[2], [2], [1], [1], [0, 0, 0, 1, 1, 1], [0], [0]>} : vector<2x8x16xf32>, vector<2x8x16xf32>, vector<2x8x8xf32> -> vector<2x8x8xf32>
    "tpu.trace_stop"() : () -> ()
    %cst_15 = arith.constant dense<0xFF800000> : vector<2x8xf32>
    %17 = vector.multi_reduction <maximumf>, %16, %cst_15 [2] : vector<2x8x8xf32> to vector<2x8xf32>
    %18 = vector.shape_cast %17 : vector<2x8xf32> to vector<2x8x1xf32>
    %19 = vector.broadcast %18 : vector<2x8x1xf32> to vector<2x8x8xf32>
    %20 = arith.subf %16, %19 : vector<2x8x8xf32>
    %21 = math.exp %20 : vector<2x8x8xf32>
    %cst_16 = arith.constant dense<0.000000e+00> : vector<2x8xf32>
    %22 = vector.multi_reduction <add>, %21, %cst_16 [2] : vector<2x8x8xf32> to vector<2x8xf32>
    %23 = vector.shape_cast %22 : vector<2x8xf32> to vector<2x8x1xf32>
    %24 = tpu.reciprocal %23 : vector<2x8x1xf32> -> vector<2x8x1xf32>
    %25 = vector.broadcast %24 : vector<2x8x1xf32> to vector<2x8x8xf32>
    %26 = arith.mulf %21, %25 : vector<2x8x8xf32>
    "tpu.trace_start"() <{level = 10 : i32, message = "bqk,bkd->bqd"}> : () -> ()
    %cst_17 = arith.constant dense<0.000000e+00> : vector<2x8x16xf32>
    %27 = tpu.matmul %26, %15, %cst_17 {dimension_numbers = #tpu.dot_dimension_numbers<[2], [1], [1], [2], [0, 0, 0, 1, 1, 2], [0], [0]>} : vector<2x8x8xf32>, vector<2x8x16xf32>, vector<2x8x16xf32> -> vector<2x8x16xf32>
    "tpu.trace_stop"() : () -> ()
    %c0_18 = arith.constant 0 : index
    %c0_19 = arith.constant 0 : index
    %c0_20 = arith.constant 0 : index
    %28 = vector.load %arg5[%c0_18, %c0_19, %c0_20] : memref<2x8x64xf32, #tpu.memory_space<vmem>>, vector<2x8x16xf32>
    tpu.vector_store %arg5[%c0_18, %c0_19, %c0_20], %27 {strides = array<i32>} : memref<2x8x64xf32, #tpu.memory_space<vmem>>, vector<2x8x16xf32>,
    %c1 = arith.constant 1 : index
    %c0_21 = arith.constant 0 : index
    %c0_22 = arith.constant 0 : index
    %29 = vector.load %arg2[%c1, %c0_21, %c0_22] : memref<4x16x32xf32, #tpu.memory_space<vmem>>, vector<1x16x32xf32>
    %30 = vector.shape_cast %29 : vector<1x16x32xf32> to vector<16x32xf32>
    %cst_23 = arith.constant dense<0.000000e+00> : vector<16x16xf32>
    %31 = tpu.matmul %1, %30, %cst_23 {dimension_numbers = #tpu.dot_dimension_numbers<[1], [1], [0], [0], [0, 0, 1, 0], [], []>} : vector<16x32xf32>, vector<16x32xf32>, vector<16x16xf32> -> vector<16x16xf32>
    %c1_24 = arith.constant 1 : index
    %c0_25 = arith.constant 0 : index
    %c0_26 = arith.constant 0 : index
    %32 = vector.load %arg3[%c1_24, %c0_25, %c0_26] : memref<4x16x32xf32, #tpu.memory_space<vmem>>, vector<1x16x32xf32>
    %33 = vector.shape_cast %32 : vector<1x16x32xf32> to vector<16x32xf32>
    %cst_27 = arith.constant dense<0.000000e+00> : vector<16x16xf32>
    %34 = tpu.matmul %1, %33, %cst_27 {dimension_numbers = #tpu.dot_dimension_numbers<[1], [1], [0], [0], [0, 0, 1, 0], [], []>} : vector<16x32xf32>, vector<16x32xf32>, vector<16x16xf32> -> vector<16x16xf32>
    %c1_28 = arith.constant 1 : index
    %c0_29 = arith.constant 0 : index
    %c0_30 = arith.constant 0 : index
    %35 = vector.load %arg4[%c1_28, %c0_29, %c0_30] : memref<4x16x32xf32, #tpu.memory_space<vmem>>, vector<1x16x32xf32>
    %36 = vector.shape_cast %35 : vector<1x16x32xf32> to vector<16x32xf32>
    %cst_31 = arith.constant dense<0.000000e+00> : vector<16x16xf32>
    %37 = tpu.matmul %1, %36, %cst_31 {dimension_numbers = #tpu.dot_dimension_numbers<[1], [1], [0], [0], [0, 0, 1, 0], [], []>} : vector<16x32xf32>, vector<16x32xf32>, vector<16x16xf32> -> vector<16x16xf32>
    %cst_32 = arith.constant 2.500000e-01 : f32
    %38 = vector.broadcast %cst_32 : f32 to vector<16x16xf32>
    %39 = arith.mulf %31, %38 : vector<16x16xf32>
    %40 = vector.shape_cast %39 : vector<16x16xf32> to vector<2x8x16xf32>
    %41 = vector.shape_cast %34 : vector<16x16xf32> to vector<2x8x16xf32>
    %42 = vector.shape_cast %37 : vector<16x16xf32> to vector<2x8x16xf32>
    "tpu.trace_start"() <{level = 10 : i32, message = "bqd,bkd->bqk"}> : () -> ()
    %cst_33 = arith.constant dense<0.000000e+00> : vector<2x8x8xf32>
    %43 = tpu.matmul %40, %41, %cst_33 {dimension_numbers = #tpu.dot_dimension_numbers<[2], [2], [1], [1], [0, 0, 0, 1, 1, 1], [0], [0]>} : vector<2x8x16xf32>, vector<2x8x16xf32>, vector<2x8x8xf32> -> vector<2x8x8xf32>
    "tpu.trace_stop"() : () -> ()
    %cst_34 = arith.constant dense<0xFF800000> : vector<2x8xf32>
    %44 = vector.multi_reduction <maximumf>, %43, %cst_34 [2] : vector<2x8x8xf32> to vector<2x8xf32>
    %45 = vector.shape_cast %44 : vector<2x8xf32> to vector<2x8x1xf32>
    %46 = vector.broadcast %45 : vector<2x8x1xf32> to vector<2x8x8xf32>
    %47 = arith.subf %43, %46 : vector<2x8x8xf32>
    %48 = math.exp %47 : vector<2x8x8xf32>
    %cst_35 = arith.constant dense<0.000000e+00> : vector<2x8xf32>
    %49 = vector.multi_reduction <add>, %48, %cst_35 [2] : vector<2x8x8xf32> to vector<2x8xf32>
    %50 = vector.shape_cast %49 : vector<2x8xf32> to vector<2x8x1xf32>
    %51 = tpu.reciprocal %50 : vector<2x8x1xf32> -> vector<2x8x1xf32>
    %52 = vector.broadcast %51 : vector<2x8x1xf32> to vector<2x8x8xf32>
    %53 = arith.mulf %48, %52 : vector<2x8x8xf32>
    "tpu.trace_start"() <{level = 10 : i32, message = "bqk,bkd->bqd"}> : () -> ()
    %cst_36 = arith.constant dense<0.000000e+00> : vector<2x8x16xf32>
    %54 = tpu.matmul %53, %42, %cst_36 {dimension_numbers = #tpu.dot_dimension_numbers<[2], [1], [1], [2], [0, 0, 0, 1, 1, 2], [0], [0]>} : vector<2x8x8xf32>, vector<2x8x16xf32>, vector<2x8x16xf32> -> vector<2x8x16xf32>
    "tpu.trace_stop"() : () -> ()
    %c0_37 = arith.constant 0 : index
    %c0_38 = arith.constant 0 : index
    %c16 = arith.constant 16 : index
    %55 = vector.load %arg5[%c0_37, %c0_38, %c16] : memref<2x8x64xf32, #tpu.memory_space<vmem>>, vector<2x8x16xf32>
    tpu.vector_store %arg5[%c0_37, %c0_38, %c16], %54 {strides = array<i32>} : memref<2x8x64xf32, #tpu.memory_space<vmem>>, vector<2x8x16xf32>,
    %c2 = arith.constant 2 : index
    %c0_39 = arith.constant 0 : index
    %c0_40 = arith.constant 0 : index
    %56 = vector.load %arg2[%c2, %c0_39, %c0_40] : memref<4x16x32xf32, #tpu.memory_space<vmem>>, vector<1x16x32xf32>
    %57 = vector.shape_cast %56 : vector<1x16x32xf32> to vector<16x32xf32>
    %cst_41 = arith.constant dense<0.000000e+00> : vector<16x16xf32>
    %58 = tpu.matmul %1, %57, %cst_41 {dimension_numbers = #tpu.dot_dimension_numbers<[1], [1], [0], [0], [0, 0, 1, 0], [], []>} : vector<16x32xf32>, vector<16x32xf32>, vector<16x16xf32> -> vector<16x16xf32>
    %c2_42 = arith.constant 2 : index
    %c0_43 = arith.constant 0 : index
    %c0_44 = arith.constant 0 : index
    %59 = vector.load %arg3[%c2_42, %c0_43, %c0_44] : memref<4x16x32xf32, #tpu.memory_space<vmem>>, vector<1x16x32xf32>
    %60 = vector.shape_cast %59 : vector<1x16x32xf32> to vector<16x32xf32>
    %cst_45 = arith.constant dense<0.000000e+00> : vector<16x16xf32>
    %61 = tpu.matmul %1, %60, %cst_45 {dimension_numbers = #tpu.dot_dimension_numbers<[1], [1], [0], [0], [0, 0, 1, 0], [], []>} : vector<16x32xf32>, vector<16x32xf32>, vector<16x16xf32> -> vector<16x16xf32>
    %c2_46 = arith.constant 2 : index
    %c0_47 = arith.constant 0 : index
    %c0_48 = arith.constant 0 : index
    %62 = vector.load %arg4[%c2_46, %c0_47, %c0_48] : memref<4x16x32xf32, #tpu.memory_space<vmem>>, vector<1x16x32xf32>
    %63 = vector.shape_cast %62 : vector<1x16x32xf32> to vector<16x32xf32>
    %cst_49 = arith.constant dense<0.000000e+00> : vector<16x16xf32>
    %64 = tpu.matmul %1, %63, %cst_49 {dimension_numbers = #tpu.dot_dimension_numbers<[1], [1], [0], [0], [0, 0, 1, 0], [], []>} : vector<16x32xf32>, vector<16x32xf32>, vector<16x16xf32> -> vector<16x16xf32>
    %cst_50 = arith.constant 2.500000e-01 : f32
    %65 = vector.broadcast %cst_50 : f32 to vector<16x16xf32>
    %66 = arith.mulf %58, %65 : vector<16x16xf32>
    %67 = vector.shape_cast %66 : vector<16x16xf32> to vector<2x8x16xf32>
    %68 = vector.shape_cast %61 : vector<16x16xf32> to vector<2x8x16xf32>
    %69 = vector.shape_cast %64 : vector<16x16xf32> to vector<2x8x16xf32>
    "tpu.trace_start"() <{level = 10 : i32, message = "bqd,bkd->bqk"}> : () -> ()
    %cst_51 = arith.constant dense<0.000000e+00> : vector<2x8x8xf32>
    %70 = tpu.matmul %67, %68, %cst_51 {dimension_numbers = #tpu.dot_dimension_numbers<[2], [2], [1], [1], [0, 0, 0, 1, 1, 1], [0], [0]>} : vector<2x8x16xf32>, vector<2x8x16xf32>, vector<2x8x8xf32> -> vector<2x8x8xf32>
    "tpu.trace_stop"() : () -> ()
    %cst_52 = arith.constant dense<0xFF800000> : vector<2x8xf32>
    %71 = vector.multi_reduction <maximumf>, %70, %cst_52 [2] : vector<2x8x8xf32> to vector<2x8xf32>
    %72 = vector.shape_cast %71 : vector<2x8xf32> to vector<2x8x1xf32>
    %73 = vector.broadcast %72 : vector<2x8x1xf32> to vector<2x8x8xf32>
    %74 = arith.subf %70, %73 : vector<2x8x8xf32>
    %75 = math.exp %74 : vector<2x8x8xf32>
    %cst_53 = arith.constant dense<0.000000e+00> : vector<2x8xf32>
    %76 = vector.multi_reduction <add>, %75, %cst_53 [2] : vector<2x8x8xf32> to vector<2x8xf32>
    %77 = vector.shape_cast %76 : vector<2x8xf32> to vector<2x8x1xf32>
    %78 = tpu.reciprocal %77 : vector<2x8x1xf32> -> vector<2x8x1xf32>
    %79 = vector.broadcast %78 : vector<2x8x1xf32> to vector<2x8x8xf32>
    %80 = arith.mulf %75, %79 : vector<2x8x8xf32>
    "tpu.trace_start"() <{level = 10 : i32, message = "bqk,bkd->bqd"}> : () -> ()
    %cst_54 = arith.constant dense<0.000000e+00> : vector<2x8x16xf32>
    %81 = tpu.matmul %80, %69, %cst_54 {dimension_numbers = #tpu.dot_dimension_numbers<[2], [1], [1], [2], [0, 0, 0, 1, 1, 2], [0], [0]>} : vector<2x8x8xf32>, vector<2x8x16xf32>, vector<2x8x16xf32> -> vector<2x8x16xf32>
    "tpu.trace_stop"() : () -> ()
    %c0_55 = arith.constant 0 : index
    %c0_56 = arith.constant 0 : index
    %c32 = arith.constant 32 : index
    %82 = vector.load %arg5[%c0_55, %c0_56, %c32] : memref<2x8x64xf32, #tpu.memory_space<vmem>>, vector<2x8x16xf32>
    tpu.vector_store %arg5[%c0_55, %c0_56, %c32], %81 {strides = array<i32>} : memref<2x8x64xf32, #tpu.memory_space<vmem>>, vector<2x8x16xf32>,
    %c3 = arith.constant 3 : index
    %c0_57 = arith.constant 0 : index
    %c0_58 = arith.constant 0 : index
    %83 = vector.load %arg2[%c3, %c0_57, %c0_58] : memref<4x16x32xf32, #tpu.memory_space<vmem>>, vector<1x16x32xf32>
    %84 = vector.shape_cast %83 : vector<1x16x32xf32> to vector<16x32xf32>
    %cst_59 = arith.constant dense<0.000000e+00> : vector<16x16xf32>
    %85 = tpu.matmul %1, %84, %cst_59 {dimension_numbers = #tpu.dot_dimension_numbers<[1], [1], [0], [0], [0, 0, 1, 0], [], []>} : vector<16x32xf32>, vector<16x32xf32>, vector<16x16xf32> -> vector<16x16xf32>
    %c3_60 = arith.constant 3 : index
    %c0_61 = arith.constant 0 : index
    %c0_62 = arith.constant 0 : index
    %86 = vector.load %arg3[%c3_60, %c0_61, %c0_62] : memref<4x16x32xf32, #tpu.memory_space<vmem>>, vector<1x16x32xf32>
    %87 = vector.shape_cast %86 : vector<1x16x32xf32> to vector<16x32xf32>
    %cst_63 = arith.constant dense<0.000000e+00> : vector<16x16xf32>
    %88 = tpu.matmul %1, %87, %cst_63 {dimension_numbers = #tpu.dot_dimension_numbers<[1], [1], [0], [0], [0, 0, 1, 0], [], []>} : vector<16x32xf32>, vector<16x32xf32>, vector<16x16xf32> -> vector<16x16xf32>
    %c3_64 = arith.constant 3 : index
    %c0_65 = arith.constant 0 : index
    %c0_66 = arith.constant 0 : index
    %89 = vector.load %arg4[%c3_64, %c0_65, %c0_66] : memref<4x16x32xf32, #tpu.memory_space<vmem>>, vector<1x16x32xf32>
    %90 = vector.shape_cast %89 : vector<1x16x32xf32> to vector<16x32xf32>
    %cst_67 = arith.constant dense<0.000000e+00> : vector<16x16xf32>
    %91 = tpu.matmul %1, %90, %cst_67 {dimension_numbers = #tpu.dot_dimension_numbers<[1], [1], [0], [0], [0, 0, 1, 0], [], []>} : vector<16x32xf32>, vector<16x32xf32>, vector<16x16xf32> -> vector<16x16xf32>
    %cst_68 = arith.constant 2.500000e-01 : f32
    %92 = vector.broadcast %cst_68 : f32 to vector<16x16xf32>
    %93 = arith.mulf %85, %92 : vector<16x16xf32>
    %94 = vector.shape_cast %93 : vector<16x16xf32> to vector<2x8x16xf32>
    %95 = vector.shape_cast %88 : vector<16x16xf32> to vector<2x8x16xf32>
    %96 = vector.shape_cast %91 : vector<16x16xf32> to vector<2x8x16xf32>
    "tpu.trace_start"() <{level = 10 : i32, message = "bqd,bkd->bqk"}> : () -> ()
    %cst_69 = arith.constant dense<0.000000e+00> : vector<2x8x8xf32>
    %97 = tpu.matmul %94, %95, %cst_69 {dimension_numbers = #tpu.dot_dimension_numbers<[2], [2], [1], [1], [0, 0, 0, 1, 1, 1], [0], [0]>} : vector<2x8x16xf32>, vector<2x8x16xf32>, vector<2x8x8xf32> -> vector<2x8x8xf32>
    "tpu.trace_stop"() : () -> ()
    %cst_70 = arith.constant dense<0xFF800000> : vector<2x8xf32>
    %98 = vector.multi_reduction <maximumf>, %97, %cst_70 [2] : vector<2x8x8xf32> to vector<2x8xf32>
    %99 = vector.shape_cast %98 : vector<2x8xf32> to vector<2x8x1xf32>
    %100 = vector.broadcast %99 : vector<2x8x1xf32> to vector<2x8x8xf32>
    %101 = arith.subf %97, %100 : vector<2x8x8xf32>
    %102 = math.exp %101 : vector<2x8x8xf32>
    %cst_71 = arith.constant dense<0.000000e+00> : vector<2x8xf32>
    %103 = vector.multi_reduction <add>, %102, %cst_71 [2] : vector<2x8x8xf32> to vector<2x8xf32>
    %104 = vector.shape_cast %103 : vector<2x8xf32> to vector<2x8x1xf32>
    %105 = tpu.reciprocal %104 : vector<2x8x1xf32> -> vector<2x8x1xf32>
    %106 = vector.broadcast %105 : vector<2x8x1xf32> to vector<2x8x8xf32>
    %107 = arith.mulf %102, %106 : vector<2x8x8xf32>
    "tpu.trace_start"() <{level = 10 : i32, message = "bqk,bkd->bqd"}> : () -> ()
    %cst_72 = arith.constant dense<0.000000e+00> : vector<2x8x16xf32>
    %108 = tpu.matmul %107, %96, %cst_72 {dimension_numbers = #tpu.dot_dimension_numbers<[2], [1], [1], [2], [0, 0, 0, 1, 1, 2], [0], [0]>} : vector<2x8x8xf32>, vector<2x8x16xf32>, vector<2x8x16xf32> -> vector<2x8x16xf32>
    "tpu.trace_stop"() : () -> ()
    %c0_73 = arith.constant 0 : index
    %c0_74 = arith.constant 0 : index
    %c48 = arith.constant 48 : index
    %109 = vector.load %arg5[%c0_73, %c0_74, %c48] : memref<2x8x64xf32, #tpu.memory_space<vmem>>, vector<2x8x16xf32>
    tpu.vector_store %arg5[%c0_73, %c0_74, %c48], %108 {strides = array<i32>} : memref<2x8x64xf32, #tpu.memory_space<vmem>>, vector<2x8x16xf32>,
    return
  }
  func.func @transform_0(%arg0: i32) -> (i32, i32, i32) {
    %c0_i32 = arith.constant 0 : i32
    %c0_i32_0 = arith.constant 0 : i32
    %c0_i32_1 = arith.constant 0 : i32
    return %arg0, %c0_i32, %c0_i32_0 : i32, i32, i32
  }
  func.func @transform_1(%arg0: i32) -> (i32, i32, i32) {
    %c0_i32 = arith.constant 0 : i32
    %c0_i32_0 = arith.constant 0 : i32
    %c0_i32_1 = arith.constant 0 : i32
    %c0_i32_2 = arith.constant 0 : i32
    return %c0_i32, %c0_i32_0, %c0_i32_1 : i32, i32, i32
  }
  func.func @transform_2(%arg0: i32) -> (i32, i32, i32) {
    %c0_i32 = arith.constant 0 : i32
    %c0_i32_0 = arith.constant 0 : i32
    %c0_i32_1 = arith.constant 0 : i32
    %c0_i32_2 = arith.constant 0 : i32
    return %c0_i32, %c0_i32_0, %c0_i32_1 : i32, i32, i32
  }
  func.func @transform_3(%arg0: i32) -> (i32, i32, i32) {
    %c0_i32 = arith.constant 0 : i32
    %c0_i32_0 = arith.constant 0 : i32
    %c0_i32_1 = arith.constant 0 : i32
    %c0_i32_2 = arith.constant 0 : i32
    return %c0_i32, %c0_i32_0, %c0_i32_1 : i32, i32, i32
  }
  func.func @transform_4(%arg0: i32) -> (i32, i32, i32) {
    %c0_i32 = arith.constant 0 : i32
    %c0_i32_0 = arith.constant 0 : i32
    %c0_i32_1 = arith.constant 0 : i32
    return %arg0, %c0_i32, %c0_i32_0 : i32, i32, i32
  }
}

module attributes {stable_mosaic.version = 11 : i64} {
  func.func @_mhsa_kernel(%arg0: i32, %arg1: memref<2x8x32xf32, #tpu.memory_space<vmem>>, %arg2: memref<4x16x32xf32, #tpu.memory_space<vmem>>, %arg3: memref<4x16x32xf32, #tpu.memory_space<vmem>>, %arg4: memref<4x16x32xf32, #tpu.memory_space<vmem>>, %arg5: memref<2x8x64xf32, #tpu.memory_space<vmem>>) attributes {dimension_semantics = [#tpu.dimension_semantics<parallel>], iteration_bounds = array<i64: 1>, scalar_prefetch = 0 : i64, scratch_operands = 0 : i64, tpu.core_type = #tpu.core_type<tc>, window_params = [{transform_indices = @transform_0, window_bounds = array<i64: 2, 8, 32>}, {pipeline_mode = #tpu.pipeline_mode<synchronous>, transform_indices = @transform_1, window_bounds = array<i64: 4, 16, 32>}, {pipeline_mode = #tpu.pipeline_mode<synchronous>, transform_indices = @transform_2, window_bounds = array<i64: 4, 16, 32>}, {pipeline_mode = #tpu.pipeline_mode<synchronous>, transform_indices = @transform_3, window_bounds = array<i64: 4, 16, 32>}, {transform_indices = @transform_4, window_bounds = array<i64: 2, 8, 64>}]} {
    %c0 = arith.constant 0 : index
    %c0_0 = arith.constant 0 : index
    %c0_1 = arith.constant 0 : index
    %0 = vector.load %arg1[%c0, %c0_0, %c0_1] : memref<2x8x32xf32, #tpu.memory_space<vmem>>, vector<2x8x32xf32>
    %1 = vector.shape_cast %0 : vector<2x8x32xf32> to vector<16x32xf32>
    %c0_2 = arith.constant 0 : index
    %c0_3 = arith.constant 0 : index
    %c0_4 = arith.constant 0 : index
    %2 = vector.load %arg2[%c0_2, %c0_3, %c0_4] : memref<4x16x32xf32, #tpu.memory_space<vmem>>, vector<1x16x32xf32>
    %3 = vector.shape_cast %2 : vector<1x16x32xf32> to vector<16x32xf32>
    %cst = arith.constant dense<0.000000e+00> : vector<16x16xf32>
    %4 = tpu.matmul %1, %3, %cst {dimension_numbers = #tpu.dot_dimension_numbers<[1], [1], [0], [0], [0, 0, 1, 0], [], []>} : vector<16x32xf32>, vector<16x32xf32>, vector<16x16xf32> -> vector<16x16xf32>
    %c0_5 = arith.constant 0 : index
    %c0_6 = arith.constant 0 : index
    %c0_7 = arith.constant 0 : index
    %5 = vector.load %arg3[%c0_5, %c0_6, %c0_7] : memref<4x16x32xf32, #tpu.memory_space<vmem>>, vector<1x16x32xf32>
    %6 = vector.shape_cast %5 : vector<1x16x32xf32> to vector<16x32xf32>
    %cst_8 = arith.constant dense<0.000000e+00> : vector<16x16xf32>
    %7 = tpu.matmul %1, %6, %cst_8 {dimension_numbers = #tpu.dot_dimension_numbers<[1], [1], [0], [0], [0, 0, 1, 0], [], []>} : vector<16x32xf32>, vector<16x32xf32>, vector<16x16xf32> -> vector<16x16xf32>
    %c0_9 = arith.constant 0 : index
    %c0_10 = arith.constant 0 : index
    %c0_11 = arith.constant 0 : index
    %8 = vector.load %arg4[%c0_9, %c0_10, %c0_11] : memref<4x16x32xf32, #tpu.memory_space<vmem>>, vector<1x16x32xf32>
    %9 = vector.shape_cast %8 : vector<1x16x32xf32> to vector<16x32xf32>
    %cst_12 = arith.constant dense<0.000000e+00> : vector<16x16xf32>
    %10 = tpu.matmul %1, %9, %cst_12 {dimension_numbers = #tpu.dot_dimension_numbers<[1], [1], [0], [0], [0, 0, 1, 0], [], []>} : vector<16x32xf32>, vector<16x32xf32>, vector<16x16xf32> -> vector<16x16xf32>
    %cst_13 = arith.constant 2.500000e-01 : f32
    %11 = vector.broadcast %cst_13 : f32 to vector<16x16xf32>
    %12 = arith.mulf %4, %11 : vector<16x16xf32>
    %13 = vector.shape_cast %12 : vector<16x16xf32> to vector<2x8x16xf32>
    %14 = vector.shape_cast %7 : vector<16x16xf32> to vector<2x8x16xf32>
    %15 = vector.shape_cast %10 : vector<16x16xf32> to vector<2x8x16xf32>
    "tpu.trace_start"() <{level = 10 : i32, message = "bqd,bkd->bqk"}> : () -> ()
    %cst_14 = arith.constant dense<0.000000e+00> : vector<2x8x8xf32>
    %16 = tpu.matmul %13, %14, %cst_14 {dimension_numbers = #tpu.dot_dimension_numbers<[2], [2], [1], [1], [0, 0, 0, 1, 1, 1], [0], [0]>} : vector<2x8x16xf32>, vector<2x8x16xf32>, vector<2x8x8xf32> -> vector<2x8x8xf32>
    "tpu.trace_stop"() : () -> ()
    %cst_15 = arith.constant dense<0xFF800000> : vector<2x8xf32>
    %17 = vector.multi_reduction <maximumf>, %16, %cst_15 [2] : vector<2x8x8xf32> to vector<2x8xf32>
    %18 = vector.shape_cast %17 : vector<2x8xf32> to vector<2x8x1xf32>
    %19 = vector.broadcast %18 : vector<2x8x1xf32> to vector<2x8x8xf32>
    %20 = arith.subf %16, %19 : vector<2x8x8xf32>
    %21 = math.exp %20 : vector<2x8x8xf32>
    %cst_16 = arith.constant dense<0.000000e+00> : vector<2x8xf32>
    %22 = vector.multi_reduction <add>, %21, %cst_16 [2] : vector<2x8x8xf32> to vector<2x8xf32>
    %23 = vector.shape_cast %22 : vector<2x8xf32> to vector<2x8x1xf32>
    %24 = tpu.reciprocal %23 : vector<2x8x1xf32> -> vector<2x8x1xf32>
    %25 = vector.broadcast %24 : vector<2x8x1xf32> to vector<2x8x8xf32>
    %26 = arith.mulf %21, %25 : vector<2x8x8xf32>
    "tpu.trace_start"() <{level = 10 : i32, message = "bqk,bkd->bqd"}> : () -> ()
    %cst_17 = arith.constant dense<0.000000e+00> : vector<2x8x16xf32>
    %27 = tpu.matmul %26, %15, %cst_17 {dimension_numbers = #tpu.dot_dimension_numbers<[2], [1], [1], [2], [0, 0, 0, 1, 1, 2], [0], [0]>} : vector<2x8x8xf32>, vector<2x8x16xf32>, vector<2x8x16xf32> -> vector<2x8x16xf32>
    "tpu.trace_stop"() : () -> ()
    %c0_18 = arith.constant 0 : index
    %c0_19 = arith.constant 0 : index
    %c0_20 = arith.constant 0 : index
    %28 = vector.load %arg5[%c0_18, %c0_19, %c0_20] : memref<2x8x64xf32, #tpu.memory_space<vmem>>, vector<2x8x16xf32>
    tpu.vector_store %arg5[%c0_18, %c0_19, %c0_20], %27 {strides = array<i32>} : memref<2x8x64xf32, #tpu.memory_space<vmem>>, vector<2x8x16xf32>,
    %c1 = arith.constant 1 : index
    %c0_21 = arith.constant 0 : index
    %c0_22 = arith.constant 0 : index
    %29 = vector.load %arg2[%c1, %c0_21, %c0_22] : memref<4x16x32xf32, #tpu.memory_space<vmem>>, vector<1x16x32xf32>
    %30 = vector.shape_cast %29 : vector<1x16x32xf32> to vector<16x32xf32>
    %cst_23 = arith.constant dense<0.000000e+00> : vector<16x16xf32>
    %31 = tpu.matmul %1, %30, %cst_23 {dimension_numbers = #tpu.dot_dimension_numbers<[1], [1], [0], [0], [0, 0, 1, 0], [], []>} : vector<16x32xf32>, vector<16x32xf32>, vector<16x16xf32> -> vector<16x16xf32>
    %c1_24 = arith.constant 1 : index
    %c0_25 = arith.constant 0 : index
    %c0_26 = arith.constant 0 : index
    %32 = vector.load %arg3[%c1_24, %c0_25, %c0_26] : memref<4x16x32xf32, #tpu.memory_space<vmem>>, vector<1x16x32xf32>
    %33 = vector.shape_cast %32 : vector<1x16x32xf32> to vector<16x32xf32>
    %cst_27 = arith.constant dense<0.000000e+00> : vector<16x16xf32>
    %34 = tpu.matmul %1, %33, %cst_27 {dimension_numbers = #tpu.dot_dimension_numbers<[1], [1], [0], [0], [0, 0, 1, 0], [], []>} : vector<16x32xf32>, vector<16x32xf32>, vector<16x16xf32> -> vector<16x16xf32>
    %c1_28 = arith.constant 1 : index
    %c0_29 = arith.constant 0 : index
    %c0_30 = arith.constant 0 : index
    %35 = vector.load %arg4[%c1_28, %c0_29, %c0_30] : memref<4x16x32xf32, #tpu.memory_space<vmem>>, vector<1x16x32xf32>
    %36 = vector.shape_cast %35 : vector<1x16x32xf32> to vector<16x32xf32>
    %cst_31 = arith.constant dense<0.000000e+00> : vector<16x16xf32>
    %37 = tpu.matmul %1, %36, %cst_31 {dimension_numbers = #tpu.dot_dimension_numbers<[1], [1], [0], [0], [0, 0, 1, 0], [], []>} : vector<16x32xf32>, vector<16x32xf32>, vector<16x16xf32> -> vector<16x16xf32>
    %cst_32 = arith.constant 2.500000e-01 : f32
    %38 = vector.broadcast %cst_32 : f32 to vector<16x16xf32>
    %39 = arith.mulf %31, %38 : vector<16x16xf32>
    %40 = vector.shape_cast %39 : vector<16x16xf32> to vector<2x8x16xf32>
    %41 = vector.shape_cast %34 : vector<16x16xf32> to vector<2x8x16xf32>
    %42 = vector.shape_cast %37 : vector<16x16xf32> to vector<2x8x16xf32>
    "tpu.trace_start"() <{level = 10 : i32, message = "bqd,bkd->bqk"}> : () -> ()
    %cst_33 = arith.constant dense<0.000000e+00> : vector<2x8x8xf32>
    %43 = tpu.matmul %40, %41, %cst_33 {dimension_numbers = #tpu.dot_dimension_numbers<[2], [2], [1], [1], [0, 0, 0, 1, 1, 1], [0], [0]>} : vector<2x8x16xf32>, vector<2x8x16xf32>, vector<2x8x8xf32> -> vector<2x8x8xf32>
    "tpu.trace_stop"() : () -> ()
    %cst_34 = arith.constant dense<0xFF800000> : vector<2x8xf32>
    %44 = vector.multi_reduction <maximumf>, %43, %cst_34 [2] : vector<2x8x8xf32> to vector<2x8xf32>
    %45 = vector.shape_cast %44 : vector<2x8xf32> to vector<2x8x1xf32>
    %46 = vector.broadcast %45 : vector<2x8x1xf32> to vector<2x8x8xf32>
    %47 = arith.subf %43, %46 : vector<2x8x8xf32>
    %48 = math.exp %47 : vector<2x8x8xf32>
    %cst_35 = arith.constant dense<0.000000e+00> : vector<2x8xf32>
    %49 = vector.multi_reduction <add>, %48, %cst_35 [2] : vector<2x8x8xf32> to vector<2x8xf32>
    %50 = vector.shape_cast %49 : vector<2x8xf32> to vector<2x8x1xf32>
    %51 = tpu.reciprocal %50 : vector<2x8x1xf32> -> vector<2x8x1xf32>
    %52 = vector.broadcast %51 : vector<2x8x1xf32> to vector<2x8x8xf32>
    %53 = arith.mulf %48, %52 : vector<2x8x8xf32>
    "tpu.trace_start"() <{level = 10 : i32, message = "bqk,bkd->bqd"}> : () -> ()
    %cst_36 = arith.constant dense<0.000000e+00> : vector<2x8x16xf32>
    %54 = tpu.matmul %53, %42, %cst_36 {dimension_numbers = #tpu.dot_dimension_numbers<[2], [1], [1], [2], [0, 0, 0, 1, 1, 2], [0], [0]>} : vector<2x8x8xf32>, vector<2x8x16xf32>, vector<2x8x16xf32> -> vector<2x8x16xf32>
    "tpu.trace_stop"() : () -> ()
    %c0_37 = arith.constant 0 : index
    %c0_38 = arith.constant 0 : index
    %c16 = arith.constant 16 : index
    %55 = vector.load %arg5[%c0_37, %c0_38, %c16] : memref<2x8x64xf32, #tpu.memory_space<vmem>>, vector<2x8x16xf32>
    tpu.vector_store %arg5[%c0_37, %c0_38, %c16], %54 {strides = array<i32>} : memref<2x8x64xf32, #tpu.memory_space<vmem>>, vector<2x8x16xf32>,
    %c2 = arith.constant 2 : index
    %c0_39 = arith.constant 0 : index
    %c0_40 = arith.constant 0 : index
    %56 = vector.load %arg2[%c2, %c0_39, %c0_40] : memref<4x16x32xf32, #tpu.memory_space<vmem>>, vector<1x16x32xf32>
    %57 = vector.shape_cast %56 : vector<1x16x32xf32> to vector<16x32xf32>
    %cst_41 = arith.constant dense<0.000000e+00> : vector<16x16xf32>
    %58 = tpu.matmul %1, %57, %cst_41 {dimension_numbers = #tpu.dot_dimension_numbers<[1], [1], [0], [0], [0, 0, 1, 0], [], []>} : vector<16x32xf32>, vector<16x32xf32>, vector<16x16xf32> -> vector<16x16xf32>
    %c2_42 = arith.constant 2 : index
    %c0_43 = arith.constant 0 : index
    %c0_44 = arith.constant 0 : index
    %59 = vector.load %arg3[%c2_42, %c0_43, %c0_44] : memref<4x16x32xf32, #tpu.memory_space<vmem>>, vector<1x16x32xf32>
    %60 = vector.shape_cast %59 : vector<1x16x32xf32> to vector<16x32xf32>
    %cst_45 = arith.constant dense<0.000000e+00> : vector<16x16xf32>
    %61 = tpu.matmul %1, %60, %cst_45 {dimension_numbers = #tpu.dot_dimension_numbers<[1], [1], [0], [0], [0, 0, 1, 0], [], []>} : vector<16x32xf32>, vector<16x32xf32>, vector<16x16xf32> -> vector<16x16xf32>
    %c2_46 = arith.constant 2 : index
    %c0_47 = arith.constant 0 : index
    %c0_48 = arith.constant 0 : index
    %62 = vector.load %arg4[%c2_46, %c0_47, %c0_48] : memref<4x16x32xf32, #tpu.memory_space<vmem>>, vector<1x16x32xf32>
    %63 = vector.shape_cast %62 : vector<1x16x32xf32> to vector<16x32xf32>
    %cst_49 = arith.constant dense<0.000000e+00> : vector<16x16xf32>
    %64 = tpu.matmul %1, %63, %cst_49 {dimension_numbers = #tpu.dot_dimension_numbers<[1], [1], [0], [0], [0, 0, 1, 0], [], []>} : vector<16x32xf32>, vector<16x32xf32>, vector<16x16xf32> -> vector<16x16xf32>
    %cst_50 = arith.constant 2.500000e-01 : f32
    %65 = vector.broadcast %cst_50 : f32 to vector<16x16xf32>
    %66 = arith.mulf %58, %65 : vector<16x16xf32>
    %67 = vector.shape_cast %66 : vector<16x16xf32> to vector<2x8x16xf32>
    %68 = vector.shape_cast %61 : vector<16x16xf32> to vector<2x8x16xf32>
    %69 = vector.shape_cast %64 : vector<16x16xf32> to vector<2x8x16xf32>
    "tpu.trace_start"() <{level = 10 : i32, message = "bqd,bkd->bqk"}> : () -> ()
    %cst_51 = arith.constant dense<0.000000e+00> : vector<2x8x8xf32>
    %70 = tpu.matmul %67, %68, %cst_51 {dimension_numbers = #tpu.dot_dimension_numbers<[2], [2], [1], [1], [0, 0, 0, 1, 1, 1], [0], [0]>} : vector<2x8x16xf32>, vector<2x8x16xf32>, vector<2x8x8xf32> -> vector<2x8x8xf32>
    "tpu.trace_stop"() : () -> ()
    %cst_52 = arith.constant dense<0xFF800000> : vector<2x8xf32>
    %71 = vector.multi_reduction <maximumf>, %70, %cst_52 [2] : vector<2x8x8xf32> to vector<2x8xf32>
    %72 = vector.shape_cast %71 : vector<2x8xf32> to vector<2x8x1xf32>
    %73 = vector.broadcast %72 : vector<2x8x1xf32> to vector<2x8x8xf32>
    %74 = arith.subf %70, %73 : vector<2x8x8xf32>
    %75 = math.exp %74 : vector<2x8x8xf32>
    %cst_53 = arith.constant dense<0.000000e+00> : vector<2x8xf32>
    %76 = vector.multi_reduction <add>, %75, %cst_53 [2] : vector<2x8x8xf32> to vector<2x8xf32>
    %77 = vector.shape_cast %76 : vector<2x8xf32> to vector<2x8x1xf32>
    %78 = tpu.reciprocal %77 : vector<2x8x1xf32> -> vector<2x8x1xf32>
    %79 = vector.broadcast %78 : vector<2x8x1xf32> to vector<2x8x8xf32>
    %80 = arith.mulf %75, %79 : vector<2x8x8xf32>
    "tpu.trace_start"() <{level = 10 : i32, message = "bqk,bkd->bqd"}> : () -> ()
    %cst_54 = arith.constant dense<0.000000e+00> : vector<2x8x16xf32>
    %81 = tpu.matmul %80, %69, %cst_54 {dimension_numbers = #tpu.dot_dimension_numbers<[2], [1], [1], [2], [0, 0, 0, 1, 1, 2], [0], [0]>} : vector<2x8x8xf32>, vector<2x8x16xf32>, vector<2x8x16xf32> -> vector<2x8x16xf32>
    "tpu.trace_stop"() : () -> ()
    %c0_55 = arith.constant 0 : index
    %c0_56 = arith.constant 0 : index
    %c32 = arith.constant 32 : index
    %82 = vector.load %arg5[%c0_55, %c0_56, %c32] : memref<2x8x64xf32, #tpu.memory_space<vmem>>, vector<2x8x16xf32>
    tpu.vector_store %arg5[%c0_55, %c0_56, %c32], %81 {strides = array<i32>} : memref<2x8x64xf32, #tpu.memory_space<vmem>>, vector<2x8x16xf32>,
    %c3 = arith.constant 3 : index
    %c0_57 = arith.constant 0 : index
    %c0_58 = arith.constant 0 : index
    %83 = vector.load %arg2[%c3, %c0_57, %c0_58] : memref<4x16x32xf32, #tpu.memory_space<vmem>>, vector<1x16x32xf32>
    %84 = vector.shape_cast %83 : vector<1x16x32xf32> to vector<16x32xf32>
    %cst_59 = arith.constant dense<0.000000e+00> : vector<16x16xf32>
    %85 = tpu.matmul %1, %84, %cst_59 {dimension_numbers = #tpu.dot_dimension_numbers<[1], [1], [0], [0], [0, 0, 1, 0], [], []>} : vector<16x32xf32>, vector<16x32xf32>, vector<16x16xf32> -> vector<16x16xf32>
    %c3_60 = arith.constant 3 : index
    %c0_61 = arith.constant 0 : index
    %c0_62 = arith.constant 0 : index
    %86 = vector.load %arg3[%c3_60, %c0_61, %c0_62] : memref<4x16x32xf32, #tpu.memory_space<vmem>>, vector<1x16x32xf32>
    %87 = vector.shape_cast %86 : vector<1x16x32xf32> to vector<16x32xf32>
    %cst_63 = arith.constant dense<0.000000e+00> : vector<16x16xf32>
    %88 = tpu.matmul %1, %87, %cst_63 {dimension_numbers = #tpu.dot_dimension_numbers<[1], [1], [0], [0], [0, 0, 1, 0], [], []>} : vector<16x32xf32>, vector<16x32xf32>, vector<16x16xf32> -> vector<16x16xf32>
    %c3_64 = arith.constant 3 : index
    %c0_65 = arith.constant 0 : index
    %c0_66 = arith.constant 0 : index
    %89 = vector.load %arg4[%c3_64, %c0_65, %c0_66] : memref<4x16x32xf32, #tpu.memory_space<vmem>>, vector<1x16x32xf32>
    %90 = vector.shape_cast %89 : vector<1x16x32xf32> to vector<16x32xf32>
    %cst_67 = arith.constant dense<0.000000e+00> : vector<16x16xf32>
    %91 = tpu.matmul %1, %90, %cst_67 {dimension_numbers = #tpu.dot_dimension_numbers<[1], [1], [0], [0], [0, 0, 1, 0], [], []>} : vector<16x32xf32>, vector<16x32xf32>, vector<16x16xf32> -> vector<16x16xf32>
    %cst_68 = arith.constant 2.500000e-01 : f32
    %92 = vector.broadcast %cst_68 : f32 to vector<16x16xf32>
    %93 = arith.mulf %85, %92 : vector<16x16xf32>
    %94 = vector.shape_cast %93 : vector<16x16xf32> to vector<2x8x16xf32>
    %95 = vector.shape_cast %88 : vector<16x16xf32> to vector<2x8x16xf32>
    %96 = vector.shape_cast %91 : vector<16x16xf32> to vector<2x8x16xf32>
    "tpu.trace_start"() <{level = 10 : i32, message = "bqd,bkd->bqk"}> : () -> ()
    %cst_69 = arith.constant dense<0.000000e+00> : vector<2x8x8xf32>
    %97 = tpu.matmul %94, %95, %cst_69 {dimension_numbers = #tpu.dot_dimension_numbers<[2], [2], [1], [1], [0, 0, 0, 1, 1, 1], [0], [0]>} : vector<2x8x16xf32>, vector<2x8x16xf32>, vector<2x8x8xf32> -> vector<2x8x8xf32>
    "tpu.trace_stop"() : () -> ()
    %cst_70 = arith.constant dense<0xFF800000> : vector<2x8xf32>
    %98 = vector.multi_reduction <maximumf>, %97, %cst_70 [2] : vector<2x8x8xf32> to vector<2x8xf32>
    %99 = vector.shape_cast %98 : vector<2x8xf32> to vector<2x8x1xf32>
    %100 = vector.broadcast %99 : vector<2x8x1xf32> to vector<2x8x8xf32>
    %101 = arith.subf %97, %100 : vector<2x8x8xf32>
    %102 = math.exp %101 : vector<2x8x8xf32>
    %cst_71 = arith.constant dense<0.000000e+00> : vector<2x8xf32>
    %103 = vector.multi_reduction <add>, %102, %cst_71 [2] : vector<2x8x8xf32> to vector<2x8xf32>
    %104 = vector.shape_cast %103 : vector<2x8xf32> to vector<2x8x1xf32>
    %105 = tpu.reciprocal %104 : vector<2x8x1xf32> -> vector<2x8x1xf32>
    %106 = vector.broadcast %105 : vector<2x8x1xf32> to vector<2x8x8xf32>
    %107 = arith.mulf %102, %106 : vector<2x8x8xf32>
    "tpu.trace_start"() <{level = 10 : i32, message = "bqk,bkd->bqd"}> : () -> ()
    %cst_72 = arith.constant dense<0.000000e+00> : vector<2x8x16xf32>
    %108 = tpu.matmul %107, %96, %cst_72 {dimension_numbers = #tpu.dot_dimension_numbers<[2], [1], [1], [2], [0, 0, 0, 1, 1, 2], [0], [0]>} : vector<2x8x8xf32>, vector<2x8x16xf32>, vector<2x8x16xf32> -> vector<2x8x16xf32>
    "tpu.trace_stop"() : () -> ()
    %c0_73 = arith.constant 0 : index
    %c0_74 = arith.constant 0 : index
    %c48 = arith.constant 48 : index
    %109 = vector.load %arg5[%c0_73, %c0_74, %c48] : memref<2x8x64xf32, #tpu.memory_space<vmem>>, vector<2x8x16xf32>
    tpu.vector_store %arg5[%c0_73, %c0_74, %c48], %108 {strides = array<i32>} : memref<2x8x64xf32, #tpu.memory_space<vmem>>, vector<2x8x16xf32>,
    return
  }
  func.func @transform_0(%arg0: i32) -> (i32, i32, i32) {
    %c0_i32 = arith.constant 0 : i32
    %c0_i32_0 = arith.constant 0 : i32
    %c0_i32_1 = arith.constant 0 : i32
    return %arg0, %c0_i32, %c0_i32_0 : i32, i32, i32
  }
  func.func @transform_1(%arg0: i32) -> (i32, i32, i32) {
    %c0_i32 = arith.constant 0 : i32
    %c0_i32_0 = arith.constant 0 : i32
    %c0_i32_1 = arith.constant 0 : i32
    %c0_i32_2 = arith.constant 0 : i32
    return %c0_i32, %c0_i32_0, %c0_i32_1 : i32, i32, i32
  }
  func.func @transform_2(%arg0: i32) -> (i32, i32, i32) {
    %c0_i32 = arith.constant 0 : i32
    %c0_i32_0 = arith.constant 0 : i32
    %c0_i32_1 = arith.constant 0 : i32
    %c0_i32_2 = arith.constant 0 : i32
    return %c0_i32, %c0_i32_0, %c0_i32_1 : i32, i32, i32
  }
  func.func @transform_3(%arg0: i32) -> (i32, i32, i32) {
    %c0_i32 = arith.constant 0 : i32
    %c0_i32_0 = arith.constant 0 : i32
    %c0_i32_1 = arith.constant 0 : i32
    %c0_i32_2 = arith.constant 0 : i32
    return %c0_i32, %c0_i32_0, %c0_i32_1 : i32, i32, i32
  }
  func.func @transform_4(%arg0: i32) -> (i32, i32, i32) {
    %c0_i32 = arith.constant 0 : i32
    %c0_i32_0 = arith.constant 0 : i32
    %c0_i32_1 = arith.constant 0 : i32
    return %arg0, %c0_i32, %c0_i32_0 : i32, i32, i32
  }
}

</mosaic_0001>

<llo_original>
// kernel: tpu_custom_call.1
$region0: #{tpu_custom_call.1}
  #allocation0 [shape = 'u32[]', space=smem, size = 0x4, offset = 0x4, fixed_abs, tag = 'smem constant byte address 0x4 - core index']
  #allocation1 [shape = 'u32[144,128]{1,0:T(1,128)}', space=vmem, size = 0x12000, scoped, tag = 'internal scratch']
  %s0 = inlined_call_operand.hbm [shape: f32[2,8,32], index: 0, kind: input, shape index: {}]
  %s1 = inlined_call_operand.hbm [shape: f32[4,16,32], index: 1, kind: input, shape index: {}]
  %s2 = inlined_call_operand.hbm [shape: f32[4,16,32], index: 2, kind: input, shape index: {}]
  %s3 = inlined_call_operand.hbm [shape: f32[4,16,32], index: 3, kind: input, shape index: {}]
  %s4 = inlined_call_operand.hbm [shape: f32[2,8,64], index: 4, kind: output, shape index: {}]
  %s5 = sld [smem:[#allocation0]]
  $region42: #{tpu_custom_call.1} parent=0
    _
  %s7 = ssub.s32 1, %s5
  %s8 = scalar_select 0, %s7, %s5
  $region1: #{tpu_custom_call.1} parent=0
    #allocation2 [shape = 'u8[8192]{0}', space=vmem, size = 0x2000, scoped, tag = 'input window, operand 0, single buffered']
    #allocation3 [shape = 's32[1]{0}', space=sflag, size = 0x4, scoped, tag = 'scoped memory for tpu_custom_call.1']
    #allocation4 [shape = 's32[1]{0}', space=sflag, size = 0x4, scoped, tag = 'scoped memory for tpu_custom_call.1']
    #allocation5 [shape = 'u8[32768]{0}', space=vmem, size = 0x8000, scoped, tag = 'input window, operand 1, single buffered']
    #allocation6 [shape = 's32[1]{0}', space=sflag, size = 0x4, scoped, tag = 'scoped memory for tpu_custom_call.1']
    #allocation7 [shape = 'u8[32768]{0}', space=vmem, size = 0x8000, scoped, tag = 'input window, operand 2, single buffered']
    #allocation8 [shape = 'u8[32768]{0}', space=vmem, size = 0x8000, scoped, tag = 'input window, operand 3, single buffered']
    #allocation9 [shape = 's32[1]{0}', space=sflag, size = 0x4, scoped, tag = 'scoped memory for tpu_custom_call.1']
    #allocation10 [shape = 'u8[8192]{0}', space=vmem, size = 0x2000, scoped, tag = 'output window, operand 0, single buffered']
    %9 = vsyncpa [#allocation3], 0
    %10 = vsyncpa [#allocation6], 0
    %11 = vsyncpa [#allocation9], 0
    %12 = vsyncpa [#allocation4], 0
    // Predicated region
    $region2: #{tpu_custom_call.1} parent=1 // pred_check
      _
    $region3: #{tpu_custom_call.1} parent=1 // pred_check_branch
      %14 = sbr.rel (0) target = $region5
    $region4: #{tpu_custom_call.1} parent=1 // pred_region
      %s16 = ssub.s32 256, 256
      %17 = vsyncadd [#allocation3], %s16
      %s18 = sshll.u32 [#allocation2], 4
      %s19 = int_to_ptr.vmem [resolvable:$true] %s18
      %24 = dma.hbm_to_vmem [thread:$0]  %s0, 256, %s19, [#allocation3], 128, 128, 8
    $region5: #{tpu_custom_call.1} parent=1 // pred_fallthru
      _
    // Predicated region
    $region6: #{tpu_custom_call.1} parent=1 // pred_check
      _
    $region7: #{tpu_custom_call.1} parent=1 // pred_check_branch
      %26 = sbr.rel (0) target = $region9
    $region8: #{tpu_custom_call.1} parent=1 // pred_region
      %s28 = ssub.s32 1024, 1024
      %29 = vsyncadd [#allocation6], %s28
      %s30 = sshll.u32 [#allocation5], 4
      %s31 = int_to_ptr.vmem [resolvable:$true] %s30
      %36 = dma.hbm_to_vmem [thread:$0]  %s1, 1024, %s31, [#allocation6], 128, 128, 8
    $region9: #{tpu_custom_call.1} parent=1 // pred_fallthru
      _
    // Predicated region
    $region10: #{tpu_custom_call.1} parent=1 // pred_check
      _
    $region11: #{tpu_custom_call.1} parent=1 // pred_check_branch
      %38 = sbr.rel (0) target = $region13
    $region12: #{tpu_custom_call.1} parent=1 // pred_region
      %s40 = ssub.s32 1024, 1024
      %41 = vsyncadd [#allocation6], %s40
      %s42 = sshll.u32 [#allocation7], 4
      %s43 = int_to_ptr.vmem [resolvable:$true] %s42
      %48 = dma.hbm_to_vmem [thread:$0]  %s2, 1024, %s43, [#allocation6], 128, 128, 8
    $region13: #{tpu_custom_call.1} parent=1 // pred_fallthru
      _
    // Predicated region
    $region14: #{tpu_custom_call.1} parent=1 // pred_check
      _
    $region15: #{tpu_custom_call.1} parent=1 // pred_check_branch
      %50 = sbr.rel (0) target = $region17
    $region16: #{tpu_custom_call.1} parent=1 // pred_region
      %s52 = ssub.s32 1024, 1024
      %53 = vsyncadd [#allocation9], %s52
      %s54 = sshll.u32 [#allocation8], 4
      %s55 = int_to_ptr.vmem [resolvable:$true] %s54
      %60 = dma.hbm_to_vmem [thread:$0]  %s3, 1024, %s55, [#allocation9], 128, 128, 8
    $region17: #{tpu_custom_call.1} parent=1 // pred_fallthru
      _
    // Predicated region
    $region18: #{tpu_custom_call.1} parent=1 // pred_check
      _
    $region19: #{tpu_custom_call.1} parent=1 // pred_check_branch
      %62 = sbr.rel (0) target = $region21
    $region20: #{tpu_custom_call.1} parent=1 // pred_region
      %63 = dma.done [#allocation3], 256
    $region21: #{tpu_custom_call.1} parent=1 // pred_fallthru
      _
    // Predicated region
    $region22: #{tpu_custom_call.1} parent=1 // pred_check
      _
    $region23: #{tpu_custom_call.1} parent=1 // pred_check_branch
      %65 = sbr.rel (0) target = $region25
    $region24: #{tpu_custom_call.1} parent=1 // pred_region
      %66 = dma.done [#allocation6], 1024
    $region25: #{tpu_custom_call.1} parent=1 // pred_fallthru
      _
    // Predicated region
    $region26: #{tpu_custom_call.1} parent=1 // pred_check
      _
    $region27: #{tpu_custom_call.1} parent=1 // pred_check_branch
      %68 = sbr.rel (0) target = $region29
    $region28: #{tpu_custom_call.1} parent=1 // pred_region
      %69 = dma.done [#allocation6], 1024
    $region29: #{tpu_custom_call.1} parent=1 // pred_fallthru
      _
    // Predicated region
    $region30: #{tpu_custom_call.1} parent=1 // pred_check
      _
    $region31: #{tpu_custom_call.1} parent=1 // pred_check_branch
      %71 = sbr.rel (0) target = $region33
    $region32: #{tpu_custom_call.1} parent=1 // pred_region
      %72 = dma.done [#allocation9], 1024
    $region33: #{tpu_custom_call.1} parent=1 // pred_fallthru
      _
    %v73 = vld [vmem:[#allocation2] sm:$0xff]
    %v74 = vld [vmem:[#allocation2 + $0x8] sm:$0xff]
    %v75 = vld [vmem:[#allocation5] sm:$0xff]
    %v76 = vld [vmem:[#allocation5 + $0x8] sm:$0xff]
    %vm77 = vcmask 261120
    %v79 = vsel %vm77, %v73, 0
    %v82 = vsel %vm77, %v74, 0
    %v85 = vsel %vm77, %v75, 0
    %v88 = vsel %vm77, %v76, 0
    %90 = vmatprep.subr.mxu0 0.0
    %91 = vmatpush1.xpose.msra.mxu0 %v85
    %92 = vmatprep.subr.mxu0 0.0
    %93 = vmatpush1.xpose.msra.mxu0 %v88
    %94 = vmatprep.subr.mxu0 0.0
    %95 = vmatpush1.xpose.msra.mxu0 0.0
    %96 = vmatprep.subr.mxu0 0.0
    %97 = vmatpush1.xpose.msra.mxu0 0.0
    %98 = vmatprep.subr.mxu0 0.0
    %99 = vmatpush1.xpose.msra.mxu0 0.0
    %100 = vmatprep.subr.mxu0 0.0
    %101 = vmatpush1.xpose.msra.mxu0 0.0
    %102 = vmatprep.subr.mxu0 0.0
    %103 = vmatpush1.xpose.msra.mxu0 0.0
    %104 = vmatprep.subr.mxu0 0.0
    %105 = vmatpush1.xpose.msra.mxu0 0.0
    %106 = vmatprep.subr.mxu0 0.0
    %107 = vmatpush1.xpose.msra.mxu0 0.0
    %108 = vmatprep.subr.mxu0 0.0
    %109 = vmatpush1.xpose.msra.mxu0 0.0
    %110 = vmatprep.subr.mxu0 0.0
    %111 = vmatpush1.xpose.msra.mxu0 0.0
    %112 = vmatprep.subr.mxu0 0.0
    %113 = vmatpush1.xpose.msra.mxu0 0.0
    %114 = vmatprep.subr.mxu0 0.0
    %115 = vmatpush1.xpose.msra.mxu0 0.0
    %116 = vmatprep.subr.mxu0 0.0
    %117 = vmatpush1.xpose.msra.mxu0 0.0
    %118 = vmatprep.subr.mxu0 0.0
    %119 = vmatpush1.xpose.msra.mxu0 0.0
    %120 = vmatprep.subr.mxu0 0.0
    %121 = vmatpush1.xpose.msra.mxu0 0.0
    %122 = vmatprep.subr.mxu0 0.0
    %123 = vmatpush1.xpose.msra.mxu0 0.0
    %124 = vmatprep.subr.mxu0 0.0
    %125 = vmatpush1.xpose.msra.mxu0 0.0
    %126 = vmatprep.subr.mxu0 0.0
    %127 = vmatpush1.xpose.msra.mxu0 0.0
    %128 = vmatprep.subr.mxu0 0.0
    %129 = vmatpush1.xpose.msra.mxu0 0.0
    %130 = vmatprep.subr.mxu0 0.0
    %131 = vmatpush1.xpose.msra.mxu0 0.0
    %132 = vmatprep.subr.mxu0 0.0
    %133 = vmatpush1.xpose.msra.mxu0 0.0
    %134 = vmatprep.subr.mxu0 0.0
    %135 = vmatpush1.xpose.msra.mxu0 0.0
    %136 = vmatprep.subr.mxu0 0.0
    %137 = vmatpush1.xpose.msra.mxu0 0.0
    %138 = vmatprep.subr.mxu0 0.0
    %139 = vmatpush1.xpose.msra.mxu0 0.0
    %140 = vmatprep.subr.mxu0 0.0
    %141 = vmatpush1.xpose.msra.mxu0 0.0
    %142 = vmatprep.subr.mxu0 0.0
    %143 = vmatpush1.xpose.msra.mxu0 0.0
    %144 = vmatprep.subr.mxu0 0.0
    %145 = vmatpush1.xpose.msra.mxu0 0.0
    %146 = vmatprep.subr.mxu0 0.0
    %147 = vmatpush1.xpose.msra.mxu0 0.0
    %148 = vmatprep.subr.mxu0 0.0
    %149 = vmatpush1.xpose.msra.mxu0 0.0
    %150 = vmatprep.subr.mxu0 0.0
    %151 = vmatpush1.xpose.msra.mxu0 0.0
    %152 = vmatprep.subr.mxu0 0.0
    %153 = vmatpush1.xpose.msra.mxu0 0.0
    %154 = vmatprep.mubr.f32.mxu0 0.0
    %155 = vmatmul.mubr.f32.gmra.mrb[0].mxu0 %v79
    %v156 = vpop.f32.mrb[0].mxu0
    %v157 = vadd.f32 0.0, %v156
    %v158 = vpop.f32.mrb[0].mxu0
    %159 = vmatprep.mubr.f32.mxu0 0.0
    %160 = vmatmul.mubr.f32.gmra.mrb[0].mxu0 %v82
    %v161 = vpop.f32.mrb[0].mxu0
    %v162 = vadd.f32 0.0, %v161
    %v163 = vpop.f32.mrb[0].mxu0
    %164 = vdwg.mxu0
    %v165 = vld [vmem:[#allocation7] sm:$0xff]
    %v166 = vld [vmem:[#allocation7 + $0x8] sm:$0xff]
    %v168 = vsel %vm77, %v165, 0
    %v171 = vsel %vm77, %v166, 0
    %173 = vmatprep.subr.mxu0 0.0
    %174 = vmatpush1.xpose.msra.mxu0 %v168
    %175 = vmatprep.subr.mxu0 0.0
    %176 = vmatpush1.xpose.msra.mxu0 %v171
    %177 = vmatprep.subr.mxu0 0.0
    %178 = vmatpush1.xpose.msra.mxu0 0.0
    %179 = vmatprep.subr.mxu0 0.0
    %180 = vmatpush1.xpose.msra.mxu0 0.0
    %181 = vmatprep.subr.mxu0 0.0
    %182 = vmatpush1.xpose.msra.mxu0 0.0
    %183 = vmatprep.subr.mxu0 0.0
    %184 = vmatpush1.xpose.msra.mxu0 0.0
    %185 = vmatprep.subr.mxu0 0.0
    %186 = vmatpush1.xpose.msra.mxu0 0.0
    %187 = vmatprep.subr.mxu0 0.0
    %188 = vmatpush1.xpose.msra.mxu0 0.0
    %189 = vmatprep.subr.mxu0 0.0
    %190 = vmatpush1.xpose.msra.mxu0 0.0
    %191 = vmatprep.subr.mxu0 0.0
    %192 = vmatpush1.xpose.msra.mxu0 0.0
    %193 = vmatprep.subr.mxu0 0.0
    %194 = vmatpush1.xpose.msra.mxu0 0.0
    %195 = vmatprep.subr.mxu0 0.0
    %196 = vmatpush1.xpose.msra.mxu0 0.0
    %197 = vmatprep.subr.mxu0 0.0
    %198 = vmatpush1.xpose.msra.mxu0 0.0
    %199 = vmatprep.subr.mxu0 0.0
    %200 = vmatpush1.xpose.msra.mxu0 0.0
    %201 = vmatprep.subr.mxu0 0.0
    %202 = vmatpush1.xpose.msra.mxu0 0.0
    %203 = vmatprep.subr.mxu0 0.0
    %204 = vmatpush1.xpose.msra.mxu0 0.0
    %205 = vmatprep.subr.mxu0 0.0
    %206 = vmatpush1.xpose.msra.mxu0 0.0
    %207 = vmatprep.subr.mxu0 0.0
    %208 = vmatpush1.xpose.msra.mxu0 0.0
    %209 = vmatprep.subr.mxu0 0.0
    %210 = vmatpush1.xpose.msra.mxu0 0.0
    %211 = vmatprep.subr.mxu0 0.0
    %212 = vmatpush1.xpose.msra.mxu0 0.0
    %213 = vmatprep.subr.mxu0 0.0
    %214 = vmatpush1.xpose.msra.mxu0 0.0
    %215 = vmatprep.subr.mxu0 0.0
    %216 = vmatpush1.xpose.msra.mxu0 0.0
    %217 = vmatprep.subr.mxu0 0.0
    %218 = vmatpush1.xpose.msra.mxu0 0.0
    %219 = vmatprep.subr.mxu0 0.0
    %220 = vmatpush1.xpose.msra.mxu0 0.0
    %221 = vmatprep.subr.mxu0 0.0
    %222 = vmatpush1.xpose.msra.mxu0 0.0
    %223 = vmatprep.subr.mxu0 0.0
    %224 = vmatpush1.xpose.msra.mxu0 0.0
    %225 = vmatprep.subr.mxu0 0.0
    %226 = vmatpush1.xpose.msra.mxu0 0.0
    %227 = vmatprep.subr.mxu0 0.0
    %228 = vmatpush1.xpose.msra.mxu0 0.0
    %229 = vmatprep.subr.mxu0 0.0
    %230 = vmatpush1.xpose.msra.mxu0 0.0
    %231 = vmatprep.subr.mxu0 0.0
    %232 = vmatpush1.xpose.msra.mxu0 0.0
    %233 = vmatprep.subr.mxu0 0.0
    %234 = vmatpush1.xpose.msra.mxu0 0.0
    %235 = vmatprep.subr.mxu0 0.0
    %236 = vmatpush1.xpose.msra.mxu0 0.0
    %237 = vmatprep.mubr.f32.mxu0 0.0
    %238 = vmatmul.mubr.f32.gmra.mrb[0].mxu0 %v79
    %v239 = vpop.f32.mrb[0].mxu0
    %v240 = vadd.f32 0.0, %v239
    %v241 = vpop.f32.mrb[0].mxu0
    %242 = vmatprep.mubr.f32.mxu0 0.0
    %243 = vmatmul.mubr.f32.gmra.mrb[0].mxu0 %v82
    %v244 = vpop.f32.mrb[0].mxu0
    %v245 = vadd.f32 0.0, %v244
    %v246 = vpop.f32.mrb[0].mxu0
    %247 = vdwg.mxu0
    %v248 = vld [vmem:[#allocation8] sm:$0xff]
    %v249 = vld [vmem:[#allocation8 + $0x8] sm:$0xff]
    %v251 = vsel %vm77, %v248, 0
    %v254 = vsel %vm77, %v249, 0
    %256 = vmatprep.subr.mxu0 0.0
    %257 = vmatpush1.xpose.msra.mxu0 %v251
    %258 = vmatprep.subr.mxu0 0.0
    %259 = vmatpush1.xpose.msra.mxu0 %v254
    %260 = vmatprep.subr.mxu0 0.0
    %261 = vmatpush1.xpose.msra.mxu0 0.0
    %262 = vmatprep.subr.mxu0 0.0
    %263 = vmatpush1.xpose.msra.mxu0 0.0
    %264 = vmatprep.subr.mxu0 0.0
    %265 = vmatpush1.xpose.msra.mxu0 0.0
    %266 = vmatprep.subr.mxu0 0.0
    %267 = vmatpush1.xpose.msra.mxu0 0.0
    %268 = vmatprep.subr.mxu0 0.0
    %269 = vmatpush1.xpose.msra.mxu0 0.0
    %270 = vmatprep.subr.mxu0 0.0
    %271 = vmatpush1.xpose.msra.mxu0 0.0
    %272 = vmatprep.subr.mxu0 0.0
    %273 = vmatpush1.xpose.msra.mxu0 0.0
    %274 = vmatprep.subr.mxu0 0.0
    %275 = vmatpush1.xpose.msra.mxu0 0.0
    %276 = vmatprep.subr.mxu0 0.0
    %277 = vmatpush1.xpose.msra.mxu0 0.0
    %278 = vmatprep.subr.mxu0 0.0
    %279 = vmatpush1.xpose.msra.mxu0 0.0
    %280 = vmatprep.subr.mxu0 0.0
    %281 = vmatpush1.xpose.msra.mxu0 0.0
    %282 = vmatprep.subr.mxu0 0.0
    %283 = vmatpush1.xpose.msra.mxu0 0.0
    %284 = vmatprep.subr.mxu0 0.0
    %285 = vmatpush1.xpose.msra.mxu0 0.0
    %286 = vmatprep.subr.mxu0 0.0
    %287 = vmatpush1.xpose.msra.mxu0 0.0
    %288 = vmatprep.subr.mxu0 0.0
    %289 = vmatpush1.xpose.msra.mxu0 0.0
    %290 = vmatprep.subr.mxu0 0.0
    %291 = vmatpush1.xpose.msra.mxu0 0.0
    %292 = vmatprep.subr.mxu0 0.0
    %293 = vmatpush1.xpose.msra.mxu0 0.0
    %294 = vmatprep.subr.mxu0 0.0
    %295 = vmatpush1.xpose.msra.mxu0 0.0
    %296 = vmatprep.subr.mxu0 0.0
    %297 = vmatpush1.xpose.msra.mxu0 0.0
    %298 = vmatprep.subr.mxu0 0.0
    %299 = vmatpush1.xpose.msra.mxu0 0.0
    %300 = vmatprep.subr.mxu0 0.0
    %301 = vmatpush1.xpose.msra.mxu0 0.0
    %302 = vmatprep.subr.mxu0 0.0
    %303 = vmatpush1.xpose.msra.mxu0 0.0
    %304 = vmatprep.subr.mxu0 0.0
    %305 = vmatpush1.xpose.msra.mxu0 0.0
    %306 = vmatprep.subr.mxu0 0.0
    %307 = vmatpush1.xpose.msra.mxu0 0.0
    %308 = vmatprep.subr.mxu0 0.0
    %309 = vmatpush1.xpose.msra.mxu0 0.0
    %310 = vmatprep.subr.mxu0 0.0
    %311 = vmatpush1.xpose.msra.mxu0 0.0
    %312 = vmatprep.subr.mxu0 0.0
    %313 = vmatpush1.xpose.msra.mxu0 0.0
    %314 = vmatprep.subr.mxu0 0.0
    %315 = vmatpush1.xpose.msra.mxu0 0.0
    %316 = vmatprep.subr.mxu0 0.0
    %317 = vmatpush1.xpose.msra.mxu0 0.0
    %318 = vmatprep.subr.mxu0 0.0
    %319 = vmatpush1.xpose.msra.mxu0 0.0
    %320 = vmatprep.mubr.f32.mxu0 0.0
    %321 = vmatmul.mubr.f32.gmra.mrb[0].mxu0 %v79
    %v322 = vpop.f32.mrb[0].mxu0
    %v323 = vadd.f32 0.0, %v322
    %v324 = vpop.f32.mrb[0].mxu0
    %325 = vmatprep.mubr.f32.mxu0 0.0
    %326 = vmatmul.mubr.f32.gmra.mrb[0].mxu0 %v82
    %v327 = vpop.f32.mrb[0].mxu0
    %v328 = vadd.f32 0.0, %v327
    %v329 = vpop.f32.mrb[0].mxu0
    %330 = vdwg.mxu0
    %v331 = vmul.f32 %v157, 0.25
    %v332 = vmul.f32 %v162, 0.25
    %vm333 = vcmask 130048
    %v335 = vsel %vm333, %v331, 0
    %v338 = vsel %vm333, %v240, 0
    %340 = vmatprep.subr.mxu0 0.0
    %341 = vmatpush1.xpose.msra.mxu0 %v338
    %342 = vmatprep.subr.mxu0 0.0
    %343 = vmatpush1.xpose.msra.mxu0 0.0
    %344 = vmatprep.subr.mxu0 0.0
    %345 = vmatpush1.xpose.msra.mxu0 0.0
    %346 = vmatprep.subr.mxu0 0.0
    %347 = vmatpush1.xpose.msra.mxu0 0.0
    %348 = vmatprep.subr.mxu0 0.0
    %349 = vmatpush1.xpose.msra.mxu0 0.0
    %350 = vmatprep.subr.mxu0 0.0
    %351 = vmatpush1.xpose.msra.mxu0 0.0
    %352 = vmatprep.subr.mxu0 0.0
    %353 = vmatpush1.xpose.msra.mxu0 0.0
    %354 = vmatprep.subr.mxu0 0.0
    %355 = vmatpush1.xpose.msra.mxu0 0.0
    %356 = vmatprep.subr.mxu0 0.0
    %357 = vmatpush1.xpose.msra.mxu0 0.0
    %358 = vmatprep.subr.mxu0 0.0
    %359 = vmatpush1.xpose.msra.mxu0 0.0
    %360 = vmatprep.subr.mxu0 0.0
    %361 = vmatpush1.xpose.msra.mxu0 0.0
    %362 = vmatprep.subr.mxu0 0.0
    %363 = vmatpush1.xpose.msra.mxu0 0.0
    %364 = vmatprep.subr.mxu0 0.0
    %365 = vmatpush1.xpose.msra.mxu0 0.0
    %366 = vmatprep.subr.mxu0 0.0
    %367 = vmatpush1.xpose.msra.mxu0 0.0
    %368 = vmatprep.subr.mxu0 0.0
    %369 = vmatpush1.xpose.msra.mxu0 0.0
    %370 = vmatprep.subr.mxu0 0.0
    %371 = vmatpush1.xpose.msra.mxu0 0.0
    %372 = vmatprep.subr.mxu0 0.0
    %373 = vmatpush1.xpose.msra.mxu0 0.0
    %374 = vmatprep.subr.mxu0 0.0
    %375 = vmatpush1.xpose.msra.mxu0 0.0
    %376 = vmatprep.subr.mxu0 0.0
    %377 = vmatpush1.xpose.msra.mxu0 0.0
    %378 = vmatprep.subr.mxu0 0.0
    %379 = vmatpush1.xpose.msra.mxu0 0.0
    %380 = vmatprep.subr.mxu0 0.0
    %381 = vmatpush1.xpose.msra.mxu0 0.0
    %382 = vmatprep.subr.mxu0 0.0
    %383 = vmatpush1.xpose.msra.mxu0 0.0
    %384 = vmatprep.subr.mxu0 0.0
    %385 = vmatpush1.xpose.msra.mxu0 0.0
    %386 = vmatprep.subr.mxu0 0.0
    %387 = vmatpush1.xpose.msra.mxu0 0.0
    %388 = vmatprep.subr.mxu0 0.0
    %389 = vmatpush1.xpose.msra.mxu0 0.0
    %390 = vmatprep.subr.mxu0 0.0
    %391 = vmatpush1.xpose.msra.mxu0 0.0
    %392 = vmatprep.subr.mxu0 0.0
    %393 = vmatpush1.xpose.msra.mxu0 0.0
    %394 = vmatprep.subr.mxu0 0.0
    %395 = vmatpush1.xpose.msra.mxu0 0.0
    %396 = vmatprep.subr.mxu0 0.0
    %397 = vmatpush1.xpose.msra.mxu0 0.0
    %398 = vmatprep.subr.mxu0 0.0
    %399 = vmatpush1.xpose.msra.mxu0 0.0
    %400 = vmatprep.subr.mxu0 0.0
    %401 = vmatpush1.xpose.msra.mxu0 0.0
    %402 = vmatprep.subr.mxu0 0.0
    %403 = vmatpush1.xpose.msra.mxu0 0.0
    %404 = vmatprep.mubr.f32.mxu0 0.0
    %405 = vmatmul.mubr.f32.gmra.mrb[0].mxu0 %v335
    %v406 = vpop.f32.mrb[0].mxu0
    %v407 = vadd.f32 0.0, %v406
    %v408 = vpop.f32.mrb[0].mxu0
    %409 = vdwg.mxu0
    %v411 = vsel %vm333, %v332, 0
    %v414 = vsel %vm333, %v245, 0
    %416 = vmatprep.subr.mxu0 0.0
    %417 = vmatpush1.xpose.msra.mxu0 %v414
    %418 = vmatprep.subr.mxu0 0.0
    %419 = vmatpush1.xpose.msra.mxu0 0.0
    %420 = vmatprep.subr.mxu0 0.0
    %421 = vmatpush1.xpose.msra.mxu0 0.0
    %422 = vmatprep.subr.mxu0 0.0
    %423 = vmatpush1.xpose.msra.mxu0 0.0
    %424 = vmatprep.subr.mxu0 0.0
    %425 = vmatpush1.xpose.msra.mxu0 0.0
    %426 = vmatprep.subr.mxu0 0.0
    %427 = vmatpush1.xpose.msra.mxu0 0.0
    %428 = vmatprep.subr.mxu0 0.0
    %429 = vmatpush1.xpose.msra.mxu0 0.0
    %430 = vmatprep.subr.mxu0 0.0
    %431 = vmatpush1.xpose.msra.mxu0 0.0
    %432 = vmatprep.subr.mxu0 0.0
    %433 = vmatpush1.xpose.msra.mxu0 0.0
    %434 = vmatprep.subr.mxu0 0.0
    %435 = vmatpush1.xpose.msra.mxu0 0.0
    %436 = vmatprep.subr.mxu0 0.0
    %437 = vmatpush1.xpose.msra.mxu0 0.0
    %438 = vmatprep.subr.mxu0 0.0
    %439 = vmatpush1.xpose.msra.mxu0 0.0
    %440 = vmatprep.subr.mxu0 0.0
    %441 = vmatpush1.xpose.msra.mxu0 0.0
    %442 = vmatprep.subr.mxu0 0.0
    %443 = vmatpush1.xpose.msra.mxu0 0.0
    %444 = vmatprep.subr.mxu0 0.0
    %445 = vmatpush1.xpose.msra.mxu0 0.0
    %446 = vmatprep.subr.mxu0 0.0
    %447 = vmatpush1.xpose.msra.mxu0 0.0
    %448 = vmatprep.subr.mxu0 0.0
    %449 = vmatpush1.xpose.msra.mxu0 0.0
    %450 = vmatprep.subr.mxu0 0.0
    %451 = vmatpush1.xpose.msra.mxu0 0.0
    %452 = vmatprep.subr.mxu0 0.0
    %453 = vmatpush1.xpose.msra.mxu0 0.0
    %454 = vmatprep.subr.mxu0 0.0
    %455 = vmatpush1.xpose.msra.mxu0 0.0
    %456 = vmatprep.subr.mxu0 0.0
    %457 = vmatpush1.xpose.msra.mxu0 0.0
    %458 = vmatprep.subr.mxu0 0.0
    %459 = vmatpush1.xpose.msra.mxu0 0.0
    %460 = vmatprep.subr.mxu0 0.0
    %461 = vmatpush1.xpose.msra.mxu0 0.0
    %462 = vmatprep.subr.mxu0 0.0
    %463 = vmatpush1.xpose.msra.mxu0 0.0
    %464 = vmatprep.subr.mxu0 0.0
    %465 = vmatpush1.xpose.msra.mxu0 0.0
    %466 = vmatprep.subr.mxu0 0.0
    %467 = vmatpush1.xpose.msra.mxu0 0.0
    %468 = vmatprep.subr.mxu0 0.0
    %469 = vmatpush1.xpose.msra.mxu0 0.0
    %470 = vmatprep.subr.mxu0 0.0
    %471 = vmatpush1.xpose.msra.mxu0 0.0
    %472 = vmatprep.subr.mxu0 0.0
    %473 = vmatpush1.xpose.msra.mxu0 0.0
    %474 = vmatprep.subr.mxu0 0.0
    %475 = vmatpush1.xpose.msra.mxu0 0.0
    %476 = vmatprep.subr.mxu0 0.0
    %477 = vmatpush1.xpose.msra.mxu0 0.0
    %478 = vmatprep.subr.mxu0 0.0
    %479 = vmatpush1.xpose.msra.mxu0 0.0
    %480 = vmatprep.mubr.f32.mxu0 0.0
    %481 = vmatmul.mubr.f32.gmra.mrb[0].mxu0 %v411
    %v482 = vpop.f32.mrb[0].mxu0
    %v483 = vadd.f32 0.0, %v482
    %v484 = vpop.f32.mrb[0].mxu0
    %485 = vdwg.mxu0
    %vm486 = vcmask 64512
    %v487 = vsel %vm486, %v407, -inf
    %488 = vmax.xlane.f32.xlu0 %v487
    %v489 = vpop.xlane.xlu0 %488
    %v490 = vsel %vm486, %v483, -inf
    %491 = vmax.xlane.f32.xlu0 %v490
    %v492 = vpop.xlane.xlu0 %491
    %v493 = vsub.f32 %v407, %v489
    %v494 = vsub.f32 %v483, %v492
    %v495 = vmul.f32 %v493, 1.442695
    %v496 = vpow.pop %v495
    %v497 = vmul.f32 %v494, 1.442695
    %v498 = vpow.pop %v497
    %v499 = vsel %vm486, %v496, 0.0
    %500 = vadd.xlane.f32.xlu0 %v499
    %v501 = vpop.xlane.xlu0 %500
    %v502 = vsel %vm486, %v498, 0.0
    %503 = vadd.xlane.f32.xlu0 %v502
    %v504 = vpop.xlane.xlu0 %503
    %v505 = vrcp.pop %v501
    %v506 = vrcp.pop %v504
    %v507 = vmul.f32 %v496, %v505
    %v508 = vmul.f32 %v498, %v506
    %v510 = vsel %vm486, %v507, 0
    %512 = vmatprep.subr.mxu0 0.0
    %513 = vmatpush1.msra.mxu0 %v323
    %514 = vmatprep.subr.mxu0 0.0
    %515 = vmatpush1.msra.mxu0 0.0
    %516 = vmatprep.subr.mxu0 0.0
    %517 = vmatpush1.msra.mxu0 0.0
    %518 = vmatprep.subr.mxu0 0.0
    %519 = vmatpush1.msra.mxu0 0.0
    %520 = vmatprep.subr.mxu0 0.0
    %521 = vmatpush1.msra.mxu0 0.0
    %522 = vmatprep.subr.mxu0 0.0
    %523 = vmatpush1.msra.mxu0 0.0
    %524 = vmatprep.subr.mxu0 0.0
    %525 = vmatpush1.msra.mxu0 0.0
    %526 = vmatprep.subr.mxu0 0.0
    %527 = vmatpush1.msra.mxu0 0.0
    %528 = vmatprep.subr.mxu0 0.0
    %529 = vmatpush1.msra.mxu0 0.0
    %530 = vmatprep.subr.mxu0 0.0
    %531 = vmatpush1.msra.mxu0 0.0
    %532 = vmatprep.subr.mxu0 0.0
    %533 = vmatpush1.msra.mxu0 0.0
    %534 = vmatprep.subr.mxu0 0.0
    %535 = vmatpush1.msra.mxu0 0.0
    %536 = vmatprep.subr.mxu0 0.0
    %537 = vmatpush1.msra.mxu0 0.0
    %538 = vmatprep.subr.mxu0 0.0
    %539 = vmatpush1.msra.mxu0 0.0
    %540 = vmatprep.subr.mxu0 0.0
    %541 = vmatpush1.msra.mxu0 0.0
    %542 = vmatprep.subr.mxu0 0.0
    %543 = vmatpush1.msra.mxu0 0.0
    %544 = vmatprep.subr.mxu0 0.0
    %545 = vmatpush1.msra.mxu0 0.0
    %546 = vmatprep.subr.mxu0 0.0
    %547 = vmatpush1.msra.mxu0 0.0
    %548 = vmatprep.subr.mxu0 0.0
    %549 = vmatpush1.msra.mxu0 0.0
    %550 = vmatprep.subr.mxu0 0.0
    %551 = vmatpush1.msra.mxu0 0.0
    %552 = vmatprep.subr.mxu0 0.0
    %553 = vmatpush1.msra.mxu0 0.0
    %554 = vmatprep.subr.mxu0 0.0
    %555 = vmatpush1.msra.mxu0 0.0
    %556 = vmatprep.subr.mxu0 0.0
    %557 = vmatpush1.msra.mxu0 0.0
    %558 = vmatprep.subr.mxu0 0.0
    %559 = vmatpush1.msra.mxu0 0.0
    %560 = vmatprep.subr.mxu0 0.0
    %561 = vmatpush1.msra.mxu0 0.0
    %562 = vmatprep.subr.mxu0 0.0
    %563 = vmatpush1.msra.mxu0 0.0
    %564 = vmatprep.subr.mxu0 0.0
    %565 = vmatpush1.msra.mxu0 0.0
    %566 = vmatprep.subr.mxu0 0.0
    %567 = vmatpush1.msra.mxu0 0.0
    %568 = vmatprep.subr.mxu0 0.0
    %569 = vmatpush1.msra.mxu0 0.0
    %570 = vmatprep.subr.mxu0 0.0
    %571 = vmatpush1.msra.mxu0 0.0
    %572 = vmatprep.subr.mxu0 0.0
    %573 = vmatpush1.msra.mxu0 0.0
    %574 = vmatprep.subr.mxu0 0.0
    %575 = vmatpush1.msra.mxu0 0.0
    %576 = vmatprep.mubr.f32.mxu0 0.0
    %577 = vmatmul.mubr.f32.gmra.mrb[0].mxu0 %v510
    %v578 = vpop.f32.mrb[0].mxu0
    %v579 = vadd.f32 0.0, %v578
    %v580 = vpop.f32.mrb[0].mxu0
    %581 = vdwg.mxu0
    %v583 = vsel %vm486, %v508, 0
    %585 = vmatprep.subr.mxu0 0.0
    %586 = vmatpush1.msra.mxu0 %v328
    %587 = vmatprep.subr.mxu0 0.0
    %588 = vmatpush1.msra.mxu0 0.0
    %589 = vmatprep.subr.mxu0 0.0
    %590 = vmatpush1.msra.mxu0 0.0
    %591 = vmatprep.subr.mxu0 0.0
    %592 = vmatpush1.msra.mxu0 0.0
    %593 = vmatprep.subr.mxu0 0.0
    %594 = vmatpush1.msra.mxu0 0.0
    %595 = vmatprep.subr.mxu0 0.0
    %596 = vmatpush1.msra.mxu0 0.0
    %597 = vmatprep.subr.mxu0 0.0
    %598 = vmatpush1.msra.mxu0 0.0
    %599 = vmatprep.subr.mxu0 0.0
    %600 = vmatpush1.msra.mxu0 0.0
    %601 = vmatprep.subr.mxu0 0.0
    %602 = vmatpush1.msra.mxu0 0.0
    %603 = vmatprep.subr.mxu0 0.0
    %604 = vmatpush1.msra.mxu0 0.0
    %605 = vmatprep.subr.mxu0 0.0
    %606 = vmatpush1.msra.mxu0 0.0
    %607 = vmatprep.subr.mxu0 0.0
    %608 = vmatpush1.msra.mxu0 0.0
    %609 = vmatprep.subr.mxu0 0.0
    %610 = vmatpush1.msra.mxu0 0.0
    %611 = vmatprep.subr.mxu0 0.0
    %612 = vmatpush1.msra.mxu0 0.0
    %613 = vmatprep.subr.mxu0 0.0
    %614 = vmatpush1.msra.mxu0 0.0
    %615 = vmatprep.subr.mxu0 0.0
    %616 = vmatpush1.msra.mxu0 0.0
    %617 = vmatprep.subr.mxu0 0.0
    %618 = vmatpush1.msra.mxu0 0.0
    %619 = vmatprep.subr.mxu0 0.0
    %620 = vmatpush1.msra.mxu0 0.0
    %621 = vmatprep.subr.mxu0 0.0
    %622 = vmatpush1.msra.mxu0 0.0
    %623 = vmatprep.subr.mxu0 0.0
    %624 = vmatpush1.msra.mxu0 0.0
    %625 = vmatprep.subr.mxu0 0.0
    %626 = vmatpush1.msra.mxu0 0.0
    %627 = vmatprep.subr.mxu0 0.0
    %628 = vmatpush1.msra.mxu0 0.0
    %629 = vmatprep.subr.mxu0 0.0
    %630 = vmatpush1.msra.mxu0 0.0
    %631 = vmatprep.subr.mxu0 0.0
    %632 = vmatpush1.msra.mxu0 0.0
    %633 = vmatprep.subr.mxu0 0.0
    %634 = vmatpush1.msra.mxu0 0.0
    %635 = vmatprep.subr.mxu0 0.0
    %636 = vmatpush1.msra.mxu0 0.0
    %637 = vmatprep.subr.mxu0 0.0
    %638 = vmatpush1.msra.mxu0 0.0
    %639 = vmatprep.subr.mxu0 0.0
    %640 = vmatpush1.msra.mxu0 0.0
    %641 = vmatprep.subr.mxu0 0.0
    %642 = vmatpush1.msra.mxu0 0.0
    %643 = vmatprep.subr.mxu0 0.0
    %644 = vmatpush1.msra.mxu0 0.0
    %645 = vmatprep.subr.mxu0 0.0
    %646 = vmatpush1.msra.mxu0 0.0
    %647 = vmatprep.subr.mxu0 0.0
    %648 = vmatpush1.msra.mxu0 0.0
    %649 = vmatprep.mubr.f32.mxu0 0.0
    %650 = vmatmul.mubr.f32.gmra.mrb[0].mxu0 %v583
    %v651 = vpop.f32.mrb[0].mxu0
    %v652 = vadd.f32 0.0, %v651
    %v653 = vpop.f32.mrb[0].mxu0
    %654 = vdwg.mxu0
    %655 = vst.msk [vmem:[#allocation10] sm:$0xff] %vm333, %v579
    %656 = vst.msk [vmem:[#allocation10 + $0x8] sm:$0xff] %vm333, %v652
    %s657 = scalar_lea.vmem [#allocation5], 16
    %v658 = vld [vmem:[%s657] sm:$0xff]
    %v659 = vld [vmem:[%s657 + $0x8] sm:$0xff]
    %v661 = vsel %vm77, %v658, 0
    %v664 = vsel %vm77, %v659, 0
    %666 = vmatprep.subr.mxu0 0.0
    %667 = vmatpush1.xpose.msra.mxu0 %v661
    %668 = vmatprep.subr.mxu0 0.0
    %669 = vmatpush1.xpose.msra.mxu0 %v664
    %670 = vmatprep.subr.mxu0 0.0
    %671 = vmatpush1.xpose.msra.mxu0 0.0
    %672 = vmatprep.subr.mxu0 0.0
    %673 = vmatpush1.xpose.msra.mxu0 0.0
    %674 = vmatprep.subr.mxu0 0.0
    %675 = vmatpush1.xpose.msra.mxu0 0.0
    %676 = vmatprep.subr.mxu0 0.0
    %677 = vmatpush1.xpose.msra.mxu0 0.0
    %678 = vmatprep.subr.mxu0 0.0
    %679 = vmatpush1.xpose.msra.mxu0 0.0
    %680 = vmatprep.subr.mxu0 0.0
    %681 = vmatpush1.xpose.msra.mxu0 0.0
    %682 = vmatprep.subr.mxu0 0.0
    %683 = vmatpush1.xpose.msra.mxu0 0.0
    %684 = vmatprep.subr.mxu0 0.0
    %685 = vmatpush1.xpose.msra.mxu0 0.0
    %686 = vmatprep.subr.mxu0 0.0
    %687 = vmatpush1.xpose.msra.mxu0 0.0
    %688 = vmatprep.subr.mxu0 0.0
    %689 = vmatpush1.xpose.msra.mxu0 0.0
    %690 = vmatprep.subr.mxu0 0.0
    %691 = vmatpush1.xpose.msra.mxu0 0.0
    %692 = vmatprep.subr.mxu0 0.0
    %693 = vmatpush1.xpose.msra.mxu0 0.0
    %694 = vmatprep.subr.mxu0 0.0
    %695 = vmatpush1.xpose.msra.mxu0 0.0
    %696 = vmatprep.subr.mxu0 0.0
    %697 = vmatpush1.xpose.msra.mxu0 0.0
    %698 = vmatprep.subr.mxu0 0.0
    %699 = vmatpush1.xpose.msra.mxu0 0.0
    %700 = vmatprep.subr.mxu0 0.0
    %701 = vmatpush1.xpose.msra.mxu0 0.0
    %702 = vmatprep.subr.mxu0 0.0
    %703 = vmatpush1.xpose.msra.mxu0 0.0
    %704 = vmatprep.subr.mxu0 0.0
    %705 = vmatpush1.xpose.msra.mxu0 0.0
    %706 = vmatprep.subr.mxu0 0.0
    %707 = vmatpush1.xpose.msra.mxu0 0.0
    %708 = vmatprep.subr.mxu0 0.0
    %709 = vmatpush1.xpose.msra.mxu0 0.0
    %710 = vmatprep.subr.mxu0 0.0
    %711 = vmatpush1.xpose.msra.mxu0 0.0
    %712 = vmatprep.subr.mxu0 0.0
    %713 = vmatpush1.xpose.msra.mxu0 0.0
    %714 = vmatprep.subr.mxu0 0.0
    %715 = vmatpush1.xpose.msra.mxu0 0.0
    %716 = vmatprep.subr.mxu0 0.0
    %717 = vmatpush1.xpose.msra.mxu0 0.0
    %718 = vmatprep.subr.mxu0 0.0
    %719 = vmatpush1.xpose.msra.mxu0 0.0
    %720 = vmatprep.subr.mxu0 0.0
    %721 = vmatpush1.xpose.msra.mxu0 0.0
    %722 = vmatprep.subr.mxu0 0.0
    %723 = vmatpush1.xpose.msra.mxu0 0.0
    %724 = vmatprep.subr.mxu0 0.0
    %725 = vmatpush1.xpose.msra.mxu0 0.0
    %726 = vmatprep.subr.mxu0 0.0
    %727 = vmatpush1.xpose.msra.mxu0 0.0
    %728 = vmatprep.subr.mxu0 0.0
    %729 = vmatpush1.xpose.msra.mxu0 0.0
    %730 = vmatprep.mubr.f32.mxu0 0.0
    %731 = vmatmul.mubr.f32.gmra.mrb[0].mxu0 %v79
    %v732 = vpop.f32.mrb[0].mxu0
    %v733 = vadd.f32 0.0, %v732
    %v734 = vpop.f32.mrb[0].mxu0
    %735 = vmatprep.mubr.f32.mxu0 0.0
    %736 = vmatmul.mubr.f32.gmra.mrb[0].mxu0 %v82
    %v737 = vpop.f32.mrb[0].mxu0
    %v738 = vadd.f32 0.0, %v737
    %v739 = vpop.f32.mrb[0].mxu0
    %740 = vdwg.mxu0
    %s741 = scalar_lea.vmem [#allocation7], 16
    %v742 = vld [vmem:[%s741] sm:$0xff]
    %v743 = vld [vmem:[%s741 + $0x8] sm:$0xff]
    %v745 = vsel %vm77, %v742, 0
    %v748 = vsel %vm77, %v743, 0
    %750 = vmatprep.subr.mxu0 0.0
    %751 = vmatpush1.xpose.msra.mxu0 %v745
    %752 = vmatprep.subr.mxu0 0.0
    %753 = vmatpush1.xpose.msra.mxu0 %v748
    %754 = vmatprep.subr.mxu0 0.0
    %755 = vmatpush1.xpose.msra.mxu0 0.0
    %756 = vmatprep.subr.mxu0 0.0
    %757 = vmatpush1.xpose.msra.mxu0 0.0
    %758 = vmatprep.subr.mxu0 0.0
    %759 = vmatpush1.xpose.msra.mxu0 0.0
    %760 = vmatprep.subr.mxu0 0.0
    %761 = vmatpush1.xpose.msra.mxu0 0.0
    %762 = vmatprep.subr.mxu0 0.0
    %763 = vmatpush1.xpose.msra.mxu0 0.0
    %764 = vmatprep.subr.mxu0 0.0
    %765 = vmatpush1.xpose.msra.mxu0 0.0
    %766 = vmatprep.subr.mxu0 0.0
    %767 = vmatpush1.xpose.msra.mxu0 0.0
    %768 = vmatprep.subr.mxu0 0.0
    %769 = vmatpush1.xpose.msra.mxu0 0.0
    %770 = vmatprep.subr.mxu0 0.0
    %771 = vmatpush1.xpose.msra.mxu0 0.0
    %772 = vmatprep.subr.mxu0 0.0
    %773 = vmatpush1.xpose.msra.mxu0 0.0
    %774 = vmatprep.subr.mxu0 0.0
    %775 = vmatpush1.xpose.msra.mxu0 0.0
    %776 = vmatprep.subr.mxu0 0.0
    %777 = vmatpush1.xpose.msra.mxu0 0.0
    %778 = vmatprep.subr.mxu0 0.0
    %779 = vmatpush1.xpose.msra.mxu0 0.0
    %780 = vmatprep.subr.mxu0 0.0
    %781 = vmatpush1.xpose.msra.mxu0 0.0
    %782 = vmatprep.subr.mxu0 0.0
    %783 = vmatpush1.xpose.msra.mxu0 0.0
    %784 = vmatprep.subr.mxu0 0.0
    %785 = vmatpush1.xpose.msra.mxu0 0.0
    %786 = vmatprep.subr.mxu0 0.0
    %787 = vmatpush1.xpose.msra.mxu0 0.0
    %788 = vmatprep.subr.mxu0 0.0
    %789 = vmatpush1.xpose.msra.mxu0 0.0
    %790 = vmatprep.subr.mxu0 0.0
    %791 = vmatpush1.xpose.msra.mxu0 0.0
    %792 = vmatprep.subr.mxu0 0.0
    %793 = vmatpush1.xpose.msra.mxu0 0.0
    %794 = vmatprep.subr.mxu0 0.0
    %795 = vmatpush1.xpose.msra.mxu0 0.0
    %796 = vmatprep.subr.mxu0 0.0
    %797 = vmatpush1.xpose.msra.mxu0 0.0
    %798 = vmatprep.subr.mxu0 0.0
    %799 = vmatpush1.xpose.msra.mxu0 0.0
    %800 = vmatprep.subr.mxu0 0.0
    %801 = vmatpush1.xpose.msra.mxu0 0.0
    %802 = vmatprep.subr.mxu0 0.0
    %803 = vmatpush1.xpose.msra.mxu0 0.0
    %804 = vmatprep.subr.mxu0 0.0
    %805 = vmatpush1.xpose.msra.mxu0 0.0
    %806 = vmatprep.subr.mxu0 0.0
    %807 = vmatpush1.xpose.msra.mxu0 0.0
    %808 = vmatprep.subr.mxu0 0.0
    %809 = vmatpush1.xpose.msra.mxu0 0.0
    %810 = vmatprep.subr.mxu0 0.0
    %811 = vmatpush1.xpose.msra.mxu0 0.0
    %812 = vmatprep.subr.mxu0 0.0
    %813 = vmatpush1.xpose.msra.mxu0 0.0
    %814 = vmatprep.mubr.f32.mxu0 0.0
    %815 = vmatmul.mubr.f32.gmra.mrb[0].mxu0 %v79
    %v816 = vpop.f32.mrb[0].mxu0
    %v817 = vadd.f32 0.0, %v816
    %v818 = vpop.f32.mrb[0].mxu0
    %819 = vmatprep.mubr.f32.mxu0 0.0
    %820 = vmatmul.mubr.f32.gmra.mrb[0].mxu0 %v82
    %v821 = vpop.f32.mrb[0].mxu0
    %v822 = vadd.f32 0.0, %v821
    %v823 = vpop.f32.mrb[0].mxu0
    %824 = vdwg.mxu0
    %s825 = scalar_lea.vmem [#allocation8], 16
    %v826 = vld [vmem:[%s825] sm:$0xff]
    %v827 = vld [vmem:[%s825 + $0x8] sm:$0xff]
    %v829 = vsel %vm77, %v826, 0
    %v832 = vsel %vm77, %v827, 0
    %834 = vmatprep.subr.mxu0 0.0
    %835 = vmatpush1.xpose.msra.mxu0 %v829
    %836 = vmatprep.subr.mxu0 0.0
    %837 = vmatpush1.xpose.msra.mxu0 %v832
    %838 = vmatprep.subr.mxu0 0.0
    %839 = vmatpush1.xpose.msra.mxu0 0.0
    %840 = vmatprep.subr.mxu0 0.0
    %841 = vmatpush1.xpose.msra.mxu0 0.0
    %842 = vmatprep.subr.mxu0 0.0
    %843 = vmatpush1.xpose.msra.mxu0 0.0
    %844 = vmatprep.subr.mxu0 0.0
    %845 = vmatpush1.xpose.msra.mxu0 0.0
    %846 = vmatprep.subr.mxu0 0.0
    %847 = vmatpush1.xpose.msra.mxu0 0.0
    %848 = vmatprep.subr.mxu0 0.0
    %849 = vmatpush1.xpose.msra.mxu0 0.0
    %850 = vmatprep.subr.mxu0 0.0
    %851 = vmatpush1.xpose.msra.mxu0 0.0
    %852 = vmatprep.subr.mxu0 0.0
    %853 = vmatpush1.xpose.msra.mxu0 0.0
    %854 = vmatprep.subr.mxu0 0.0
    %855 = vmatpush1.xpose.msra.mxu0 0.0
    %856 = vmatprep.subr.mxu0 0.0
    %857 = vmatpush1.xpose.msra.mxu0 0.0
    %858 = vmatprep.subr.mxu0 0.0
    %859 = vmatpush1.xpose.msra.mxu0 0.0
    %860 = vmatprep.subr.mxu0 0.0
    %861 = vmatpush1.xpose.msra.mxu0 0.0
    %862 = vmatprep.subr.mxu0 0.0
    %863 = vmatpush1.xpose.msra.mxu0 0.0
    %864 = vmatprep.subr.mxu0 0.0
    %865 = vmatpush1.xpose.msra.mxu0 0.0
    %866 = vmatprep.subr.mxu0 0.0
    %867 = vmatpush1.xpose.msra.mxu0 0.0
    %868 = vmatprep.subr.mxu0 0.0
    %869 = vmatpush1.xpose.msra.mxu0 0.0
    %870 = vmatprep.subr.mxu0 0.0
    %871 = vmatpush1.xpose.msra.mxu0 0.0
    %872 = vmatprep.subr.mxu0 0.0
    %873 = vmatpush1.xpose.msra.mxu0 0.0
    %874 = vmatprep.subr.mxu0 0.0
    %875 = vmatpush1.xpose.msra.mxu0 0.0
    %876 = vmatprep.subr.mxu0 0.0
    %877 = vmatpush1.xpose.msra.mxu0 0.0
    %878 = vmatprep.subr.mxu0 0.0
    %879 = vmatpush1.xpose.msra.mxu0 0.0
    %880 = vmatprep.subr.mxu0 0.0
    %881 = vmatpush1.xpose.msra.mxu0 0.0
    %882 = vmatprep.subr.mxu0 0.0
    %883 = vmatpush1.xpose.msra.mxu0 0.0
    %884 = vmatprep.subr.mxu0 0.0
    %885 = vmatpush1.xpose.msra.mxu0 0.0
    %886 = vmatprep.subr.mxu0 0.0
    %887 = vmatpush1.xpose.msra.mxu0 0.0
    %888 = vmatprep.subr.mxu0 0.0
    %889 = vmatpush1.xpose.msra.mxu0 0.0
    %890 = vmatprep.subr.mxu0 0.0
    %891 = vmatpush1.xpose.msra.mxu0 0.0
    %892 = vmatprep.subr.mxu0 0.0
    %893 = vmatpush1.xpose.msra.mxu0 0.0
    %894 = vmatprep.subr.mxu0 0.0
    %895 = vmatpush1.xpose.msra.mxu0 0.0
    %896 = vmatprep.subr.mxu0 0.0
    %897 = vmatpush1.xpose.msra.mxu0 0.0
    %898 = vmatprep.mubr.f32.mxu0 0.0
    %899 = vmatmul.mubr.f32.gmra.mrb[0].mxu0 %v79
    %v900 = vpop.f32.mrb[0].mxu0
    %v901 = vadd.f32 0.0, %v900
    %v902 = vpop.f32.mrb[0].mxu0
    %903 = vmatprep.mubr.f32.mxu0 0.0
    %904 = vmatmul.mubr.f32.gmra.mrb[0].mxu0 %v82
    %v905 = vpop.f32.mrb[0].mxu0
    %v906 = vadd.f32 0.0, %v905
    %v907 = vpop.f32.mrb[0].mxu0
    %908 = vdwg.mxu0
    %v909 = vmul.f32 %v733, 0.25
    %v910 = vmul.f32 %v738, 0.25
    %v912 = vsel %vm333, %v909, 0
    %v915 = vsel %vm333, %v817, 0
    %917 = vmatprep.subr.mxu0 0.0
    %918 = vmatpush1.xpose.msra.mxu0 %v915
    %919 = vmatprep.subr.mxu0 0.0
    %920 = vmatpush1.xpose.msra.mxu0 0.0
    %921 = vmatprep.subr.mxu0 0.0
    %922 = vmatpush1.xpose.msra.mxu0 0.0
    %923 = vmatprep.subr.mxu0 0.0
    %924 = vmatpush1.xpose.msra.mxu0 0.0
    %925 = vmatprep.subr.mxu0 0.0
    %926 = vmatpush1.xpose.msra.mxu0 0.0
    %927 = vmatprep.subr.mxu0 0.0
    %928 = vmatpush1.xpose.msra.mxu0 0.0
    %929 = vmatprep.subr.mxu0 0.0
    %930 = vmatpush1.xpose.msra.mxu0 0.0
    %931 = vmatprep.subr.mxu0 0.0
    %932 = vmatpush1.xpose.msra.mxu0 0.0
    %933 = vmatprep.subr.mxu0 0.0
    %934 = vmatpush1.xpose.msra.mxu0 0.0
    %935 = vmatprep.subr.mxu0 0.0
    %936 = vmatpush1.xpose.msra.mxu0 0.0
    %937 = vmatprep.subr.mxu0 0.0
    %938 = vmatpush1.xpose.msra.mxu0 0.0
    %939 = vmatprep.subr.mxu0 0.0
    %940 = vmatpush1.xpose.msra.mxu0 0.0
    %941 = vmatprep.subr.mxu0 0.0
    %942 = vmatpush1.xpose.msra.mxu0 0.0
    %943 = vmatprep.subr.mxu0 0.0
    %944 = vmatpush1.xpose.msra.mxu0 0.0
    %945 = vmatprep.subr.mxu0 0.0
    %946 = vmatpush1.xpose.msra.mxu0 0.0
    %947 = vmatprep.subr.mxu0 0.0
    %948 = vmatpush1.xpose.msra.mxu0 0.0
    %949 = vmatprep.subr.mxu0 0.0
    %950 = vmatpush1.xpose.msra.mxu0 0.0
    %951 = vmatprep.subr.mxu0 0.0
    %952 = vmatpush1.xpose.msra.mxu0 0.0
    %953 = vmatprep.subr.mxu0 0.0
    %954 = vmatpush1.xpose.msra.mxu0 0.0
    %955 = vmatprep.subr.mxu0 0.0
    %956 = vmatpush1.xpose.msra.mxu0 0.0
    %957 = vmatprep.subr.mxu0 0.0
    %958 = vmatpush1.xpose.msra.mxu0 0.0
    %959 = vmatprep.subr.mxu0 0.0
    %960 = vmatpush1.xpose.msra.mxu0 0.0
    %961 = vmatprep.subr.mxu0 0.0
    %962 = vmatpush1.xpose.msra.mxu0 0.0
    %963 = vmatprep.subr.mxu0 0.0
    %964 = vmatpush1.xpose.msra.mxu0 0.0
    %965 = vmatprep.subr.mxu0 0.0
    %966 = vmatpush1.xpose.msra.mxu0 0.0
    %967 = vmatprep.subr.mxu0 0.0
    %968 = vmatpush1.xpose.msra.mxu0 0.0
    %969 = vmatprep.subr.mxu0 0.0
    %970 = vmatpush1.xpose.msra.mxu0 0.0
    %971 = vmatprep.subr.mxu0 0.0
    %972 = vmatpush1.xpose.msra.mxu0 0.0
    %973 = vmatprep.subr.mxu0 0.0
    %974 = vmatpush1.xpose.msra.mxu0 0.0
    %975 = vmatprep.subr.mxu0 0.0
    %976 = vmatpush1.xpose.msra.mxu0 0.0
    %977 = vmatprep.subr.mxu0 0.0
    %978 = vmatpush1.xpose.msra.mxu0 0.0
    %979 = vmatprep.subr.mxu0 0.0
    %980 = vmatpush1.xpose.msra.mxu0 0.0
    %981 = vmatprep.mubr.f32.mxu0 0.0
    %982 = vmatmul.mubr.f32.gmra.mrb[0].mxu0 %v912
    %v983 = vpop.f32.mrb[0].mxu0
    %v984 = vadd.f32 0.0, %v983
    %v985 = vpop.f32.mrb[0].mxu0
    %986 = vdwg.mxu0
    %v988 = vsel %vm333, %v910, 0
    %v991 = vsel %vm333, %v822, 0
    %993 = vmatprep.subr.mxu0 0.0
    %994 = vmatpush1.xpose.msra.mxu0 %v991
    %995 = vmatprep.subr.mxu0 0.0
    %996 = vmatpush1.xpose.msra.mxu0 0.0
    %997 = vmatprep.subr.mxu0 0.0
    %998 = vmatpush1.xpose.msra.mxu0 0.0
    %999 = vmatprep.subr.mxu0 0.0
    %1000 = vmatpush1.xpose.msra.mxu0 0.0
    %1001 = vmatprep.subr.mxu0 0.0
    %1002 = vmatpush1.xpose.msra.mxu0 0.0
    %1003 = vmatprep.subr.mxu0 0.0
    %1004 = vmatpush1.xpose.msra.mxu0 0.0
    %1005 = vmatprep.subr.mxu0 0.0
    %1006 = vmatpush1.xpose.msra.mxu0 0.0
    %1007 = vmatprep.subr.mxu0 0.0
    %1008 = vmatpush1.xpose.msra.mxu0 0.0
    %1009 = vmatprep.subr.mxu0 0.0
    %1010 = vmatpush1.xpose.msra.mxu0 0.0
    %1011 = vmatprep.subr.mxu0 0.0
    %1012 = vmatpush1.xpose.msra.mxu0 0.0
    %1013 = vmatprep.subr.mxu0 0.0
    %1014 = vmatpush1.xpose.msra.mxu0 0.0
    %1015 = vmatprep.subr.mxu0 0.0
    %1016 = vmatpush1.xpose.msra.mxu0 0.0
    %1017 = vmatprep.subr.mxu0 0.0
    %1018 = vmatpush1.xpose.msra.mxu0 0.0
    %1019 = vmatprep.subr.mxu0 0.0
    %1020 = vmatpush1.xpose.msra.mxu0 0.0
    %1021 = vmatprep.subr.mxu0 0.0
    %1022 = vmatpush1.xpose.msra.mxu0 0.0
    %1023 = vmatprep.subr.mxu0 0.0
    %1024 = vmatpush1.xpose.msra.mxu0 0.0
    %1025 = vmatprep.subr.mxu0 0.0
    %1026 = vmatpush1.xpose.msra.mxu0 0.0
    %1027 = vmatprep.subr.mxu0 0.0
    %1028 = vmatpush1.xpose.msra.mxu0 0.0
    %1029 = vmatprep.subr.mxu0 0.0
    %1030 = vmatpush1.xpose.msra.mxu0 0.0
    %1031 = vmatprep.subr.mxu0 0.0
    %1032 = vmatpush1.xpose.msra.mxu0 0.0
    %1033 = vmatprep.subr.mxu0 0.0
    %1034 = vmatpush1.xpose.msra.mxu0 0.0
    %1035 = vmatprep.subr.mxu0 0.0
    %1036 = vmatpush1.xpose.msra.mxu0 0.0
    %1037 = vmatprep.subr.mxu0 0.0
    %1038 = vmatpush1.xpose.msra.mxu0 0.0
    %1039 = vmatprep.subr.mxu0 0.0
    %1040 = vmatpush1.xpose.msra.mxu0 0.0
    %1041 = vmatprep.subr.mxu0 0.0
    %1042 = vmatpush1.xpose.msra.mxu0 0.0
    %1043 = vmatprep.subr.mxu0 0.0
    %1044 = vmatpush1.xpose.msra.mxu0 0.0
    %1045 = vmatprep.subr.mxu0 0.0
    %1046 = vmatpush1.xpose.msra.mxu0 0.0
    %1047 = vmatprep.subr.mxu0 0.0
    %1048 = vmatpush1.xpose.msra.mxu0 0.0
    %1049 = vmatprep.subr.mxu0 0.0
    %1050 = vmatpush1.xpose.msra.mxu0 0.0
    %1051 = vmatprep.subr.mxu0 0.0
    %1052 = vmatpush1.xpose.msra.mxu0 0.0
    %1053 = vmatprep.subr.mxu0 0.0
    %1054 = vmatpush1.xpose.msra.mxu0 0.0
    %1055 = vmatprep.subr.mxu0 0.0
    %1056 = vmatpush1.xpose.msra.mxu0 0.0
    %1057 = vmatprep.mubr.f32.mxu0 0.0
    %1058 = vmatmul.mubr.f32.gmra.mrb[0].mxu0 %v988
    %v1059 = vpop.f32.mrb[0].mxu0
    %v1060 = vadd.f32 0.0, %v1059
    %v1061 = vpop.f32.mrb[0].mxu0
    %1062 = vdwg.mxu0
    %v1063 = vsel %vm486, %v984, -inf
    %1064 = vmax.xlane.f32.xlu0 %v1063
    %v1065 = vpop.xlane.xlu0 %1064
    %v1066 = vsel %vm486, %v1060, -inf
    %1067 = vmax.xlane.f32.xlu0 %v1066
    %v1068 = vpop.xlane.xlu0 %1067
    %v1069 = vsub.f32 %v984, %v1065
    %v1070 = vsub.f32 %v1060, %v1068
    %v1071 = vmul.f32 %v1069, 1.442695
    %v1072 = vpow.pop %v1071
    %v1073 = vmul.f32 %v1070, 1.442695
    %v1074 = vpow.pop %v1073
    %v1075 = vsel %vm486, %v1072, 0.0
    %1076 = vadd.xlane.f32.xlu0 %v1075
    %v1077 = vpop.xlane.xlu0 %1076
    %v1078 = vsel %vm486, %v1074, 0.0
    %1079 = vadd.xlane.f32.xlu0 %v1078
    %v1080 = vpop.xlane.xlu0 %1079
    %v1081 = vrcp.pop %v1077
    %v1082 = vrcp.pop %v1080
    %v1083 = vmul.f32 %v1072, %v1081
    %v1084 = vmul.f32 %v1074, %v1082
    %v1086 = vsel %vm486, %v1083, 0
    %1088 = vmatprep.subr.mxu0 0.0
    %1089 = vmatpush1.msra.mxu0 %v901
    %1090 = vmatprep.subr.mxu0 0.0
    %1091 = vmatpush1.msra.mxu0 0.0
    %1092 = vmatprep.subr.mxu0 0.0
    %1093 = vmatpush1.msra.mxu0 0.0
    %1094 = vmatprep.subr.mxu0 0.0
    %1095 = vmatpush1.msra.mxu0 0.0
    %1096 = vmatprep.subr.mxu0 0.0
    %1097 = vmatpush1.msra.mxu0 0.0
    %1098 = vmatprep.subr.mxu0 0.0
    %1099 = vmatpush1.msra.mxu0 0.0
    %1100 = vmatprep.subr.mxu0 0.0
    %1101 = vmatpush1.msra.mxu0 0.0
    %1102 = vmatprep.subr.mxu0 0.0
    %1103 = vmatpush1.msra.mxu0 0.0
    %1104 = vmatprep.subr.mxu0 0.0
    %1105 = vmatpush1.msra.mxu0 0.0
    %1106 = vmatprep.subr.mxu0 0.0
    %1107 = vmatpush1.msra.mxu0 0.0
    %1108 = vmatprep.subr.mxu0 0.0
    %1109 = vmatpush1.msra.mxu0 0.0
    %1110 = vmatprep.subr.mxu0 0.0
    %1111 = vmatpush1.msra.mxu0 0.0
    %1112 = vmatprep.subr.mxu0 0.0
    %1113 = vmatpush1.msra.mxu0 0.0
    %1114 = vmatprep.subr.mxu0 0.0
    %1115 = vmatpush1.msra.mxu0 0.0
    %1116 = vmatprep.subr.mxu0 0.0
    %1117 = vmatpush1.msra.mxu0 0.0
    %1118 = vmatprep.subr.mxu0 0.0
    %1119 = vmatpush1.msra.mxu0 0.0
    %1120 = vmatprep.subr.mxu0 0.0
    %1121 = vmatpush1.msra.mxu0 0.0
    %1122 = vmatprep.subr.mxu0 0.0
    %1123 = vmatpush1.msra.mxu0 0.0
    %1124 = vmatprep.subr.mxu0 0.0
    %1125 = vmatpush1.msra.mxu0 0.0
    %1126 = vmatprep.subr.mxu0 0.0
    %1127 = vmatpush1.msra.mxu0 0.0
    %1128 = vmatprep.subr.mxu0 0.0
    %1129 = vmatpush1.msra.mxu0 0.0
    %1130 = vmatprep.subr.mxu0 0.0
    %1131 = vmatpush1.msra.mxu0 0.0
    %1132 = vmatprep.subr.mxu0 0.0
    %1133 = vmatpush1.msra.mxu0 0.0
    %1134 = vmatprep.subr.mxu0 0.0
    %1135 = vmatpush1.msra.mxu0 0.0
    %1136 = vmatprep.subr.mxu0 0.0
    %1137 = vmatpush1.msra.mxu0 0.0
    %1138 = vmatprep.subr.mxu0 0.0
    %1139 = vmatpush1.msra.mxu0 0.0
    %1140 = vmatprep.subr.mxu0 0.0
    %1141 = vmatpush1.msra.mxu0 0.0
    %1142 = vmatprep.subr.mxu0 0.0
    %1143 = vmatpush1.msra.mxu0 0.0
    %1144 = vmatprep.subr.mxu0 0.0
    %1145 = vmatpush1.msra.mxu0 0.0
    %1146 = vmatprep.subr.mxu0 0.0
    %1147 = vmatpush1.msra.mxu0 0.0
    %1148 = vmatprep.subr.mxu0 0.0
    %1149 = vmatpush1.msra.mxu0 0.0
    %1150 = vmatprep.subr.mxu0 0.0
    %1151 = vmatpush1.msra.mxu0 0.0
    %1152 = vmatprep.mubr.f32.mxu0 0.0
    %1153 = vmatmul.mubr.f32.gmra.mrb[0].mxu0 %v1086
    %v1154 = vpop.f32.mrb[0].mxu0
    %v1155 = vadd.f32 0.0, %v1154
    %v1156 = vpop.f32.mrb[0].mxu0
    %1157 = vdwg.mxu0
    %v1159 = vsel %vm486, %v1084, 0
    %1161 = vmatprep.subr.mxu0 0.0
    %1162 = vmatpush1.msra.mxu0 %v906
    %1163 = vmatprep.subr.mxu0 0.0
    %1164 = vmatpush1.msra.mxu0 0.0
    %1165 = vmatprep.subr.mxu0 0.0
    %1166 = vmatpush1.msra.mxu0 0.0
    %1167 = vmatprep.subr.mxu0 0.0
    %1168 = vmatpush1.msra.mxu0 0.0
    %1169 = vmatprep.subr.mxu0 0.0
    %1170 = vmatpush1.msra.mxu0 0.0
    %1171 = vmatprep.subr.mxu0 0.0
    %1172 = vmatpush1.msra.mxu0 0.0
    %1173 = vmatprep.subr.mxu0 0.0
    %1174 = vmatpush1.msra.mxu0 0.0
    %1175 = vmatprep.subr.mxu0 0.0
    %1176 = vmatpush1.msra.mxu0 0.0
    %1177 = vmatprep.subr.mxu0 0.0
    %1178 = vmatpush1.msra.mxu0 0.0
    %1179 = vmatprep.subr.mxu0 0.0
    %1180 = vmatpush1.msra.mxu0 0.0
    %1181 = vmatprep.subr.mxu0 0.0
    %1182 = vmatpush1.msra.mxu0 0.0
    %1183 = vmatprep.subr.mxu0 0.0
    %1184 = vmatpush1.msra.mxu0 0.0
    %1185 = vmatprep.subr.mxu0 0.0
    %1186 = vmatpush1.msra.mxu0 0.0
    %1187 = vmatprep.subr.mxu0 0.0
    %1188 = vmatpush1.msra.mxu0 0.0
    %1189 = vmatprep.subr.mxu0 0.0
    %1190 = vmatpush1.msra.mxu0 0.0
    %1191 = vmatprep.subr.mxu0 0.0
    %1192 = vmatpush1.msra.mxu0 0.0
    %1193 = vmatprep.subr.mxu0 0.0
    %1194 = vmatpush1.msra.mxu0 0.0
    %1195 = vmatprep.subr.mxu0 0.0
    %1196 = vmatpush1.msra.mxu0 0.0
    %1197 = vmatprep.subr.mxu0 0.0
    %1198 = vmatpush1.msra.mxu0 0.0
    %1199 = vmatprep.subr.mxu0 0.0
    %1200 = vmatpush1.msra.mxu0 0.0
    %1201 = vmatprep.subr.mxu0 0.0
    %1202 = vmatpush1.msra.mxu0 0.0
    %1203 = vmatprep.subr.mxu0 0.0
    %1204 = vmatpush1.msra.mxu0 0.0
    %1205 = vmatprep.subr.mxu0 0.0
    %1206 = vmatpush1.msra.mxu0 0.0
    %1207 = vmatprep.subr.mxu0 0.0
    %1208 = vmatpush1.msra.mxu0 0.0
    %1209 = vmatprep.subr.mxu0 0.0
    %1210 = vmatpush1.msra.mxu0 0.0
    %1211 = vmatprep.subr.mxu0 0.0
    %1212 = vmatpush1.msra.mxu0 0.0
    %1213 = vmatprep.subr.mxu0 0.0
    %1214 = vmatpush1.msra.mxu0 0.0
    %1215 = vmatprep.subr.mxu0 0.0
    %1216 = vmatpush1.msra.mxu0 0.0
    %1217 = vmatprep.subr.mxu0 0.0
    %1218 = vmatpush1.msra.mxu0 0.0
    %1219 = vmatprep.subr.mxu0 0.0
    %1220 = vmatpush1.msra.mxu0 0.0
    %1221 = vmatprep.subr.mxu0 0.0
    %1222 = vmatpush1.msra.mxu0 0.0
    %1223 = vmatprep.subr.mxu0 0.0
    %1224 = vmatpush1.msra.mxu0 0.0
    %1225 = vmatprep.mubr.f32.mxu0 0.0
    %1226 = vmatmul.mubr.f32.gmra.mrb[0].mxu0 %v1159
    %v1227 = vpop.f32.mrb[0].mxu0
    %v1228 = vadd.f32 0.0, %v1227
    %v1229 = vpop.f32.mrb[0].mxu0
    %1230 = vdwg.mxu0
    %1233 = vrot.lane.b32.xlu0 %v1155, 16
    %v1234 = vpop.permute.xlu0 %1233
    %1235 = vrot.lane.b32.xlu0 %v1228, 16
    %v1236 = vpop.permute.xlu0 %1235
    %vm1239 = vcmask 261248
    %1240 = vst.msk [vmem:[#allocation10] sm:$0xff] %vm1239, %v1234
    %1241 = vst.msk [vmem:[#allocation10 + $0x8] sm:$0xff] %vm1239, %v1236
    %s1242 = scalar_lea.vmem [#allocation5], 32
    %v1243 = vld [vmem:[%s1242] sm:$0xff]
    %v1244 = vld [vmem:[%s1242 + $0x8] sm:$0xff]
    %v1246 = vsel %vm77, %v1243, 0
    %v1249 = vsel %vm77, %v1244, 0
    %1251 = vmatprep.subr.mxu0 0.0
    %1252 = vmatpush1.xpose.msra.mxu0 %v1246
    %1253 = vmatprep.subr.mxu0 0.0
    %1254 = vmatpush1.xpose.msra.mxu0 %v1249
    %1255 = vmatprep.subr.mxu0 0.0
    %1256 = vmatpush1.xpose.msra.mxu0 0.0
    %1257 = vmatprep.subr.mxu0 0.0
    %1258 = vmatpush1.xpose.msra.mxu0 0.0
    %1259 = vmatprep.subr.mxu0 0.0
    %1260 = vmatpush1.xpose.msra.mxu0 0.0
    %1261 = vmatprep.subr.mxu0 0.0
    %1262 = vmatpush1.xpose.msra.mxu0 0.0
    %1263 = vmatprep.subr.mxu0 0.0
    %1264 = vmatpush1.xpose.msra.mxu0 0.0
    %1265 = vmatprep.subr.mxu0 0.0
    %1266 = vmatpush1.xpose.msra.mxu0 0.0
    %1267 = vmatprep.subr.mxu0 0.0
    %1268 = vmatpush1.xpose.msra.mxu0 0.0
    %1269 = vmatprep.subr.mxu0 0.0
    %1270 = vmatpush1.xpose.msra.mxu0 0.0
    %1271 = vmatprep.subr.mxu0 0.0
    %1272 = vmatpush1.xpose.msra.mxu0 0.0
    %1273 = vmatprep.subr.mxu0 0.0
    %1274 = vmatpush1.xpose.msra.mxu0 0.0
    %1275 = vmatprep.subr.mxu0 0.0
    %1276 = vmatpush1.xpose.msra.mxu0 0.0
    %1277 = vmatprep.subr.mxu0 0.0
    %1278 = vmatpush1.xpose.msra.mxu0 0.0
    %1279 = vmatprep.subr.mxu0 0.0
    %1280 = vmatpush1.xpose.msra.mxu0 0.0
    %1281 = vmatprep.subr.mxu0 0.0
    %1282 = vmatpush1.xpose.msra.mxu0 0.0
    %1283 = vmatprep.subr.mxu0 0.0
    %1284 = vmatpush1.xpose.msra.mxu0 0.0
    %1285 = vmatprep.subr.mxu0 0.0
    %1286 = vmatpush1.xpose.msra.mxu0 0.0
    %1287 = vmatprep.subr.mxu0 0.0
    %1288 = vmatpush1.xpose.msra.mxu0 0.0
    %1289 = vmatprep.subr.mxu0 0.0
    %1290 = vmatpush1.xpose.msra.mxu0 0.0
    %1291 = vmatprep.subr.mxu0 0.0
    %1292 = vmatpush1.xpose.msra.mxu0 0.0
    %1293 = vmatprep.subr.mxu0 0.0
    %1294 = vmatpush1.xpose.msra.mxu0 0.0
    %1295 = vmatprep.subr.mxu0 0.0
    %1296 = vmatpush1.xpose.msra.mxu0 0.0
    %1297 = vmatprep.subr.mxu0 0.0
    %1298 = vmatpush1.xpose.msra.mxu0 0.0
    %1299 = vmatprep.subr.mxu0 0.0
    %1300 = vmatpush1.xpose.msra.mxu0 0.0
    %1301 = vmatprep.subr.mxu0 0.0
    %1302 = vmatpush1.xpose.msra.mxu0 0.0
    %1303 = vmatprep.subr.mxu0 0.0
    %1304 = vmatpush1.xpose.msra.mxu0 0.0
    %1305 = vmatprep.subr.mxu0 0.0
    %1306 = vmatpush1.xpose.msra.mxu0 0.0
    %1307 = vmatprep.subr.mxu0 0.0
    %1308 = vmatpush1.xpose.msra.mxu0 0.0
    %1309 = vmatprep.subr.mxu0 0.0
    %1310 = vmatpush1.xpose.msra.mxu0 0.0
    %1311 = vmatprep.subr.mxu0 0.0
    %1312 = vmatpush1.xpose.msra.mxu0 0.0
    %1313 = vmatprep.subr.mxu0 0.0
    %1314 = vmatpush1.xpose.msra.mxu0 0.0
    %1315 = vmatprep.mubr.f32.mxu0 0.0
    %1316 = vmatmul.mubr.f32.gmra.mrb[0].mxu0 %v79
    %v1317 = vpop.f32.mrb[0].mxu0
    %v1318 = vadd.f32 0.0, %v1317
    %v1319 = vpop.f32.mrb[0].mxu0
    %1320 = vmatprep.mubr.f32.mxu0 0.0
    %1321 = vmatmul.mubr.f32.gmra.mrb[0].mxu0 %v82
    %v1322 = vpop.f32.mrb[0].mxu0
    %v1323 = vadd.f32 0.0, %v1322
    %v1324 = vpop.f32.mrb[0].mxu0
    %1325 = vdwg.mxu0
    %s1326 = scalar_lea.vmem [#allocation7], 32
    %v1327 = vld [vmem:[%s1326] sm:$0xff]
    %v1328 = vld [vmem:[%s1326 + $0x8] sm:$0xff]
    %v1330 = vsel %vm77, %v1327, 0
    %v1333 = vsel %vm77, %v1328, 0
    %1335 = vmatprep.subr.mxu0 0.0
    %1336 = vmatpush1.xpose.msra.mxu0 %v1330
    %1337 = vmatprep.subr.mxu0 0.0
    %1338 = vmatpush1.xpose.msra.mxu0 %v1333
    %1339 = vmatprep.subr.mxu0 0.0
    %1340 = vmatpush1.xpose.msra.mxu0 0.0
    %1341 = vmatprep.subr.mxu0 0.0
    %1342 = vmatpush1.xpose.msra.mxu0 0.0
    %1343 = vmatprep.subr.mxu0 0.0
    %1344 = vmatpush1.xpose.msra.mxu0 0.0
    %1345 = vmatprep.subr.mxu0 0.0
    %1346 = vmatpush1.xpose.msra.mxu0 0.0
    %1347 = vmatprep.subr.mxu0 0.0
    %1348 = vmatpush1.xpose.msra.mxu0 0.0
    %1349 = vmatprep.subr.mxu0 0.0
    %1350 = vmatpush1.xpose.msra.mxu0 0.0
    %1351 = vmatprep.subr.mxu0 0.0
    %1352 = vmatpush1.xpose.msra.mxu0 0.0
    %1353 = vmatprep.subr.mxu0 0.0
    %1354 = vmatpush1.xpose.msra.mxu0 0.0
    %1355 = vmatprep.subr.mxu0 0.0
    %1356 = vmatpush1.xpose.msra.mxu0 0.0
    %1357 = vmatprep.subr.mxu0 0.0
    %1358 = vmatpush1.xpose.msra.mxu0 0.0
    %1359 = vmatprep.subr.mxu0 0.0
    %1360 = vmatpush1.xpose.msra.mxu0 0.0
    %1361 = vmatprep.subr.mxu0 0.0
    %1362 = vmatpush1.xpose.msra.mxu0 0.0
    %1363 = vmatprep.subr.mxu0 0.0
    %1364 = vmatpush1.xpose.msra.mxu0 0.0
    %1365 = vmatprep.subr.mxu0 0.0
    %1366 = vmatpush1.xpose.msra.mxu0 0.0
    %1367 = vmatprep.subr.mxu0 0.0
    %1368 = vmatpush1.xpose.msra.mxu0 0.0
    %1369 = vmatprep.subr.mxu0 0.0
    %1370 = vmatpush1.xpose.msra.mxu0 0.0
    %1371 = vmatprep.subr.mxu0 0.0
    %1372 = vmatpush1.xpose.msra.mxu0 0.0
    %1373 = vmatprep.subr.mxu0 0.0
    %1374 = vmatpush1.xpose.msra.mxu0 0.0
    %1375 = vmatprep.subr.mxu0 0.0
    %1376 = vmatpush1.xpose.msra.mxu0 0.0
    %1377 = vmatprep.subr.mxu0 0.0
    %1378 = vmatpush1.xpose.msra.mxu0 0.0
    %1379 = vmatprep.subr.mxu0 0.0
    %1380 = vmatpush1.xpose.msra.mxu0 0.0
    %1381 = vmatprep.subr.mxu0 0.0
    %1382 = vmatpush1.xpose.msra.mxu0 0.0
    %1383 = vmatprep.subr.mxu0 0.0
    %1384 = vmatpush1.xpose.msra.mxu0 0.0
    %1385 = vmatprep.subr.mxu0 0.0
    %1386 = vmatpush1.xpose.msra.mxu0 0.0
    %1387 = vmatprep.subr.mxu0 0.0
    %1388 = vmatpush1.xpose.msra.mxu0 0.0
    %1389 = vmatprep.subr.mxu0 0.0
    %1390 = vmatpush1.xpose.msra.mxu0 0.0
    %1391 = vmatprep.subr.mxu0 0.0
    %1392 = vmatpush1.xpose.msra.mxu0 0.0
    %1393 = vmatprep.subr.mxu0 0.0
    %1394 = vmatpush1.xpose.msra.mxu0 0.0
    %1395 = vmatprep.subr.mxu0 0.0
    %1396 = vmatpush1.xpose.msra.mxu0 0.0
    %1397 = vmatprep.subr.mxu0 0.0
    %1398 = vmatpush1.xpose.msra.mxu0 0.0
    %1399 = vmatprep.mubr.f32.mxu0 0.0
    %1400 = vmatmul.mubr.f32.gmra.mrb[0].mxu0 %v79
    %v1401 = vpop.f32.mrb[0].mxu0
    %v1402 = vadd.f32 0.0, %v1401
    %v1403 = vpop.f32.mrb[0].mxu0
    %1404 = vmatprep.mubr.f32.mxu0 0.0
    %1405 = vmatmul.mubr.f32.gmra.mrb[0].mxu0 %v82
    %v1406 = vpop.f32.mrb[0].mxu0
    %v1407 = vadd.f32 0.0, %v1406
    %v1408 = vpop.f32.mrb[0].mxu0
    %1409 = vdwg.mxu0
    %s1410 = scalar_lea.vmem [#allocation8], 32
    %v1411 = vld [vmem:[%s1410] sm:$0xff]
    %v1412 = vld [vmem:[%s1410 + $0x8] sm:$0xff]
    %v1414 = vsel %vm77, %v1411, 0
    %v1417 = vsel %vm77, %v1412, 0
    %1419 = vmatprep.subr.mxu0 0.0
    %1420 = vmatpush1.xpose.msra.mxu0 %v1414
    %1421 = vmatprep.subr.mxu0 0.0
    %1422 = vmatpush1.xpose.msra.mxu0 %v1417
    %1423 = vmatprep.subr.mxu0 0.0
    %1424 = vmatpush1.xpose.msra.mxu0 0.0
    %1425 = vmatprep.subr.mxu0 0.0
    %1426 = vmatpush1.xpose.msra.mxu0 0.0
    %1427 = vmatprep.subr.mxu0 0.0
    %1428 = vmatpush1.xpose.msra.mxu0 0.0
    %1429 = vmatprep.subr.mxu0 0.0
    %1430 = vmatpush1.xpose.msra.mxu0 0.0
    %1431 = vmatprep.subr.mxu0 0.0
    %1432 = vmatpush1.xpose.msra.mxu0 0.0
    %1433 = vmatprep.subr.mxu0 0.0
    %1434 = vmatpush1.xpose.msra.mxu0 0.0
    %1435 = vmatprep.subr.mxu0 0.0
    %1436 = vmatpush1.xpose.msra.mxu0 0.0
    %1437 = vmatprep.subr.mxu0 0.0
    %1438 = vmatpush1.xpose.msra.mxu0 0.0
    %1439 = vmatprep.subr.mxu0 0.0
    %1440 = vmatpush1.xpose.msra.mxu0 0.0
    %1441 = vmatprep.subr.mxu0 0.0
    %1442 = vmatpush1.xpose.msra.mxu0 0.0
    %1443 = vmatprep.subr.mxu0 0.0
    %1444 = vmatpush1.xpose.msra.mxu0 0.0
    %1445 = vmatprep.subr.mxu0 0.0
    %1446 = vmatpush1.xpose.msra.mxu0 0.0
    %1447 = vmatprep.subr.mxu0 0.0
    %1448 = vmatpush1.xpose.msra.mxu0 0.0
    %1449 = vmatprep.subr.mxu0 0.0
    %1450 = vmatpush1.xpose.msra.mxu0 0.0
    %1451 = vmatprep.subr.mxu0 0.0
    %1452 = vmatpush1.xpose.msra.mxu0 0.0
    %1453 = vmatprep.subr.mxu0 0.0
    %1454 = vmatpush1.xpose.msra.mxu0 0.0
    %1455 = vmatprep.subr.mxu0 0.0
    %1456 = vmatpush1.xpose.msra.mxu0 0.0
    %1457 = vmatprep.subr.mxu0 0.0
    %1458 = vmatpush1.xpose.msra.mxu0 0.0
    %1459 = vmatprep.subr.mxu0 0.0
    %1460 = vmatpush1.xpose.msra.mxu0 0.0
    %1461 = vmatprep.subr.mxu0 0.0
    %1462 = vmatpush1.xpose.msra.mxu0 0.0
    %1463 = vmatprep.subr.mxu0 0.0
    %1464 = vmatpush1.xpose.msra.mxu0 0.0
    %1465 = vmatprep.subr.mxu0 0.0
    %1466 = vmatpush1.xpose.msra.mxu0 0.0
    %1467 = vmatprep.subr.mxu0 0.0
    %1468 = vmatpush1.xpose.msra.mxu0 0.0
    %1469 = vmatprep.subr.mxu0 0.0
    %1470 = vmatpush1.xpose.msra.mxu0 0.0
    %1471 = vmatprep.subr.mxu0 0.0
    %1472 = vmatpush1.xpose.msra.mxu0 0.0
    %1473 = vmatprep.subr.mxu0 0.0
    %1474 = vmatpush1.xpose.msra.mxu0 0.0
    %1475 = vmatprep.subr.mxu0 0.0
    %1476 = vmatpush1.xpose.msra.mxu0 0.0
    %1477 = vmatprep.subr.mxu0 0.0
    %1478 = vmatpush1.xpose.msra.mxu0 0.0
    %1479 = vmatprep.subr.mxu0 0.0
    %1480 = vmatpush1.xpose.msra.mxu0 0.0
    %1481 = vmatprep.subr.mxu0 0.0
    %1482 = vmatpush1.xpose.msra.mxu0 0.0
    %1483 = vmatprep.mubr.f32.mxu0 0.0
    %1484 = vmatmul.mubr.f32.gmra.mrb[0].mxu0 %v79
    %v1485 = vpop.f32.mrb[0].mxu0
    %v1486 = vadd.f32 0.0, %v1485
    %v1487 = vpop.f32.mrb[0].mxu0
    %1488 = vmatprep.mubr.f32.mxu0 0.0
    %1489 = vmatmul.mubr.f32.gmra.mrb[0].mxu0 %v82
    %v1490 = vpop.f32.mrb[0].mxu0
    %v1491 = vadd.f32 0.0, %v1490
    %v1492 = vpop.f32.mrb[0].mxu0
    %1493 = vdwg.mxu0
    %v1494 = vmul.f32 %v1318, 0.25
    %v1495 = vmul.f32 %v1323, 0.25
    %v1497 = vsel %vm333, %v1494, 0
    %v1500 = vsel %vm333, %v1402, 0
    %1502 = vmatprep.subr.mxu0 0.0
    %1503 = vmatpush1.xpose.msra.mxu0 %v1500
    %1504 = vmatprep.subr.mxu0 0.0
    %1505 = vmatpush1.xpose.msra.mxu0 0.0
    %1506 = vmatprep.subr.mxu0 0.0
    %1507 = vmatpush1.xpose.msra.mxu0 0.0
    %1508 = vmatprep.subr.mxu0 0.0
    %1509 = vmatpush1.xpose.msra.mxu0 0.0
    %1510 = vmatprep.subr.mxu0 0.0
    %1511 = vmatpush1.xpose.msra.mxu0 0.0
    %1512 = vmatprep.subr.mxu0 0.0
    %1513 = vmatpush1.xpose.msra.mxu0 0.0
    %1514 = vmatprep.subr.mxu0 0.0
    %1515 = vmatpush1.xpose.msra.mxu0 0.0
    %1516 = vmatprep.subr.mxu0 0.0
    %1517 = vmatpush1.xpose.msra.mxu0 0.0
    %1518 = vmatprep.subr.mxu0 0.0
    %1519 = vmatpush1.xpose.msra.mxu0 0.0
    %1520 = vmatprep.subr.mxu0 0.0
    %1521 = vmatpush1.xpose.msra.mxu0 0.0
    %1522 = vmatprep.subr.mxu0 0.0
    %1523 = vmatpush1.xpose.msra.mxu0 0.0
    %1524 = vmatprep.subr.mxu0 0.0
    %1525 = vmatpush1.xpose.msra.mxu0 0.0
    %1526 = vmatprep.subr.mxu0 0.0
    %1527 = vmatpush1.xpose.msra.mxu0 0.0
    %1528 = vmatprep.subr.mxu0 0.0
    %1529 = vmatpush1.xpose.msra.mxu0 0.0
    %1530 = vmatprep.subr.mxu0 0.0
    %1531 = vmatpush1.xpose.msra.mxu0 0.0
    %1532 = vmatprep.subr.mxu0 0.0
    %1533 = vmatpush1.xpose.msra.mxu0 0.0
    %1534 = vmatprep.subr.mxu0 0.0
    %1535 = vmatpush1.xpose.msra.mxu0 0.0
    %1536 = vmatprep.subr.mxu0 0.0
    %1537 = vmatpush1.xpose.msra.mxu0 0.0
    %1538 = vmatprep.subr.mxu0 0.0
    %1539 = vmatpush1.xpose.msra.mxu0 0.0
    %1540 = vmatprep.subr.mxu0 0.0
    %1541 = vmatpush1.xpose.msra.mxu0 0.0
    %1542 = vmatprep.subr.mxu0 0.0
    %1543 = vmatpush1.xpose.msra.mxu0 0.0
    %1544 = vmatprep.subr.mxu0 0.0
    %1545 = vmatpush1.xpose.msra.mxu0 0.0
    %1546 = vmatprep.subr.mxu0 0.0
    %1547 = vmatpush1.xpose.msra.mxu0 0.0
    %1548 = vmatprep.subr.mxu0 0.0
    %1549 = vmatpush1.xpose.msra.mxu0 0.0
    %1550 = vmatprep.subr.mxu0 0.0
    %1551 = vmatpush1.xpose.msra.mxu0 0.0
    %1552 = vmatprep.subr.mxu0 0.0
    %1553 = vmatpush1.xpose.msra.mxu0 0.0
    %1554 = vmatprep.subr.mxu0 0.0
    %1555 = vmatpush1.xpose.msra.mxu0 0.0
    %1556 = vmatprep.subr.mxu0 0.0
    %1557 = vmatpush1.xpose.msra.mxu0 0.0
    %1558 = vmatprep.subr.mxu0 0.0
    %1559 = vmatpush1.xpose.msra.mxu0 0.0
    %1560 = vmatprep.subr.mxu0 0.0
    %1561 = vmatpush1.xpose.msra.mxu0 0.0
    %1562 = vmatprep.subr.mxu0 0.0
    %1563 = vmatpush1.xpose.msra.mxu0 0.0
    %1564 = vmatprep.subr.mxu0 0.0
    %1565 = vmatpush1.xpose.msra.mxu0 0.0
    %1566 = vmatprep.mubr.f32.mxu0 0.0
    %1567 = vmatmul.mubr.f32.gmra.mrb[0].mxu0 %v1497
    %v1568 = vpop.f32.mrb[0].mxu0
    %v1569 = vadd.f32 0.0, %v1568
    %v1570 = vpop.f32.mrb[0].mxu0
    %1571 = vdwg.mxu0
    %v1573 = vsel %vm333, %v1495, 0
    %v1576 = vsel %vm333, %v1407, 0
    %1578 = vmatprep.subr.mxu0 0.0
    %1579 = vmatpush1.xpose.msra.mxu0 %v1576
    %1580 = vmatprep.subr.mxu0 0.0
    %1581 = vmatpush1.xpose.msra.mxu0 0.0
    %1582 = vmatprep.subr.mxu0 0.0
    %1583 = vmatpush1.xpose.msra.mxu0 0.0
    %1584 = vmatprep.subr.mxu0 0.0
    %1585 = vmatpush1.xpose.msra.mxu0 0.0
    %1586 = vmatprep.subr.mxu0 0.0
    %1587 = vmatpush1.xpose.msra.mxu0 0.0
    %1588 = vmatprep.subr.mxu0 0.0
    %1589 = vmatpush1.xpose.msra.mxu0 0.0
    %1590 = vmatprep.subr.mxu0 0.0
    %1591 = vmatpush1.xpose.msra.mxu0 0.0
    %1592 = vmatprep.subr.mxu0 0.0
    %1593 = vmatpush1.xpose.msra.mxu0 0.0
    %1594 = vmatprep.subr.mxu0 0.0
    %1595 = vmatpush1.xpose.msra.mxu0 0.0
    %1596 = vmatprep.subr.mxu0 0.0
    %1597 = vmatpush1.xpose.msra.mxu0 0.0
    %1598 = vmatprep.subr.mxu0 0.0
    %1599 = vmatpush1.xpose.msra.mxu0 0.0
    %1600 = vmatprep.subr.mxu0 0.0
    %1601 = vmatpush1.xpose.msra.mxu0 0.0
    %1602 = vmatprep.subr.mxu0 0.0
    %1603 = vmatpush1.xpose.msra.mxu0 0.0
    %1604 = vmatprep.subr.mxu0 0.0
    %1605 = vmatpush1.xpose.msra.mxu0 0.0
    %1606 = vmatprep.subr.mxu0 0.0
    %1607 = vmatpush1.xpose.msra.mxu0 0.0
    %1608 = vmatprep.subr.mxu0 0.0
    %1609 = vmatpush1.xpose.msra.mxu0 0.0
    %1610 = vmatprep.subr.mxu0 0.0
    %1611 = vmatpush1.xpose.msra.mxu0 0.0
    %1612 = vmatprep.subr.mxu0 0.0
    %1613 = vmatpush1.xpose.msra.mxu0 0.0
    %1614 = vmatprep.subr.mxu0 0.0
    %1615 = vmatpush1.xpose.msra.mxu0 0.0
    %1616 = vmatprep.subr.mxu0 0.0
    %1617 = vmatpush1.xpose.msra.mxu0 0.0
    %1618 = vmatprep.subr.mxu0 0.0
    %1619 = vmatpush1.xpose.msra.mxu0 0.0
    %1620 = vmatprep.subr.mxu0 0.0
    %1621 = vmatpush1.xpose.msra.mxu0 0.0
    %1622 = vmatprep.subr.mxu0 0.0
    %1623 = vmatpush1.xpose.msra.mxu0 0.0
    %1624 = vmatprep.subr.mxu0 0.0
    %1625 = vmatpush1.xpose.msra.mxu0 0.0
    %1626 = vmatprep.subr.mxu0 0.0
    %1627 = vmatpush1.xpose.msra.mxu0 0.0
    %1628 = vmatprep.subr.mxu0 0.0
    %1629 = vmatpush1.xpose.msra.mxu0 0.0
    %1630 = vmatprep.subr.mxu0 0.0
    %1631 = vmatpush1.xpose.msra.mxu0 0.0
    %1632 = vmatprep.subr.mxu0 0.0
    %1633 = vmatpush1.xpose.msra.mxu0 0.0
    %1634 = vmatprep.subr.mxu0 0.0
    %1635 = vmatpush1.xpose.msra.mxu0 0.0
    %1636 = vmatprep.subr.mxu0 0.0
    %1637 = vmatpush1.xpose.msra.mxu0 0.0
    %1638 = vmatprep.subr.mxu0 0.0
    %1639 = vmatpush1.xpose.msra.mxu0 0.0
    %1640 = vmatprep.subr.mxu0 0.0
    %1641 = vmatpush1.xpose.msra.mxu0 0.0
    %1642 = vmatprep.mubr.f32.mxu0 0.0
    %1643 = vmatmul.mubr.f32.gmra.mrb[0].mxu0 %v1573
    %v1644 = vpop.f32.mrb[0].mxu0
    %v1645 = vadd.f32 0.0, %v1644
    %v1646 = vpop.f32.mrb[0].mxu0
    %1647 = vdwg.mxu0
    %v1648 = vsel %vm486, %v1569, -inf
    %1649 = vmax.xlane.f32.xlu0 %v1648
    %v1650 = vpop.xlane.xlu0 %1649
    %v1651 = vsel %vm486, %v1645, -inf
    %1652 = vmax.xlane.f32.xlu0 %v1651
    %v1653 = vpop.xlane.xlu0 %1652
    %v1654 = vsub.f32 %v1569, %v1650
    %v1655 = vsub.f32 %v1645, %v1653
    %v1656 = vmul.f32 %v1654, 1.442695
    %v1657 = vpow.pop %v1656
    %v1658 = vmul.f32 %v1655, 1.442695
    %v1659 = vpow.pop %v1658
    %v1660 = vsel %vm486, %v1657, 0.0
    %1661 = vadd.xlane.f32.xlu0 %v1660
    %v1662 = vpop.xlane.xlu0 %1661
    %v1663 = vsel %vm486, %v1659, 0.0
    %1664 = vadd.xlane.f32.xlu0 %v1663
    %v1665 = vpop.xlane.xlu0 %1664
    %v1666 = vrcp.pop %v1662
    %v1667 = vrcp.pop %v1665
    %v1668 = vmul.f32 %v1657, %v1666
    %v1669 = vmul.f32 %v1659, %v1667
    %v1671 = vsel %vm486, %v1668, 0
    %1673 = vmatprep.subr.mxu0 0.0
    %1674 = vmatpush1.msra.mxu0 %v1486
    %1675 = vmatprep.subr.mxu0 0.0
    %1676 = vmatpush1.msra.mxu0 0.0
    %1677 = vmatprep.subr.mxu0 0.0
    %1678 = vmatpush1.msra.mxu0 0.0
    %1679 = vmatprep.subr.mxu0 0.0
    %1680 = vmatpush1.msra.mxu0 0.0
    %1681 = vmatprep.subr.mxu0 0.0
    %1682 = vmatpush1.msra.mxu0 0.0
    %1683 = vmatprep.subr.mxu0 0.0
    %1684 = vmatpush1.msra.mxu0 0.0
    %1685 = vmatprep.subr.mxu0 0.0
    %1686 = vmatpush1.msra.mxu0 0.0
    %1687 = vmatprep.subr.mxu0 0.0
    %1688 = vmatpush1.msra.mxu0 0.0
    %1689 = vmatprep.subr.mxu0 0.0
    %1690 = vmatpush1.msra.mxu0 0.0
    %1691 = vmatprep.subr.mxu0 0.0
    %1692 = vmatpush1.msra.mxu0 0.0
    %1693 = vmatprep.subr.mxu0 0.0
    %1694 = vmatpush1.msra.mxu0 0.0
    %1695 = vmatprep.subr.mxu0 0.0
    %1696 = vmatpush1.msra.mxu0 0.0
    %1697 = vmatprep.subr.mxu0 0.0
    %1698 = vmatpush1.msra.mxu0 0.0
    %1699 = vmatprep.subr.mxu0 0.0
    %1700 = vmatpush1.msra.mxu0 0.0
    %1701 = vmatprep.subr.mxu0 0.0
    %1702 = vmatpush1.msra.mxu0 0.0
    %1703 = vmatprep.subr.mxu0 0.0
    %1704 = vmatpush1.msra.mxu0 0.0
    %1705 = vmatprep.subr.mxu0 0.0
    %1706 = vmatpush1.msra.mxu0 0.0
    %1707 = vmatprep.subr.mxu0 0.0
    %1708 = vmatpush1.msra.mxu0 0.0
    %1709 = vmatprep.subr.mxu0 0.0
    %1710 = vmatpush1.msra.mxu0 0.0
    %1711 = vmatprep.subr.mxu0 0.0
    %1712 = vmatpush1.msra.mxu0 0.0
    %1713 = vmatprep.subr.mxu0 0.0
    %1714 = vmatpush1.msra.mxu0 0.0
    %1715 = vmatprep.subr.mxu0 0.0
    %1716 = vmatpush1.msra.mxu0 0.0
    %1717 = vmatprep.subr.mxu0 0.0
    %1718 = vmatpush1.msra.mxu0 0.0
    %1719 = vmatprep.subr.mxu0 0.0
    %1720 = vmatpush1.msra.mxu0 0.0
    %1721 = vmatprep.subr.mxu0 0.0
    %1722 = vmatpush1.msra.mxu0 0.0
    %1723 = vmatprep.subr.mxu0 0.0
    %1724 = vmatpush1.msra.mxu0 0.0
    %1725 = vmatprep.subr.mxu0 0.0
    %1726 = vmatpush1.msra.mxu0 0.0
    %1727 = vmatprep.subr.mxu0 0.0
    %1728 = vmatpush1.msra.mxu0 0.0
    %1729 = vmatprep.subr.mxu0 0.0
    %1730 = vmatpush1.msra.mxu0 0.0
    %1731 = vmatprep.subr.mxu0 0.0
    %1732 = vmatpush1.msra.mxu0 0.0
    %1733 = vmatprep.subr.mxu0 0.0
    %1734 = vmatpush1.msra.mxu0 0.0
    %1735 = vmatprep.subr.mxu0 0.0
    %1736 = vmatpush1.msra.mxu0 0.0
    %1737 = vmatprep.mubr.f32.mxu0 0.0
    %1738 = vmatmul.mubr.f32.gmra.mrb[0].mxu0 %v1671
    %v1739 = vpop.f32.mrb[0].mxu0
    %v1740 = vadd.f32 0.0, %v1739
    %v1741 = vpop.f32.mrb[0].mxu0
    %1742 = vdwg.mxu0
    %v1744 = vsel %vm486, %v1669, 0
    %1746 = vmatprep.subr.mxu0 0.0
    %1747 = vmatpush1.msra.mxu0 %v1491
    %1748 = vmatprep.subr.mxu0 0.0
    %1749 = vmatpush1.msra.mxu0 0.0
    %1750 = vmatprep.subr.mxu0 0.0
    %1751 = vmatpush1.msra.mxu0 0.0
    %1752 = vmatprep.subr.mxu0 0.0
    %1753 = vmatpush1.msra.mxu0 0.0
    %1754 = vmatprep.subr.mxu0 0.0
    %1755 = vmatpush1.msra.mxu0 0.0
    %1756 = vmatprep.subr.mxu0 0.0
    %1757 = vmatpush1.msra.mxu0 0.0
    %1758 = vmatprep.subr.mxu0 0.0
    %1759 = vmatpush1.msra.mxu0 0.0
    %1760 = vmatprep.subr.mxu0 0.0
    %1761 = vmatpush1.msra.mxu0 0.0
    %1762 = vmatprep.subr.mxu0 0.0
    %1763 = vmatpush1.msra.mxu0 0.0
    %1764 = vmatprep.subr.mxu0 0.0
    %1765 = vmatpush1.msra.mxu0 0.0
    %1766 = vmatprep.subr.mxu0 0.0
    %1767 = vmatpush1.msra.mxu0 0.0
    %1768 = vmatprep.subr.mxu0 0.0
    %1769 = vmatpush1.msra.mxu0 0.0
    %1770 = vmatprep.subr.mxu0 0.0
    %1771 = vmatpush1.msra.mxu0 0.0
    %1772 = vmatprep.subr.mxu0 0.0
    %1773 = vmatpush1.msra.mxu0 0.0
    %1774 = vmatprep.subr.mxu0 0.0
    %1775 = vmatpush1.msra.mxu0 0.0
    %1776 = vmatprep.subr.mxu0 0.0
    %1777 = vmatpush1.msra.mxu0 0.0
    %1778 = vmatprep.subr.mxu0 0.0
    %1779 = vmatpush1.msra.mxu0 0.0
    %1780 = vmatprep.subr.mxu0 0.0
    %1781 = vmatpush1.msra.mxu0 0.0
    %1782 = vmatprep.subr.mxu0 0.0
    %1783 = vmatpush1.msra.mxu0 0.0
    %1784 = vmatprep.subr.mxu0 0.0
    %1785 = vmatpush1.msra.mxu0 0.0
    %1786 = vmatprep.subr.mxu0 0.0
    %1787 = vmatpush1.msra.mxu0 0.0
    %1788 = vmatprep.subr.mxu0 0.0
    %1789 = vmatpush1.msra.mxu0 0.0
    %1790 = vmatprep.subr.mxu0 0.0
    %1791 = vmatpush1.msra.mxu0 0.0
    %1792 = vmatprep.subr.mxu0 0.0
    %1793 = vmatpush1.msra.mxu0 0.0
    %1794 = vmatprep.subr.mxu0 0.0
    %1795 = vmatpush1.msra.mxu0 0.0
    %1796 = vmatprep.subr.mxu0 0.0
    %1797 = vmatpush1.msra.mxu0 0.0
    %1798 = vmatprep.subr.mxu0 0.0
    %1799 = vmatpush1.msra.mxu0 0.0
    %1800 = vmatprep.subr.mxu0 0.0
    %1801 = vmatpush1.msra.mxu0 0.0
    %1802 = vmatprep.subr.mxu0 0.0
    %1803 = vmatpush1.msra.mxu0 0.0
    %1804 = vmatprep.subr.mxu0 0.0
    %1805 = vmatpush1.msra.mxu0 0.0
    %1806 = vmatprep.subr.mxu0 0.0
    %1807 = vmatpush1.msra.mxu0 0.0
    %1808 = vmatprep.subr.mxu0 0.0
    %1809 = vmatpush1.msra.mxu0 0.0
    %1810 = vmatprep.mubr.f32.mxu0 0.0
    %1811 = vmatmul.mubr.f32.gmra.mrb[0].mxu0 %v1744
    %v1812 = vpop.f32.mrb[0].mxu0
    %v1813 = vadd.f32 0.0, %v1812
    %v1814 = vpop.f32.mrb[0].mxu0
    %1815 = vdwg.mxu0
    %1818 = vrot.lane.b32.xlu0 %v1740, 32
    %v1819 = vpop.permute.xlu0 %1818
    %1820 = vrot.lane.b32.xlu0 %v1813, 32
    %v1821 = vpop.permute.xlu0 %1820
    %vm1824 = vcmask 392448
    %1825 = vst.msk [vmem:[#allocation10] sm:$0xff] %vm1824, %v1819
    %1826 = vst.msk [vmem:[#allocation10 + $0x8] sm:$0xff] %vm1824, %v1821
    %s1827 = scalar_lea.vmem [#allocation5], 48
    %v1828 = vld [vmem:[%s1827] sm:$0xff]
    %v1829 = vld [vmem:[%s1827 + $0x8] sm:$0xff]
    %v1831 = vsel %vm77, %v1828, 0
    %v1834 = vsel %vm77, %v1829, 0
    %1836 = vmatprep.subr.mxu0 0.0
    %1837 = vmatpush1.xpose.msra.mxu0 %v1831
    %1838 = vmatprep.subr.mxu0 0.0
    %1839 = vmatpush1.xpose.msra.mxu0 %v1834
    %1840 = vmatprep.subr.mxu0 0.0
    %1841 = vmatpush1.xpose.msra.mxu0 0.0
    %1842 = vmatprep.subr.mxu0 0.0
    %1843 = vmatpush1.xpose.msra.mxu0 0.0
    %1844 = vmatprep.subr.mxu0 0.0
    %1845 = vmatpush1.xpose.msra.mxu0 0.0
    %1846 = vmatprep.subr.mxu0 0.0
    %1847 = vmatpush1.xpose.msra.mxu0 0.0
    %1848 = vmatprep.subr.mxu0 0.0
    %1849 = vmatpush1.xpose.msra.mxu0 0.0
    %1850 = vmatprep.subr.mxu0 0.0
    %1851 = vmatpush1.xpose.msra.mxu0 0.0
    %1852 = vmatprep.subr.mxu0 0.0
    %1853 = vmatpush1.xpose.msra.mxu0 0.0
    %1854 = vmatprep.subr.mxu0 0.0
    %1855 = vmatpush1.xpose.msra.mxu0 0.0
    %1856 = vmatprep.subr.mxu0 0.0
    %1857 = vmatpush1.xpose.msra.mxu0 0.0
    %1858 = vmatprep.subr.mxu0 0.0
    %1859 = vmatpush1.xpose.msra.mxu0 0.0
    %1860 = vmatprep.subr.mxu0 0.0
    %1861 = vmatpush1.xpose.msra.mxu0 0.0
    %1862 = vmatprep.subr.mxu0 0.0
    %1863 = vmatpush1.xpose.msra.mxu0 0.0
    %1864 = vmatprep.subr.mxu0 0.0
    %1865 = vmatpush1.xpose.msra.mxu0 0.0
    %1866 = vmatprep.subr.mxu0 0.0
    %1867 = vmatpush1.xpose.msra.mxu0 0.0
    %1868 = vmatprep.subr.mxu0 0.0
    %1869 = vmatpush1.xpose.msra.mxu0 0.0
    %1870 = vmatprep.subr.mxu0 0.0
    %1871 = vmatpush1.xpose.msra.mxu0 0.0
    %1872 = vmatprep.subr.mxu0 0.0
    %1873 = vmatpush1.xpose.msra.mxu0 0.0
    %1874 = vmatprep.subr.mxu0 0.0
    %1875 = vmatpush1.xpose.msra.mxu0 0.0
    %1876 = vmatprep.subr.mxu0 0.0
    %1877 = vmatpush1.xpose.msra.mxu0 0.0
    %1878 = vmatprep.subr.mxu0 0.0
    %1879 = vmatpush1.xpose.msra.mxu0 0.0
    %1880 = vmatprep.subr.mxu0 0.0
    %1881 = vmatpush1.xpose.msra.mxu0 0.0
    %1882 = vmatprep.subr.mxu0 0.0
    %1883 = vmatpush1.xpose.msra.mxu0 0.0
    %1884 = vmatprep.subr.mxu0 0.0
    %1885 = vmatpush1.xpose.msra.mxu0 0.0
    %1886 = vmatprep.subr.mxu0 0.0
    %1887 = vmatpush1.xpose.msra.mxu0 0.0
    %1888 = vmatprep.subr.mxu0 0.0
    %1889 = vmatpush1.xpose.msra.mxu0 0.0
    %1890 = vmatprep.subr.mxu0 0.0
    %1891 = vmatpush1.xpose.msra.mxu0 0.0
    %1892 = vmatprep.subr.mxu0 0.0
    %1893 = vmatpush1.xpose.msra.mxu0 0.0
    %1894 = vmatprep.subr.mxu0 0.0
    %1895 = vmatpush1.xpose.msra.mxu0 0.0
    %1896 = vmatprep.subr.mxu0 0.0
    %1897 = vmatpush1.xpose.msra.mxu0 0.0
    %1898 = vmatprep.subr.mxu0 0.0
    %1899 = vmatpush1.xpose.msra.mxu0 0.0
    %1900 = vmatprep.mubr.f32.mxu0 0.0
    %1901 = vmatmul.mubr.f32.gmra.mrb[0].mxu0 %v79
    %v1902 = vpop.f32.mrb[0].mxu0
    %v1903 = vadd.f32 0.0, %v1902
    %v1904 = vpop.f32.mrb[0].mxu0
    %1905 = vmatprep.mubr.f32.mxu0 0.0
    %1906 = vmatmul.mubr.f32.gmra.mrb[0].mxu0 %v82
    %v1907 = vpop.f32.mrb[0].mxu0
    %v1908 = vadd.f32 0.0, %v1907
    %v1909 = vpop.f32.mrb[0].mxu0
    %1910 = vdwg.mxu0
    %s1911 = scalar_lea.vmem [#allocation7], 48
    %v1912 = vld [vmem:[%s1911] sm:$0xff]
    %v1913 = vld [vmem:[%s1911 + $0x8] sm:$0xff]
    %v1915 = vsel %vm77, %v1912, 0
    %v1918 = vsel %vm77, %v1913, 0
    %1920 = vmatprep.subr.mxu0 0.0
    %1921 = vmatpush1.xpose.msra.mxu0 %v1915
    %1922 = vmatprep.subr.mxu0 0.0
    %1923 = vmatpush1.xpose.msra.mxu0 %v1918
    %1924 = vmatprep.subr.mxu0 0.0
    %1925 = vmatpush1.xpose.msra.mxu0 0.0
    %1926 = vmatprep.subr.mxu0 0.0
    %1927 = vmatpush1.xpose.msra.mxu0 0.0
    %1928 = vmatprep.subr.mxu0 0.0
    %1929 = vmatpush1.xpose.msra.mxu0 0.0
    %1930 = vmatprep.subr.mxu0 0.0
    %1931 = vmatpush1.xpose.msra.mxu0 0.0
    %1932 = vmatprep.subr.mxu0 0.0
    %1933 = vmatpush1.xpose.msra.mxu0 0.0
    %1934 = vmatprep.subr.mxu0 0.0
    %1935 = vmatpush1.xpose.msra.mxu0 0.0
    %1936 = vmatprep.subr.mxu0 0.0
    %1937 = vmatpush1.xpose.msra.mxu0 0.0
    %1938 = vmatprep.subr.mxu0 0.0
    %1939 = vmatpush1.xpose.msra.mxu0 0.0
    %1940 = vmatprep.subr.mxu0 0.0
    %1941 = vmatpush1.xpose.msra.mxu0 0.0
    %1942 = vmatprep.subr.mxu0 0.0
    %1943 = vmatpush1.xpose.msra.mxu0 0.0
    %1944 = vmatprep.subr.mxu0 0.0
    %1945 = vmatpush1.xpose.msra.mxu0 0.0
    %1946 = vmatprep.subr.mxu0 0.0
    %1947 = vmatpush1.xpose.msra.mxu0 0.0
    %1948 = vmatprep.subr.mxu0 0.0
    %1949 = vmatpush1.xpose.msra.mxu0 0.0
    %1950 = vmatprep.subr.mxu0 0.0
    %1951 = vmatpush1.xpose.msra.mxu0 0.0
    %1952 = vmatprep.subr.mxu0 0.0
    %1953 = vmatpush1.xpose.msra.mxu0 0.0
    %1954 = vmatprep.subr.mxu0 0.0
    %1955 = vmatpush1.xpose.msra.mxu0 0.0
    %1956 = vmatprep.subr.mxu0 0.0
    %1957 = vmatpush1.xpose.msra.mxu0 0.0
    %1958 = vmatprep.subr.mxu0 0.0
    %1959 = vmatpush1.xpose.msra.mxu0 0.0
    %1960 = vmatprep.subr.mxu0 0.0
    %1961 = vmatpush1.xpose.msra.mxu0 0.0
    %1962 = vmatprep.subr.mxu0 0.0
    %1963 = vmatpush1.xpose.msra.mxu0 0.0
    %1964 = vmatprep.subr.mxu0 0.0
    %1965 = vmatpush1.xpose.msra.mxu0 0.0
    %1966 = vmatprep.subr.mxu0 0.0
    %1967 = vmatpush1.xpose.msra.mxu0 0.0
    %1968 = vmatprep.subr.mxu0 0.0
    %1969 = vmatpush1.xpose.msra.mxu0 0.0
    %1970 = vmatprep.subr.mxu0 0.0
    %1971 = vmatpush1.xpose.msra.mxu0 0.0
    %1972 = vmatprep.subr.mxu0 0.0
    %1973 = vmatpush1.xpose.msra.mxu0 0.0
    %1974 = vmatprep.subr.mxu0 0.0
    %1975 = vmatpush1.xpose.msra.mxu0 0.0
    %1976 = vmatprep.subr.mxu0 0.0
    %1977 = vmatpush1.xpose.msra.mxu0 0.0
    %1978 = vmatprep.subr.mxu0 0.0
    %1979 = vmatpush1.xpose.msra.mxu0 0.0
    %1980 = vmatprep.subr.mxu0 0.0
    %1981 = vmatpush1.xpose.msra.mxu0 0.0
    %1982 = vmatprep.subr.mxu0 0.0
    %1983 = vmatpush1.xpose.msra.mxu0 0.0
    %1984 = vmatprep.mubr.f32.mxu0 0.0
    %1985 = vmatmul.mubr.f32.gmra.mrb[0].mxu0 %v79
    %v1986 = vpop.f32.mrb[0].mxu0
    %v1987 = vadd.f32 0.0, %v1986
    %v1988 = vpop.f32.mrb[0].mxu0
    %1989 = vmatprep.mubr.f32.mxu0 0.0
    %1990 = vmatmul.mubr.f32.gmra.mrb[0].mxu0 %v82
    %v1991 = vpop.f32.mrb[0].mxu0
    %v1992 = vadd.f32 0.0, %v1991
    %v1993 = vpop.f32.mrb[0].mxu0
    %1994 = vdwg.mxu0
    %s1995 = scalar_lea.vmem [#allocation8], 48
    %v1996 = vld [vmem:[%s1995] sm:$0xff]
    %v1997 = vld [vmem:[%s1995 + $0x8] sm:$0xff]
    %v1999 = vsel %vm77, %v1996, 0
    %v2002 = vsel %vm77, %v1997, 0
    %2004 = vmatprep.subr.mxu0 0.0
    %2005 = vmatpush1.xpose.msra.mxu0 %v1999
    %2006 = vmatprep.subr.mxu0 0.0
    %2007 = vmatpush1.xpose.msra.mxu0 %v2002
    %2008 = vmatprep.subr.mxu0 0.0
    %2009 = vmatpush1.xpose.msra.mxu0 0.0
    %2010 = vmatprep.subr.mxu0 0.0
    %2011 = vmatpush1.xpose.msra.mxu0 0.0
    %2012 = vmatprep.subr.mxu0 0.0
    %2013 = vmatpush1.xpose.msra.mxu0 0.0
    %2014 = vmatprep.subr.mxu0 0.0
    %2015 = vmatpush1.xpose.msra.mxu0 0.0
    %2016 = vmatprep.subr.mxu0 0.0
    %2017 = vmatpush1.xpose.msra.mxu0 0.0
    %2018 = vmatprep.subr.mxu0 0.0
    %2019 = vmatpush1.xpose.msra.mxu0 0.0
    %2020 = vmatprep.subr.mxu0 0.0
    %2021 = vmatpush1.xpose.msra.mxu0 0.0
    %2022 = vmatprep.subr.mxu0 0.0
    %2023 = vmatpush1.xpose.msra.mxu0 0.0
    %2024 = vmatprep.subr.mxu0 0.0
    %2025 = vmatpush1.xpose.msra.mxu0 0.0
    %2026 = vmatprep.subr.mxu0 0.0
    %2027 = vmatpush1.xpose.msra.mxu0 0.0
    %2028 = vmatprep.subr.mxu0 0.0
    %2029 = vmatpush1.xpose.msra.mxu0 0.0
    %2030 = vmatprep.subr.mxu0 0.0
    %2031 = vmatpush1.xpose.msra.mxu0 0.0
    %2032 = vmatprep.subr.mxu0 0.0
    %2033 = vmatpush1.xpose.msra.mxu0 0.0
    %2034 = vmatprep.subr.mxu0 0.0
    %2035 = vmatpush1.xpose.msra.mxu0 0.0
    %2036 = vmatprep.subr.mxu0 0.0
    %2037 = vmatpush1.xpose.msra.mxu0 0.0
    %2038 = vmatprep.subr.mxu0 0.0
    %2039 = vmatpush1.xpose.msra.mxu0 0.0
    %2040 = vmatprep.subr.mxu0 0.0
    %2041 = vmatpush1.xpose.msra.mxu0 0.0
    %2042 = vmatprep.subr.mxu0 0.0
    %2043 = vmatpush1.xpose.msra.mxu0 0.0
    %2044 = vmatprep.subr.mxu0 0.0
    %2045 = vmatpush1.xpose.msra.mxu0 0.0
    %2046 = vmatprep.subr.mxu0 0.0
    %2047 = vmatpush1.xpose.msra.mxu0 0.0
    %2048 = vmatprep.subr.mxu0 0.0
    %2049 = vmatpush1.xpose.msra.mxu0 0.0
    %2050 = vmatprep.subr.mxu0 0.0
    %2051 = vmatpush1.xpose.msra.mxu0 0.0
    %2052 = vmatprep.subr.mxu0 0.0
    %2053 = vmatpush1.xpose.msra.mxu0 0.0
    %2054 = vmatprep.subr.mxu0 0.0
    %2055 = vmatpush1.xpose.msra.mxu0 0.0
    %2056 = vmatprep.subr.mxu0 0.0
    %2057 = vmatpush1.xpose.msra.mxu0 0.0
    %2058 = vmatprep.subr.mxu0 0.0
    %2059 = vmatpush1.xpose.msra.mxu0 0.0
    %2060 = vmatprep.subr.mxu0 0.0
    %2061 = vmatpush1.xpose.msra.mxu0 0.0
    %2062 = vmatprep.subr.mxu0 0.0
    %2063 = vmatpush1.xpose.msra.mxu0 0.0
    %2064 = vmatprep.subr.mxu0 0.0
    %2065 = vmatpush1.xpose.msra.mxu0 0.0
    %2066 = vmatprep.subr.mxu0 0.0
    %2067 = vmatpush1.xpose.msra.mxu0 0.0
    %2068 = vmatprep.mubr.f32.mxu0 0.0
    %2069 = vmatmul.mubr.f32.gmra.mrb[0].mxu0 %v79
    %v2070 = vpop.f32.mrb[0].mxu0
    %v2071 = vadd.f32 0.0, %v2070
    %v2072 = vpop.f32.mrb[0].mxu0
    %2073 = vmatprep.mubr.f32.mxu0 0.0
    %2074 = vmatmul.mubr.f32.gmra.mrb[0].mxu0 %v82
    %v2075 = vpop.f32.mrb[0].mxu0
    %v2076 = vadd.f32 0.0, %v2075
    %v2077 = vpop.f32.mrb[0].mxu0
    %2078 = vdwg.mxu0
    %v2079 = vmul.f32 %v1903, 0.25
    %v2080 = vmul.f32 %v1908, 0.25
    %v2082 = vsel %vm333, %v2079, 0
    %v2085 = vsel %vm333, %v1987, 0
    %2087 = vmatprep.subr.mxu0 0.0
    %2088 = vmatpush1.xpose.msra.mxu0 %v2085
    %2089 = vmatprep.subr.mxu0 0.0
    %2090 = vmatpush1.xpose.msra.mxu0 0.0
    %2091 = vmatprep.subr.mxu0 0.0
    %2092 = vmatpush1.xpose.msra.mxu0 0.0
    %2093 = vmatprep.subr.mxu0 0.0
    %2094 = vmatpush1.xpose.msra.mxu0 0.0
    %2095 = vmatprep.subr.mxu0 0.0
    %2096 = vmatpush1.xpose.msra.mxu0 0.0
    %2097 = vmatprep.subr.mxu0 0.0
    %2098 = vmatpush1.xpose.msra.mxu0 0.0
    %2099 = vmatprep.subr.mxu0 0.0
    %2100 = vmatpush1.xpose.msra.mxu0 0.0
    %2101 = vmatprep.subr.mxu0 0.0
    %2102 = vmatpush1.xpose.msra.mxu0 0.0
    %2103 = vmatprep.subr.mxu0 0.0
    %2104 = vmatpush1.xpose.msra.mxu0 0.0
    %2105 = vmatprep.subr.mxu0 0.0
    %2106 = vmatpush1.xpose.msra.mxu0 0.0
    %2107 = vmatprep.subr.mxu0 0.0
    %2108 = vmatpush1.xpose.msra.mxu0 0.0
    %2109 = vmatprep.subr.mxu0 0.0
    %2110 = vmatpush1.xpose.msra.mxu0 0.0
    %2111 = vmatprep.subr.mxu0 0.0
    %2112 = vmatpush1.xpose.msra.mxu0 0.0
    %2113 = vmatprep.subr.mxu0 0.0
    %2114 = vmatpush1.xpose.msra.mxu0 0.0
    %2115 = vmatprep.subr.mxu0 0.0
    %2116 = vmatpush1.xpose.msra.mxu0 0.0
    %2117 = vmatprep.subr.mxu0 0.0
    %2118 = vmatpush1.xpose.msra.mxu0 0.0
    %2119 = vmatprep.subr.mxu0 0.0
    %2120 = vmatpush1.xpose.msra.mxu0 0.0
    %2121 = vmatprep.subr.mxu0 0.0
    %2122 = vmatpush1.xpose.msra.mxu0 0.0
    %2123 = vmatprep.subr.mxu0 0.0
    %2124 = vmatpush1.xpose.msra.mxu0 0.0
    %2125 = vmatprep.subr.mxu0 0.0
    %2126 = vmatpush1.xpose.msra.mxu0 0.0
    %2127 = vmatprep.subr.mxu0 0.0
    %2128 = vmatpush1.xpose.msra.mxu0 0.0
    %2129 = vmatprep.subr.mxu0 0.0
    %2130 = vmatpush1.xpose.msra.mxu0 0.0
    %2131 = vmatprep.subr.mxu0 0.0
    %2132 = vmatpush1.xpose.msra.mxu0 0.0
    %2133 = vmatprep.subr.mxu0 0.0
    %2134 = vmatpush1.xpose.msra.mxu0 0.0
    %2135 = vmatprep.subr.mxu0 0.0
    %2136 = vmatpush1.xpose.msra.mxu0 0.0
    %2137 = vmatprep.subr.mxu0 0.0
    %2138 = vmatpush1.xpose.msra.mxu0 0.0
    %2139 = vmatprep.subr.mxu0 0.0
    %2140 = vmatpush1.xpose.msra.mxu0 0.0
    %2141 = vmatprep.subr.mxu0 0.0
    %2142 = vmatpush1.xpose.msra.mxu0 0.0
    %2143 = vmatprep.subr.mxu0 0.0
    %2144 = vmatpush1.xpose.msra.mxu0 0.0
    %2145 = vmatprep.subr.mxu0 0.0
    %2146 = vmatpush1.xpose.msra.mxu0 0.0
    %2147 = vmatprep.subr.mxu0 0.0
    %2148 = vmatpush1.xpose.msra.mxu0 0.0
    %2149 = vmatprep.subr.mxu0 0.0
    %2150 = vmatpush1.xpose.msra.mxu0 0.0
    %2151 = vmatprep.mubr.f32.mxu0 0.0
    %2152 = vmatmul.mubr.f32.gmra.mrb[0].mxu0 %v2082
    %v2153 = vpop.f32.mrb[0].mxu0
    %v2154 = vadd.f32 0.0, %v2153
    %v2155 = vpop.f32.mrb[0].mxu0
    %2156 = vdwg.mxu0
    %v2158 = vsel %vm333, %v2080, 0
    %v2161 = vsel %vm333, %v1992, 0
    %2163 = vmatprep.subr.mxu0 0.0
    %2164 = vmatpush1.xpose.msra.mxu0 %v2161
    %2165 = vmatprep.subr.mxu0 0.0
    %2166 = vmatpush1.xpose.msra.mxu0 0.0
    %2167 = vmatprep.subr.mxu0 0.0
    %2168 = vmatpush1.xpose.msra.mxu0 0.0
    %2169 = vmatprep.subr.mxu0 0.0
    %2170 = vmatpush1.xpose.msra.mxu0 0.0
    %2171 = vmatprep.subr.mxu0 0.0
    %2172 = vmatpush1.xpose.msra.mxu0 0.0
    %2173 = vmatprep.subr.mxu0 0.0
    %2174 = vmatpush1.xpose.msra.mxu0 0.0
    %2175 = vmatprep.subr.mxu0 0.0
    %2176 = vmatpush1.xpose.msra.mxu0 0.0
    %2177 = vmatprep.subr.mxu0 0.0
    %2178 = vmatpush1.xpose.msra.mxu0 0.0
    %2179 = vmatprep.subr.mxu0 0.0
    %2180 = vmatpush1.xpose.msra.mxu0 0.0
    %2181 = vmatprep.subr.mxu0 0.0
    %2182 = vmatpush1.xpose.msra.mxu0 0.0
    %2183 = vmatprep.subr.mxu0 0.0
    %2184 = vmatpush1.xpose.msra.mxu0 0.0
    %2185 = vmatprep.subr.mxu0 0.0
    %2186 = vmatpush1.xpose.msra.mxu0 0.0
    %2187 = vmatprep.subr.mxu0 0.0
    %2188 = vmatpush1.xpose.msra.mxu0 0.0
    %2189 = vmatprep.subr.mxu0 0.0
    %2190 = vmatpush1.xpose.msra.mxu0 0.0
    %2191 = vmatprep.subr.mxu0 0.0
    %2192 = vmatpush1.xpose.msra.mxu0 0.0
    %2193 = vmatprep.subr.mxu0 0.0
    %2194 = vmatpush1.xpose.msra.mxu0 0.0
    %2195 = vmatprep.subr.mxu0 0.0
    %2196 = vmatpush1.xpose.msra.mxu0 0.0
    %2197 = vmatprep.subr.mxu0 0.0
    %2198 = vmatpush1.xpose.msra.mxu0 0.0
    %2199 = vmatprep.subr.mxu0 0.0
    %2200 = vmatpush1.xpose.msra.mxu0 0.0
    %2201 = vmatprep.subr.mxu0 0.0
    %2202 = vmatpush1.xpose.msra.mxu0 0.0
    %2203 = vmatprep.subr.mxu0 0.0
    %2204 = vmatpush1.xpose.msra.mxu0 0.0
    %2205 = vmatprep.subr.mxu0 0.0
    %2206 = vmatpush1.xpose.msra.mxu0 0.0
    %2207 = vmatprep.subr.mxu0 0.0
    %2208 = vmatpush1.xpose.msra.mxu0 0.0
    %2209 = vmatprep.subr.mxu0 0.0
    %2210 = vmatpush1.xpose.msra.mxu0 0.0
    %2211 = vmatprep.subr.mxu0 0.0
    %2212 = vmatpush1.xpose.msra.mxu0 0.0
    %2213 = vmatprep.subr.mxu0 0.0
    %2214 = vmatpush1.xpose.msra.mxu0 0.0
    %2215 = vmatprep.subr.mxu0 0.0
    %2216 = vmatpush1.xpose.msra.mxu0 0.0
    %2217 = vmatprep.subr.mxu0 0.0
    %2218 = vmatpush1.xpose.msra.mxu0 0.0
    %2219 = vmatprep.subr.mxu0 0.0
    %2220 = vmatpush1.xpose.msra.mxu0 0.0
    %2221 = vmatprep.subr.mxu0 0.0
    %2222 = vmatpush1.xpose.msra.mxu0 0.0
    %2223 = vmatprep.subr.mxu0 0.0
    %2224 = vmatpush1.xpose.msra.mxu0 0.0
    %2225 = vmatprep.subr.mxu0 0.0
    %2226 = vmatpush1.xpose.msra.mxu0 0.0
    %2227 = vmatprep.mubr.f32.mxu0 0.0
    %2228 = vmatmul.mubr.f32.gmra.mrb[0].mxu0 %v2158
    %v2229 = vpop.f32.mrb[0].mxu0
    %v2230 = vadd.f32 0.0, %v2229
    %v2231 = vpop.f32.mrb[0].mxu0
    %2232 = vdwg.mxu0
    %v2233 = vsel %vm486, %v2154, -inf
    %2234 = vmax.xlane.f32.xlu0 %v2233
    %v2235 = vpop.xlane.xlu0 %2234
    %v2236 = vsel %vm486, %v2230, -inf
    %2237 = vmax.xlane.f32.xlu0 %v2236
    %v2238 = vpop.xlane.xlu0 %2237
    %v2239 = vsub.f32 %v2154, %v2235
    %v2240 = vsub.f32 %v2230, %v2238
    %v2241 = vmul.f32 %v2239, 1.442695
    %v2242 = vpow.pop %v2241
    %v2243 = vmul.f32 %v2240, 1.442695
    %v2244 = vpow.pop %v2243
    %v2245 = vsel %vm486, %v2242, 0.0
    %2246 = vadd.xlane.f32.xlu0 %v2245
    %v2247 = vpop.xlane.xlu0 %2246
    %v2248 = vsel %vm486, %v2244, 0.0
    %2249 = vadd.xlane.f32.xlu0 %v2248
    %v2250 = vpop.xlane.xlu0 %2249
    %v2251 = vrcp.pop %v2247
    %v2252 = vrcp.pop %v2250
    %v2253 = vmul.f32 %v2242, %v2251
    %v2254 = vmul.f32 %v2244, %v2252
    %v2256 = vsel %vm486, %v2253, 0
    %2258 = vmatprep.subr.mxu0 0.0
    %2259 = vmatpush1.msra.mxu0 %v2071
    %2260 = vmatprep.subr.mxu0 0.0
    %2261 = vmatpush1.msra.mxu0 0.0
    %2262 = vmatprep.subr.mxu0 0.0
    %2263 = vmatpush1.msra.mxu0 0.0
    %2264 = vmatprep.subr.mxu0 0.0
    %2265 = vmatpush1.msra.mxu0 0.0
    %2266 = vmatprep.subr.mxu0 0.0
    %2267 = vmatpush1.msra.mxu0 0.0
    %2268 = vmatprep.subr.mxu0 0.0
    %2269 = vmatpush1.msra.mxu0 0.0
    %2270 = vmatprep.subr.mxu0 0.0
    %2271 = vmatpush1.msra.mxu0 0.0
    %2272 = vmatprep.subr.mxu0 0.0
    %2273 = vmatpush1.msra.mxu0 0.0
    %2274 = vmatprep.subr.mxu0 0.0
    %2275 = vmatpush1.msra.mxu0 0.0
    %2276 = vmatprep.subr.mxu0 0.0
    %2277 = vmatpush1.msra.mxu0 0.0
    %2278 = vmatprep.subr.mxu0 0.0
    %2279 = vmatpush1.msra.mxu0 0.0
    %2280 = vmatprep.subr.mxu0 0.0
    %2281 = vmatpush1.msra.mxu0 0.0
    %2282 = vmatprep.subr.mxu0 0.0
    %2283 = vmatpush1.msra.mxu0 0.0
    %2284 = vmatprep.subr.mxu0 0.0
    %2285 = vmatpush1.msra.mxu0 0.0
    %2286 = vmatprep.subr.mxu0 0.0
    %2287 = vmatpush1.msra.mxu0 0.0
    %2288 = vmatprep.subr.mxu0 0.0
    %2289 = vmatpush1.msra.mxu0 0.0
    %2290 = vmatprep.subr.mxu0 0.0
    %2291 = vmatpush1.msra.mxu0 0.0
    %2292 = vmatprep.subr.mxu0 0.0
    %2293 = vmatpush1.msra.mxu0 0.0
    %2294 = vmatprep.subr.mxu0 0.0
    %2295 = vmatpush1.msra.mxu0 0.0
    %2296 = vmatprep.subr.mxu0 0.0
    %2297 = vmatpush1.msra.mxu0 0.0
    %2298 = vmatprep.subr.mxu0 0.0
    %2299 = vmatpush1.msra.mxu0 0.0
    %2300 = vmatprep.subr.mxu0 0.0
    %2301 = vmatpush1.msra.mxu0 0.0
    %2302 = vmatprep.subr.mxu0 0.0
    %2303 = vmatpush1.msra.mxu0 0.0
    %2304 = vmatprep.subr.mxu0 0.0
    %2305 = vmatpush1.msra.mxu0 0.0
    %2306 = vmatprep.subr.mxu0 0.0
    %2307 = vmatpush1.msra.mxu0 0.0
    %2308 = vmatprep.subr.mxu0 0.0
    %2309 = vmatpush1.msra.mxu0 0.0
    %2310 = vmatprep.subr.mxu0 0.0
    %2311 = vmatpush1.msra.mxu0 0.0
    %2312 = vmatprep.subr.mxu0 0.0
    %2313 = vmatpush1.msra.mxu0 0.0
    %2314 = vmatprep.subr.mxu0 0.0
    %2315 = vmatpush1.msra.mxu0 0.0
    %2316 = vmatprep.subr.mxu0 0.0
    %2317 = vmatpush1.msra.mxu0 0.0
    %2318 = vmatprep.subr.mxu0 0.0
    %2319 = vmatpush1.msra.mxu0 0.0
    %2320 = vmatprep.subr.mxu0 0.0
    %2321 = vmatpush1.msra.mxu0 0.0
    %2322 = vmatprep.mubr.f32.mxu0 0.0
    %2323 = vmatmul.mubr.f32.gmra.mrb[0].mxu0 %v2256
    %v2324 = vpop.f32.mrb[0].mxu0
    %v2325 = vadd.f32 0.0, %v2324
    %v2326 = vpop.f32.mrb[0].mxu0
    %2327 = vdwg.mxu0
    %v2329 = vsel %vm486, %v2254, 0
    %2331 = vmatprep.subr.mxu0 0.0
    %2332 = vmatpush1.msra.mxu0 %v2076
    %2333 = vmatprep.subr.mxu0 0.0
    %2334 = vmatpush1.msra.mxu0 0.0
    %2335 = vmatprep.subr.mxu0 0.0
    %2336 = vmatpush1.msra.mxu0 0.0
    %2337 = vmatprep.subr.mxu0 0.0
    %2338 = vmatpush1.msra.mxu0 0.0
    %2339 = vmatprep.subr.mxu0 0.0
    %2340 = vmatpush1.msra.mxu0 0.0
    %2341 = vmatprep.subr.mxu0 0.0
    %2342 = vmatpush1.msra.mxu0 0.0
    %2343 = vmatprep.subr.mxu0 0.0
    %2344 = vmatpush1.msra.mxu0 0.0
    %2345 = vmatprep.subr.mxu0 0.0
    %2346 = vmatpush1.msra.mxu0 0.0
    %2347 = vmatprep.subr.mxu0 0.0
    %2348 = vmatpush1.msra.mxu0 0.0
    %2349 = vmatprep.subr.mxu0 0.0
    %2350 = vmatpush1.msra.mxu0 0.0
    %2351 = vmatprep.subr.mxu0 0.0
    %2352 = vmatpush1.msra.mxu0 0.0
    %2353 = vmatprep.subr.mxu0 0.0
    %2354 = vmatpush1.msra.mxu0 0.0
    %2355 = vmatprep.subr.mxu0 0.0
    %2356 = vmatpush1.msra.mxu0 0.0
    %2357 = vmatprep.subr.mxu0 0.0
    %2358 = vmatpush1.msra.mxu0 0.0
    %2359 = vmatprep.subr.mxu0 0.0
    %2360 = vmatpush1.msra.mxu0 0.0
    %2361 = vmatprep.subr.mxu0 0.0
    %2362 = vmatpush1.msra.mxu0 0.0
    %2363 = vmatprep.subr.mxu0 0.0
    %2364 = vmatpush1.msra.mxu0 0.0
    %2365 = vmatprep.subr.mxu0 0.0
    %2366 = vmatpush1.msra.mxu0 0.0
    %2367 = vmatprep.subr.mxu0 0.0
    %2368 = vmatpush1.msra.mxu0 0.0
    %2369 = vmatprep.subr.mxu0 0.0
    %2370 = vmatpush1.msra.mxu0 0.0
    %2371 = vmatprep.subr.mxu0 0.0
    %2372 = vmatpush1.msra.mxu0 0.0
    %2373 = vmatprep.subr.mxu0 0.0
    %2374 = vmatpush1.msra.mxu0 0.0
    %2375 = vmatprep.subr.mxu0 0.0
    %2376 = vmatpush1.msra.mxu0 0.0
    %2377 = vmatprep.subr.mxu0 0.0
    %2378 = vmatpush1.msra.mxu0 0.0
    %2379 = vmatprep.subr.mxu0 0.0
    %2380 = vmatpush1.msra.mxu0 0.0
    %2381 = vmatprep.subr.mxu0 0.0
    %2382 = vmatpush1.msra.mxu0 0.0
    %2383 = vmatprep.subr.mxu0 0.0
    %2384 = vmatpush1.msra.mxu0 0.0
    %2385 = vmatprep.subr.mxu0 0.0
    %2386 = vmatpush1.msra.mxu0 0.0
    %2387 = vmatprep.subr.mxu0 0.0
    %2388 = vmatpush1.msra.mxu0 0.0
    %2389 = vmatprep.subr.mxu0 0.0
    %2390 = vmatpush1.msra.mxu0 0.0
    %2391 = vmatprep.subr.mxu0 0.0
    %2392 = vmatpush1.msra.mxu0 0.0
    %2393 = vmatprep.subr.mxu0 0.0
    %2394 = vmatpush1.msra.mxu0 0.0
    %2395 = vmatprep.mubr.f32.mxu0 0.0
    %2396 = vmatmul.mubr.f32.gmra.mrb[0].mxu0 %v2329
    %v2397 = vpop.f32.mrb[0].mxu0
    %v2398 = vadd.f32 0.0, %v2397
    %v2399 = vpop.f32.mrb[0].mxu0
    %2400 = vdwg.mxu0
    %2403 = vrot.lane.b32.xlu0 %v2325, 48
    %v2404 = vpop.permute.xlu0 %2403
    %2405 = vrot.lane.b32.xlu0 %v2398, 48
    %v2406 = vpop.permute.xlu0 %2405
    %vm2409 = vcmask 523648
    %2410 = vst.msk [vmem:[#allocation10] sm:$0xff] %vm2409, %v2404
    %2411 = vst.msk [vmem:[#allocation10 + $0x8] sm:$0xff] %vm2409, %v2406
    // Predicated region
    $region34: #{tpu_custom_call.1} parent=1 // pred_check
      _
    $region35: #{tpu_custom_call.1} parent=1 // pred_check_branch
      %2413 = sbr.rel (0) target = $region37
    $region36: #{tpu_custom_call.1} parent=1 // pred_region
      %s2415 = ssub.s32 256, 256
      %2416 = vsyncadd [#allocation4], %s2415
      %s2417 = sshll.u32 [#allocation10], 4
      %s2418 = int_to_ptr.vmem [resolvable:$true] %s2417
      %2423 = dma.vmem_to_hbm [thread:$0]  %s2418, 256, %s4, [#allocation4], 128, 128, 8
    $region37: #{tpu_custom_call.1} parent=1 // pred_fallthru
      _
    // Predicated region
    $region38: #{tpu_custom_call.1} parent=1 // pred_check
      _
    $region39: #{tpu_custom_call.1} parent=1 // pred_check_branch
      %2425 = sbr.rel (0) target = $region41
    $region40: #{tpu_custom_call.1} parent=1 // pred_region
      %2426 = dma.done [#allocation4], 256
    $region41: #{tpu_custom_call.1} parent=1 // pred_fallthru
      _
    %2427 = vsyncpa [#allocation3], 1
    %2428 = vsyncpa [#allocation6], 1
    %2429 = vsyncpa [#allocation9], 1
    %2430 = vsyncpa [#allocation4], 1

// kernel: tpu_custom_call.1
$region0: #{tpu_custom_call.1}
  #allocation0 [shape = 'u32[]', space=smem, size = 0x4, offset = 0x4, fixed_abs, tag = 'smem constant byte address 0x4 - core index']
  #allocation1 [shape = 'u32[144,128]{1,0:T(1,128)}', space=vmem, size = 0x12000, scoped, tag = 'internal scratch']
  %s0 = inlined_call_operand.hbm [shape: f32[2,8,32], index: 0, kind: input, shape index: {}]
  %s1 = inlined_call_operand.hbm [shape: f32[4,16,32], index: 1, kind: input, shape index: {}]
  %s2 = inlined_call_operand.hbm [shape: f32[4,16,32], index: 2, kind: input, shape index: {}]
  %s3 = inlined_call_operand.hbm [shape: f32[4,16,32], index: 3, kind: input, shape index: {}]
  %s4 = inlined_call_operand.hbm [shape: f32[2,8,64], index: 4, kind: output, shape index: {}]
  %s5 = sld [smem:[#allocation0]]
  $region42: #{tpu_custom_call.1} parent=0
    _
  %s7 = ssub.s32 1, %s5
  %s8 = scalar_select 0, %s7, %s5
  $region1: #{tpu_custom_call.1} parent=0
    #allocation2 [shape = 'u8[8192]{0}', space=vmem, size = 0x2000, scoped, tag = 'input window, operand 0, single buffered']
    #allocation3 [shape = 's32[1]{0}', space=sflag, size = 0x4, scoped, tag = 'scoped memory for tpu_custom_call.1']
    #allocation4 [shape = 's32[1]{0}', space=sflag, size = 0x4, scoped, tag = 'scoped memory for tpu_custom_call.1']
    #allocation5 [shape = 'u8[32768]{0}', space=vmem, size = 0x8000, scoped, tag = 'input window, operand 1, single buffered']
    #allocation6 [shape = 's32[1]{0}', space=sflag, size = 0x4, scoped, tag = 'scoped memory for tpu_custom_call.1']
    #allocation7 [shape = 'u8[32768]{0}', space=vmem, size = 0x8000, scoped, tag = 'input window, operand 2, single buffered']
    #allocation8 [shape = 'u8[32768]{0}', space=vmem, size = 0x8000, scoped, tag = 'input window, operand 3, single buffered']
    #allocation9 [shape = 's32[1]{0}', space=sflag, size = 0x4, scoped, tag = 'scoped memory for tpu_custom_call.1']
    #allocation10 [shape = 'u8[8192]{0}', space=vmem, size = 0x2000, scoped, tag = 'output window, operand 0, single buffered']
    %9 = vsyncpa [#allocation3], 0
    %10 = vsyncpa [#allocation6], 0
    %11 = vsyncpa [#allocation9], 0
    %12 = vsyncpa [#allocation4], 0
    // Predicated region
    $region2: #{tpu_custom_call.1} parent=1 // pred_check
      _
    $region3: #{tpu_custom_call.1} parent=1 // pred_check_branch
      %14 = sbr.rel (0) target = $region5
    $region4: #{tpu_custom_call.1} parent=1 // pred_region
      %s16 = ssub.s32 256, 256
      %17 = vsyncadd [#allocation3], %s16
      %s18 = sshll.u32 [#allocation2], 4
      %s19 = int_to_ptr.vmem [resolvable:$true] %s18
      %24 = dma.hbm_to_vmem [thread:$0]  %s0, 256, %s19, [#allocation3], 128, 128, 8
    $region5: #{tpu_custom_call.1} parent=1 // pred_fallthru
      _
    // Predicated region
    $region6: #{tpu_custom_call.1} parent=1 // pred_check
      _
    $region7: #{tpu_custom_call.1} parent=1 // pred_check_branch
      %26 = sbr.rel (0) target = $region9
    $region8: #{tpu_custom_call.1} parent=1 // pred_region
      %s28 = ssub.s32 1024, 1024
      %29 = vsyncadd [#allocation6], %s28
      %s30 = sshll.u32 [#allocation5], 4
      %s31 = int_to_ptr.vmem [resolvable:$true] %s30
      %36 = dma.hbm_to_vmem [thread:$0]  %s1, 1024, %s31, [#allocation6], 128, 128, 8
    $region9: #{tpu_custom_call.1} parent=1 // pred_fallthru
      _
    // Predicated region
    $region10: #{tpu_custom_call.1} parent=1 // pred_check
      _
    $region11: #{tpu_custom_call.1} parent=1 // pred_check_branch
      %38 = sbr.rel (0) target = $region13
    $region12: #{tpu_custom_call.1} parent=1 // pred_region
      %s40 = ssub.s32 1024, 1024
      %41 = vsyncadd [#allocation6], %s40
      %s42 = sshll.u32 [#allocation7], 4
      %s43 = int_to_ptr.vmem [resolvable:$true] %s42
      %48 = dma.hbm_to_vmem [thread:$0]  %s2, 1024, %s43, [#allocation6], 128, 128, 8
    $region13: #{tpu_custom_call.1} parent=1 // pred_fallthru
      _
    // Predicated region
    $region14: #{tpu_custom_call.1} parent=1 // pred_check
      _
    $region15: #{tpu_custom_call.1} parent=1 // pred_check_branch
      %50 = sbr.rel (0) target = $region17
    $region16: #{tpu_custom_call.1} parent=1 // pred_region
      %s52 = ssub.s32 1024, 1024
      %53 = vsyncadd [#allocation9], %s52
      %s54 = sshll.u32 [#allocation8], 4
      %s55 = int_to_ptr.vmem [resolvable:$true] %s54
      %60 = dma.hbm_to_vmem [thread:$0]  %s3, 1024, %s55, [#allocation9], 128, 128, 8
    $region17: #{tpu_custom_call.1} parent=1 // pred_fallthru
      _
    // Predicated region
    $region18: #{tpu_custom_call.1} parent=1 // pred_check
      _
    $region19: #{tpu_custom_call.1} parent=1 // pred_check_branch
      %62 = sbr.rel (0) target = $region21
    $region20: #{tpu_custom_call.1} parent=1 // pred_region
      %63 = dma.done [#allocation3], 256
    $region21: #{tpu_custom_call.1} parent=1 // pred_fallthru
      _
    // Predicated region
    $region22: #{tpu_custom_call.1} parent=1 // pred_check
      _
    $region23: #{tpu_custom_call.1} parent=1 // pred_check_branch
      %65 = sbr.rel (0) target = $region25
    $region24: #{tpu_custom_call.1} parent=1 // pred_region
      %66 = dma.done [#allocation6], 1024
    $region25: #{tpu_custom_call.1} parent=1 // pred_fallthru
      _
    // Predicated region
    $region26: #{tpu_custom_call.1} parent=1 // pred_check
      _
    $region27: #{tpu_custom_call.1} parent=1 // pred_check_branch
      %68 = sbr.rel (0) target = $region29
    $region28: #{tpu_custom_call.1} parent=1 // pred_region
      %69 = dma.done [#allocation6], 1024
    $region29: #{tpu_custom_call.1} parent=1 // pred_fallthru
      _
    // Predicated region
    $region30: #{tpu_custom_call.1} parent=1 // pred_check
      _
    $region31: #{tpu_custom_call.1} parent=1 // pred_check_branch
      %71 = sbr.rel (0) target = $region33
    $region32: #{tpu_custom_call.1} parent=1 // pred_region
      %72 = dma.done [#allocation9], 1024
    $region33: #{tpu_custom_call.1} parent=1 // pred_fallthru
      _
    %v73 = vld [vmem:[#allocation2] sm:$0xff]
    %v74 = vld [vmem:[#allocation2 + $0x8] sm:$0xff]
    %v75 = vld [vmem:[#allocation5] sm:$0xff]
    %v76 = vld [vmem:[#allocation5 + $0x8] sm:$0xff]
    %vm77 = vcmask 261120
    %v79 = vsel %vm77, %v73, 0
    %v82 = vsel %vm77, %v74, 0
    %v85 = vsel %vm77, %v75, 0
    %v88 = vsel %vm77, %v76, 0
    %90 = vmatprep.subr.mxu0 0.0
    %91 = vmatpush1.xpose.msra.mxu0 %v85
    %92 = vmatprep.subr.mxu0 0.0
    %93 = vmatpush1.xpose.msra.mxu0 %v88
    %94 = vmatprep.subr.mxu0 0.0
    %95 = vmatpush1.xpose.msra.mxu0 0.0
    %96 = vmatprep.subr.mxu0 0.0
    %97 = vmatpush1.xpose.msra.mxu0 0.0
    %98 = vmatprep.subr.mxu0 0.0
    %99 = vmatpush1.xpose.msra.mxu0 0.0
    %100 = vmatprep.subr.mxu0 0.0
    %101 = vmatpush1.xpose.msra.mxu0 0.0
    %102 = vmatprep.subr.mxu0 0.0
    %103 = vmatpush1.xpose.msra.mxu0 0.0
    %104 = vmatprep.subr.mxu0 0.0
    %105 = vmatpush1.xpose.msra.mxu0 0.0
    %106 = vmatprep.subr.mxu0 0.0
    %107 = vmatpush1.xpose.msra.mxu0 0.0
    %108 = vmatprep.subr.mxu0 0.0
    %109 = vmatpush1.xpose.msra.mxu0 0.0
    %110 = vmatprep.subr.mxu0 0.0
    %111 = vmatpush1.xpose.msra.mxu0 0.0
    %112 = vmatprep.subr.mxu0 0.0
    %113 = vmatpush1.xpose.msra.mxu0 0.0
    %114 = vmatprep.subr.mxu0 0.0
    %115 = vmatpush1.xpose.msra.mxu0 0.0
    %116 = vmatprep.subr.mxu0 0.0
    %117 = vmatpush1.xpose.msra.mxu0 0.0
    %118 = vmatprep.subr.mxu0 0.0
    %119 = vmatpush1.xpose.msra.mxu0 0.0
    %120 = vmatprep.subr.mxu0 0.0
    %121 = vmatpush1.xpose.msra.mxu0 0.0
    %122 = vmatprep.subr.mxu0 0.0
    %123 = vmatpush1.xpose.msra.mxu0 0.0
    %124 = vmatprep.subr.mxu0 0.0
    %125 = vmatpush1.xpose.msra.mxu0 0.0
    %126 = vmatprep.subr.mxu0 0.0
    %127 = vmatpush1.xpose.msra.mxu0 0.0
    %128 = vmatprep.subr.mxu0 0.0
    %129 = vmatpush1.xpose.msra.mxu0 0.0
    %130 = vmatprep.subr.mxu0 0.0
    %131 = vmatpush1.xpose.msra.mxu0 0.0
    %132 = vmatprep.subr.mxu0 0.0
    %133 = vmatpush1.xpose.msra.mxu0 0.0
    %134 = vmatprep.subr.mxu0 0.0
    %135 = vmatpush1.xpose.msra.mxu0 0.0
    %136 = vmatprep.subr.mxu0 0.0
    %137 = vmatpush1.xpose.msra.mxu0 0.0
    %138 = vmatprep.subr.mxu0 0.0
    %139 = vmatpush1.xpose.msra.mxu0 0.0
    %140 = vmatprep.subr.mxu0 0.0
    %141 = vmatpush1.xpose.msra.mxu0 0.0
    %142 = vmatprep.subr.mxu0 0.0
    %143 = vmatpush1.xpose.msra.mxu0 0.0
    %144 = vmatprep.subr.mxu0 0.0
    %145 = vmatpush1.xpose.msra.mxu0 0.0
    %146 = vmatprep.subr.mxu0 0.0
    %147 = vmatpush1.xpose.msra.mxu0 0.0
    %148 = vmatprep.subr.mxu0 0.0
    %149 = vmatpush1.xpose.msra.mxu0 0.0
    %150 = vmatprep.subr.mxu0 0.0
    %151 = vmatpush1.xpose.msra.mxu0 0.0
    %152 = vmatprep.subr.mxu0 0.0
    %153 = vmatpush1.xpose.msra.mxu0 0.0
    %154 = vmatprep.mubr.f32.mxu0 0.0
    %155 = vmatmul.mubr.f32.gmra.mrb[0].mxu0 %v79
    %v156 = vpop.f32.mrb[0].mxu0
    %v157 = vadd.f32 0.0, %v156
    %v158 = vpop.f32.mrb[0].mxu0
    %159 = vmatprep.mubr.f32.mxu0 0.0
    %160 = vmatmul.mubr.f32.gmra.mrb[0].mxu0 %v82
    %v161 = vpop.f32.mrb[0].mxu0
    %v162 = vadd.f32 0.0, %v161
    %v163 = vpop.f32.mrb[0].mxu0
    %164 = vdwg.mxu0
    %v165 = vld [vmem:[#allocation7] sm:$0xff]
    %v166 = vld [vmem:[#allocation7 + $0x8] sm:$0xff]
    %v168 = vsel %vm77, %v165, 0
    %v171 = vsel %vm77, %v166, 0
    %173 = vmatprep.subr.mxu0 0.0
    %174 = vmatpush1.xpose.msra.mxu0 %v168
    %175 = vmatprep.subr.mxu0 0.0
    %176 = vmatpush1.xpose.msra.mxu0 %v171
    %177 = vmatprep.subr.mxu0 0.0
    %178 = vmatpush1.xpose.msra.mxu0 0.0
    %179 = vmatprep.subr.mxu0 0.0
    %180 = vmatpush1.xpose.msra.mxu0 0.0
    %181 = vmatprep.subr.mxu0 0.0
    %182 = vmatpush1.xpose.msra.mxu0 0.0
    %183 = vmatprep.subr.mxu0 0.0
    %184 = vmatpush1.xpose.msra.mxu0 0.0
    %185 = vmatprep.subr.mxu0 0.0
    %186 = vmatpush1.xpose.msra.mxu0 0.0
    %187 = vmatprep.subr.mxu0 0.0
    %188 = vmatpush1.xpose.msra.mxu0 0.0
    %189 = vmatprep.subr.mxu0 0.0
    %190 = vmatpush1.xpose.msra.mxu0 0.0
    %191 = vmatprep.subr.mxu0 0.0
    %192 = vmatpush1.xpose.msra.mxu0 0.0
    %193 = vmatprep.subr.mxu0 0.0
    %194 = vmatpush1.xpose.msra.mxu0 0.0
    %195 = vmatprep.subr.mxu0 0.0
    %196 = vmatpush1.xpose.msra.mxu0 0.0
    %197 = vmatprep.subr.mxu0 0.0
    %198 = vmatpush1.xpose.msra.mxu0 0.0
    %199 = vmatprep.subr.mxu0 0.0
    %200 = vmatpush1.xpose.msra.mxu0 0.0
    %201 = vmatprep.subr.mxu0 0.0
    %202 = vmatpush1.xpose.msra.mxu0 0.0
    %203 = vmatprep.subr.mxu0 0.0
    %204 = vmatpush1.xpose.msra.mxu0 0.0
    %205 = vmatprep.subr.mxu0 0.0
    %206 = vmatpush1.xpose.msra.mxu0 0.0
    %207 = vmatprep.subr.mxu0 0.0
    %208 = vmatpush1.xpose.msra.mxu0 0.0
    %209 = vmatprep.subr.mxu0 0.0
    %210 = vmatpush1.xpose.msra.mxu0 0.0
    %211 = vmatprep.subr.mxu0 0.0
    %212 = vmatpush1.xpose.msra.mxu0 0.0
    %213 = vmatprep.subr.mxu0 0.0
    %214 = vmatpush1.xpose.msra.mxu0 0.0
    %215 = vmatprep.subr.mxu0 0.0
    %216 = vmatpush1.xpose.msra.mxu0 0.0
    %217 = vmatprep.subr.mxu0 0.0
    %218 = vmatpush1.xpose.msra.mxu0 0.0
    %219 = vmatprep.subr.mxu0 0.0
    %220 = vmatpush1.xpose.msra.mxu0 0.0
    %221 = vmatprep.subr.mxu0 0.0
    %222 = vmatpush1.xpose.msra.mxu0 0.0
    %223 = vmatprep.subr.mxu0 0.0
    %224 = vmatpush1.xpose.msra.mxu0 0.0
    %225 = vmatprep.subr.mxu0 0.0
    %226 = vmatpush1.xpose.msra.mxu0 0.0
    %227 = vmatprep.subr.mxu0 0.0
    %228 = vmatpush1.xpose.msra.mxu0 0.0
    %229 = vmatprep.subr.mxu0 0.0
    %230 = vmatpush1.xpose.msra.mxu0 0.0
    %231 = vmatprep.subr.mxu0 0.0
    %232 = vmatpush1.xpose.msra.mxu0 0.0
    %233 = vmatprep.subr.mxu0 0.0
    %234 = vmatpush1.xpose.msra.mxu0 0.0
    %235 = vmatprep.subr.mxu0 0.0
    %236 = vmatpush1.xpose.msra.mxu0 0.0
    %237 = vmatprep.mubr.f32.mxu0 0.0
    %238 = vmatmul.mubr.f32.gmra.mrb[0].mxu0 %v79
    %v239 = vpop.f32.mrb[0].mxu0
    %v240 = vadd.f32 0.0, %v239
    %v241 = vpop.f32.mrb[0].mxu0
    %242 = vmatprep.mubr.f32.mxu0 0.0
    %243 = vmatmul.mubr.f32.gmra.mrb[0].mxu0 %v82
    %v244 = vpop.f32.mrb[0].mxu0
    %v245 = vadd.f32 0.0, %v244
    %v246 = vpop.f32.mrb[0].mxu0
    %247 = vdwg.mxu0
    %v248 = vld [vmem:[#allocation8] sm:$0xff]
    %v249 = vld [vmem:[#allocation8 + $0x8] sm:$0xff]
    %v251 = vsel %vm77, %v248, 0
    %v254 = vsel %vm77, %v249, 0
    %256 = vmatprep.subr.mxu0 0.0
    %257 = vmatpush1.xpose.msra.mxu0 %v251
    %258 = vmatprep.subr.mxu0 0.0
    %259 = vmatpush1.xpose.msra.mxu0 %v254
    %260 = vmatprep.subr.mxu0 0.0
    %261 = vmatpush1.xpose.msra.mxu0 0.0
    %262 = vmatprep.subr.mxu0 0.0
    %263 = vmatpush1.xpose.msra.mxu0 0.0
    %264 = vmatprep.subr.mxu0 0.0
    %265 = vmatpush1.xpose.msra.mxu0 0.0
    %266 = vmatprep.subr.mxu0 0.0
    %267 = vmatpush1.xpose.msra.mxu0 0.0
    %268 = vmatprep.subr.mxu0 0.0
    %269 = vmatpush1.xpose.msra.mxu0 0.0
    %270 = vmatprep.subr.mxu0 0.0
    %271 = vmatpush1.xpose.msra.mxu0 0.0
    %272 = vmatprep.subr.mxu0 0.0
    %273 = vmatpush1.xpose.msra.mxu0 0.0
    %274 = vmatprep.subr.mxu0 0.0
    %275 = vmatpush1.xpose.msra.mxu0 0.0
    %276 = vmatprep.subr.mxu0 0.0
    %277 = vmatpush1.xpose.msra.mxu0 0.0
    %278 = vmatprep.subr.mxu0 0.0
    %279 = vmatpush1.xpose.msra.mxu0 0.0
    %280 = vmatprep.subr.mxu0 0.0
    %281 = vmatpush1.xpose.msra.mxu0 0.0
    %282 = vmatprep.subr.mxu0 0.0
    %283 = vmatpush1.xpose.msra.mxu0 0.0
    %284 = vmatprep.subr.mxu0 0.0
    %285 = vmatpush1.xpose.msra.mxu0 0.0
    %286 = vmatprep.subr.mxu0 0.0
    %287 = vmatpush1.xpose.msra.mxu0 0.0
    %288 = vmatprep.subr.mxu0 0.0
    %289 = vmatpush1.xpose.msra.mxu0 0.0
    %290 = vmatprep.subr.mxu0 0.0
    %291 = vmatpush1.xpose.msra.mxu0 0.0
    %292 = vmatprep.subr.mxu0 0.0
    %293 = vmatpush1.xpose.msra.mxu0 0.0
    %294 = vmatprep.subr.mxu0 0.0
    %295 = vmatpush1.xpose.msra.mxu0 0.0
    %296 = vmatprep.subr.mxu0 0.0
    %297 = vmatpush1.xpose.msra.mxu0 0.0
    %298 = vmatprep.subr.mxu0 0.0
    %299 = vmatpush1.xpose.msra.mxu0 0.0
    %300 = vmatprep.subr.mxu0 0.0
    %301 = vmatpush1.xpose.msra.mxu0 0.0
    %302 = vmatprep.subr.mxu0 0.0
    %303 = vmatpush1.xpose.msra.mxu0 0.0
    %304 = vmatprep.subr.mxu0 0.0
    %305 = vmatpush1.xpose.msra.mxu0 0.0
    %306 = vmatprep.subr.mxu0 0.0
    %307 = vmatpush1.xpose.msra.mxu0 0.0
    %308 = vmatprep.subr.mxu0 0.0
    %309 = vmatpush1.xpose.msra.mxu0 0.0
    %310 = vmatprep.subr.mxu0 0.0
    %311 = vmatpush1.xpose.msra.mxu0 0.0
    %312 = vmatprep.subr.mxu0 0.0
    %313 = vmatpush1.xpose.msra.mxu0 0.0
    %314 = vmatprep.subr.mxu0 0.0
    %315 = vmatpush1.xpose.msra.mxu0 0.0
    %316 = vmatprep.subr.mxu0 0.0
    %317 = vmatpush1.xpose.msra.mxu0 0.0
    %318 = vmatprep.subr.mxu0 0.0
    %319 = vmatpush1.xpose.msra.mxu0 0.0
    %320 = vmatprep.mubr.f32.mxu0 0.0
    %321 = vmatmul.mubr.f32.gmra.mrb[0].mxu0 %v79
    %v322 = vpop.f32.mrb[0].mxu0
    %v323 = vadd.f32 0.0, %v322
    %v324 = vpop.f32.mrb[0].mxu0
    %325 = vmatprep.mubr.f32.mxu0 0.0
    %326 = vmatmul.mubr.f32.gmra.mrb[0].mxu0 %v82
    %v327 = vpop.f32.mrb[0].mxu0
    %v328 = vadd.f32 0.0, %v327
    %v329 = vpop.f32.mrb[0].mxu0
    %330 = vdwg.mxu0
    %v331 = vmul.f32 %v157, 0.25
    %v332 = vmul.f32 %v162, 0.25
    %vm333 = vcmask 130048
    %v335 = vsel %vm333, %v331, 0
    %v338 = vsel %vm333, %v240, 0
    %340 = vmatprep.subr.mxu0 0.0
    %341 = vmatpush1.xpose.msra.mxu0 %v338
    %342 = vmatprep.subr.mxu0 0.0
    %343 = vmatpush1.xpose.msra.mxu0 0.0
    %344 = vmatprep.subr.mxu0 0.0
    %345 = vmatpush1.xpose.msra.mxu0 0.0
    %346 = vmatprep.subr.mxu0 0.0
    %347 = vmatpush1.xpose.msra.mxu0 0.0
    %348 = vmatprep.subr.mxu0 0.0
    %349 = vmatpush1.xpose.msra.mxu0 0.0
    %350 = vmatprep.subr.mxu0 0.0
    %351 = vmatpush1.xpose.msra.mxu0 0.0
    %352 = vmatprep.subr.mxu0 0.0
    %353 = vmatpush1.xpose.msra.mxu0 0.0
    %354 = vmatprep.subr.mxu0 0.0
    %355 = vmatpush1.xpose.msra.mxu0 0.0
    %356 = vmatprep.subr.mxu0 0.0
    %357 = vmatpush1.xpose.msra.mxu0 0.0
    %358 = vmatprep.subr.mxu0 0.0
    %359 = vmatpush1.xpose.msra.mxu0 0.0
    %360 = vmatprep.subr.mxu0 0.0
    %361 = vmatpush1.xpose.msra.mxu0 0.0
    %362 = vmatprep.subr.mxu0 0.0
    %363 = vmatpush1.xpose.msra.mxu0 0.0
    %364 = vmatprep.subr.mxu0 0.0
    %365 = vmatpush1.xpose.msra.mxu0 0.0
    %366 = vmatprep.subr.mxu0 0.0
    %367 = vmatpush1.xpose.msra.mxu0 0.0
    %368 = vmatprep.subr.mxu0 0.0
    %369 = vmatpush1.xpose.msra.mxu0 0.0
    %370 = vmatprep.subr.mxu0 0.0
    %371 = vmatpush1.xpose.msra.mxu0 0.0
    %372 = vmatprep.subr.mxu0 0.0
    %373 = vmatpush1.xpose.msra.mxu0 0.0
    %374 = vmatprep.subr.mxu0 0.0
    %375 = vmatpush1.xpose.msra.mxu0 0.0
    %376 = vmatprep.subr.mxu0 0.0
    %377 = vmatpush1.xpose.msra.mxu0 0.0
    %378 = vmatprep.subr.mxu0 0.0
    %379 = vmatpush1.xpose.msra.mxu0 0.0
    %380 = vmatprep.subr.mxu0 0.0
    %381 = vmatpush1.xpose.msra.mxu0 0.0
    %382 = vmatprep.subr.mxu0 0.0
    %383 = vmatpush1.xpose.msra.mxu0 0.0
    %384 = vmatprep.subr.mxu0 0.0
    %385 = vmatpush1.xpose.msra.mxu0 0.0
    %386 = vmatprep.subr.mxu0 0.0
    %387 = vmatpush1.xpose.msra.mxu0 0.0
    %388 = vmatprep.subr.mxu0 0.0
    %389 = vmatpush1.xpose.msra.mxu0 0.0
    %390 = vmatprep.subr.mxu0 0.0
    %391 = vmatpush1.xpose.msra.mxu0 0.0
    %392 = vmatprep.subr.mxu0 0.0
    %393 = vmatpush1.xpose.msra.mxu0 0.0
    %394 = vmatprep.subr.mxu0 0.0
    %395 = vmatpush1.xpose.msra.mxu0 0.0
    %396 = vmatprep.subr.mxu0 0.0
    %397 = vmatpush1.xpose.msra.mxu0 0.0
    %398 = vmatprep.subr.mxu0 0.0
    %399 = vmatpush1.xpose.msra.mxu0 0.0
    %400 = vmatprep.subr.mxu0 0.0
    %401 = vmatpush1.xpose.msra.mxu0 0.0
    %402 = vmatprep.subr.mxu0 0.0
    %403 = vmatpush1.xpose.msra.mxu0 0.0
    %404 = vmatprep.mubr.f32.mxu0 0.0
    %405 = vmatmul.mubr.f32.gmra.mrb[0].mxu0 %v335
    %v406 = vpop.f32.mrb[0].mxu0
    %v407 = vadd.f32 0.0, %v406
    %v408 = vpop.f32.mrb[0].mxu0
    %409 = vdwg.mxu0
    %v411 = vsel %vm333, %v332, 0
    %v414 = vsel %vm333, %v245, 0
    %416 = vmatprep.subr.mxu0 0.0
    %417 = vmatpush1.xpose.msra.mxu0 %v414
    %418 = vmatprep.subr.mxu0 0.0
    %419 = vmatpush1.xpose.msra.mxu0 0.0
    %420 = vmatprep.subr.mxu0 0.0
    %421 = vmatpush1.xpose.msra.mxu0 0.0
    %422 = vmatprep.subr.mxu0 0.0
    %423 = vmatpush1.xpose.msra.mxu0 0.0
    %424 = vmatprep.subr.mxu0 0.0
    %425 = vmatpush1.xpose.msra.mxu0 0.0
    %426 = vmatprep.subr.mxu0 0.0
    %427 = vmatpush1.xpose.msra.mxu0 0.0
    %428 = vmatprep.subr.mxu0 0.0
    %429 = vmatpush1.xpose.msra.mxu0 0.0
    %430 = vmatprep.subr.mxu0 0.0
    %431 = vmatpush1.xpose.msra.mxu0 0.0
    %432 = vmatprep.subr.mxu0 0.0
    %433 = vmatpush1.xpose.msra.mxu0 0.0
    %434 = vmatprep.subr.mxu0 0.0
    %435 = vmatpush1.xpose.msra.mxu0 0.0
    %436 = vmatprep.subr.mxu0 0.0
    %437 = vmatpush1.xpose.msra.mxu0 0.0
    %438 = vmatprep.subr.mxu0 0.0
    %439 = vmatpush1.xpose.msra.mxu0 0.0
    %440 = vmatprep.subr.mxu0 0.0
    %441 = vmatpush1.xpose.msra.mxu0 0.0
    %442 = vmatprep.subr.mxu0 0.0
    %443 = vmatpush1.xpose.msra.mxu0 0.0
    %444 = vmatprep.subr.mxu0 0.0
    %445 = vmatpush1.xpose.msra.mxu0 0.0
    %446 = vmatprep.subr.mxu0 0.0
    %447 = vmatpush1.xpose.msra.mxu0 0.0
    %448 = vmatprep.subr.mxu0 0.0
    %449 = vmatpush1.xpose.msra.mxu0 0.0
    %450 = vmatprep.subr.mxu0 0.0
    %451 = vmatpush1.xpose.msra.mxu0 0.0
    %452 = vmatprep.subr.mxu0 0.0
    %453 = vmatpush1.xpose.msra.mxu0 0.0
    %454 = vmatprep.subr.mxu0 0.0
    %455 = vmatpush1.xpose.msra.mxu0 0.0
    %456 = vmatprep.subr.mxu0 0.0
    %457 = vmatpush1.xpose.msra.mxu0 0.0
    %458 = vmatprep.subr.mxu0 0.0
    %459 = vmatpush1.xpose.msra.mxu0 0.0
    %460 = vmatprep.subr.mxu0 0.0
    %461 = vmatpush1.xpose.msra.mxu0 0.0
    %462 = vmatprep.subr.mxu0 0.0
    %463 = vmatpush1.xpose.msra.mxu0 0.0
    %464 = vmatprep.subr.mxu0 0.0
    %465 = vmatpush1.xpose.msra.mxu0 0.0
    %466 = vmatprep.subr.mxu0 0.0
    %467 = vmatpush1.xpose.msra.mxu0 0.0
    %468 = vmatprep.subr.mxu0 0.0
    %469 = vmatpush1.xpose.msra.mxu0 0.0
    %470 = vmatprep.subr.mxu0 0.0
    %471 = vmatpush1.xpose.msra.mxu0 0.0
    %472 = vmatprep.subr.mxu0 0.0
    %473 = vmatpush1.xpose.msra.mxu0 0.0
    %474 = vmatprep.subr.mxu0 0.0
    %475 = vmatpush1.xpose.msra.mxu0 0.0
    %476 = vmatprep.subr.mxu0 0.0
    %477 = vmatpush1.xpose.msra.mxu0 0.0
    %478 = vmatprep.subr.mxu0 0.0
    %479 = vmatpush1.xpose.msra.mxu0 0.0
    %480 = vmatprep.mubr.f32.mxu0 0.0
    %481 = vmatmul.mubr.f32.gmra.mrb[0].mxu0 %v411
    %v482 = vpop.f32.mrb[0].mxu0
    %v483 = vadd.f32 0.0, %v482
    %v484 = vpop.f32.mrb[0].mxu0
    %485 = vdwg.mxu0
    %vm486 = vcmask 64512
    %v487 = vsel %vm486, %v407, -inf
    %488 = vmax.xlane.f32.xlu0 %v487
    %v489 = vpop.xlane.xlu0 %488
    %v490 = vsel %vm486, %v483, -inf
    %491 = vmax.xlane.f32.xlu0 %v490
    %v492 = vpop.xlane.xlu0 %491
    %v493 = vsub.f32 %v407, %v489
    %v494 = vsub.f32 %v483, %v492
    %v495 = vmul.f32 %v493, 1.442695
    %v496 = vpow.pop %v495
    %v497 = vmul.f32 %v494, 1.442695
    %v498 = vpow.pop %v497
    %v499 = vsel %vm486, %v496, 0.0
    %500 = vadd.xlane.f32.xlu0 %v499
    %v501 = vpop.xlane.xlu0 %500
    %v502 = vsel %vm486, %v498, 0.0
    %503 = vadd.xlane.f32.xlu0 %v502
    %v504 = vpop.xlane.xlu0 %503
    %v505 = vrcp.pop %v501
    %v506 = vrcp.pop %v504
    %v507 = vmul.f32 %v496, %v505
    %v508 = vmul.f32 %v498, %v506
    %v510 = vsel %vm486, %v507, 0
    %512 = vmatprep.subr.mxu0 0.0
    %513 = vmatpush1.msra.mxu0 %v323
    %514 = vmatprep.subr.mxu0 0.0
    %515 = vmatpush1.msra.mxu0 0.0
    %516 = vmatprep.subr.mxu0 0.0
    %517 = vmatpush1.msra.mxu0 0.0
    %518 = vmatprep.subr.mxu0 0.0
    %519 = vmatpush1.msra.mxu0 0.0
    %520 = vmatprep.subr.mxu0 0.0
    %521 = vmatpush1.msra.mxu0 0.0
    %522 = vmatprep.subr.mxu0 0.0
    %523 = vmatpush1.msra.mxu0 0.0
    %524 = vmatprep.subr.mxu0 0.0
    %525 = vmatpush1.msra.mxu0 0.0
    %526 = vmatprep.subr.mxu0 0.0
    %527 = vmatpush1.msra.mxu0 0.0
    %528 = vmatprep.subr.mxu0 0.0
    %529 = vmatpush1.msra.mxu0 0.0
    %530 = vmatprep.subr.mxu0 0.0
    %531 = vmatpush1.msra.mxu0 0.0
    %532 = vmatprep.subr.mxu0 0.0
    %533 = vmatpush1.msra.mxu0 0.0
    %534 = vmatprep.subr.mxu0 0.0
    %535 = vmatpush1.msra.mxu0 0.0
    %536 = vmatprep.subr.mxu0 0.0
    %537 = vmatpush1.msra.mxu0 0.0
    %538 = vmatprep.subr.mxu0 0.0
    %539 = vmatpush1.msra.mxu0 0.0
    %540 = vmatprep.subr.mxu0 0.0
    %541 = vmatpush1.msra.mxu0 0.0
    %542 = vmatprep.subr.mxu0 0.0
    %543 = vmatpush1.msra.mxu0 0.0
    %544 = vmatprep.subr.mxu0 0.0
    %545 = vmatpush1.msra.mxu0 0.0
    %546 = vmatprep.subr.mxu0 0.0
    %547 = vmatpush1.msra.mxu0 0.0
    %548 = vmatprep.subr.mxu0 0.0
    %549 = vmatpush1.msra.mxu0 0.0
    %550 = vmatprep.subr.mxu0 0.0
    %551 = vmatpush1.msra.mxu0 0.0
    %552 = vmatprep.subr.mxu0 0.0
    %553 = vmatpush1.msra.mxu0 0.0
    %554 = vmatprep.subr.mxu0 0.0
    %555 = vmatpush1.msra.mxu0 0.0
    %556 = vmatprep.subr.mxu0 0.0
    %557 = vmatpush1.msra.mxu0 0.0
    %558 = vmatprep.subr.mxu0 0.0
    %559 = vmatpush1.msra.mxu0 0.0
    %560 = vmatprep.subr.mxu0 0.0
    %561 = vmatpush1.msra.mxu0 0.0
    %562 = vmatprep.subr.mxu0 0.0
    %563 = vmatpush1.msra.mxu0 0.0
    %564 = vmatprep.subr.mxu0 0.0
    %565 = vmatpush1.msra.mxu0 0.0
    %566 = vmatprep.subr.mxu0 0.0
    %567 = vmatpush1.msra.mxu0 0.0
    %568 = vmatprep.subr.mxu0 0.0
    %569 = vmatpush1.msra.mxu0 0.0
    %570 = vmatprep.subr.mxu0 0.0
    %571 = vmatpush1.msra.mxu0 0.0
    %572 = vmatprep.subr.mxu0 0.0
    %573 = vmatpush1.msra.mxu0 0.0
    %574 = vmatprep.subr.mxu0 0.0
    %575 = vmatpush1.msra.mxu0 0.0
    %576 = vmatprep.mubr.f32.mxu0 0.0
    %577 = vmatmul.mubr.f32.gmra.mrb[0].mxu0 %v510
    %v578 = vpop.f32.mrb[0].mxu0
    %v579 = vadd.f32 0.0, %v578
    %v580 = vpop.f32.mrb[0].mxu0
    %581 = vdwg.mxu0
    %v583 = vsel %vm486, %v508, 0
    %585 = vmatprep.subr.mxu0 0.0
    %586 = vmatpush1.msra.mxu0 %v328
    %587 = vmatprep.subr.mxu0 0.0
    %588 = vmatpush1.msra.mxu0 0.0
    %589 = vmatprep.subr.mxu0 0.0
    %590 = vmatpush1.msra.mxu0 0.0
    %591 = vmatprep.subr.mxu0 0.0
    %592 = vmatpush1.msra.mxu0 0.0
    %593 = vmatprep.subr.mxu0 0.0
    %594 = vmatpush1.msra.mxu0 0.0
    %595 = vmatprep.subr.mxu0 0.0
    %596 = vmatpush1.msra.mxu0 0.0
    %597 = vmatprep.subr.mxu0 0.0
    %598 = vmatpush1.msra.mxu0 0.0
    %599 = vmatprep.subr.mxu0 0.0
    %600 = vmatpush1.msra.mxu0 0.0
    %601 = vmatprep.subr.mxu0 0.0
    %602 = vmatpush1.msra.mxu0 0.0
    %603 = vmatprep.subr.mxu0 0.0
    %604 = vmatpush1.msra.mxu0 0.0
    %605 = vmatprep.subr.mxu0 0.0
    %606 = vmatpush1.msra.mxu0 0.0
    %607 = vmatprep.subr.mxu0 0.0
    %608 = vmatpush1.msra.mxu0 0.0
    %609 = vmatprep.subr.mxu0 0.0
    %610 = vmatpush1.msra.mxu0 0.0
    %611 = vmatprep.subr.mxu0 0.0
    %612 = vmatpush1.msra.mxu0 0.0
    %613 = vmatprep.subr.mxu0 0.0
    %614 = vmatpush1.msra.mxu0 0.0
    %615 = vmatprep.subr.mxu0 0.0
    %616 = vmatpush1.msra.mxu0 0.0
    %617 = vmatprep.subr.mxu0 0.0
    %618 = vmatpush1.msra.mxu0 0.0
    %619 = vmatprep.subr.mxu0 0.0
    %620 = vmatpush1.msra.mxu0 0.0
    %621 = vmatprep.subr.mxu0 0.0
    %622 = vmatpush1.msra.mxu0 0.0
    %623 = vmatprep.subr.mxu0 0.0
    %624 = vmatpush1.msra.mxu0 0.0
    %625 = vmatprep.subr.mxu0 0.0
    %626 = vmatpush1.msra.mxu0 0.0
    %627 = vmatprep.subr.mxu0 0.0
    %628 = vmatpush1.msra.mxu0 0.0
    %629 = vmatprep.subr.mxu0 0.0
    %630 = vmatpush1.msra.mxu0 0.0
    %631 = vmatprep.subr.mxu0 0.0
    %632 = vmatpush1.msra.mxu0 0.0
    %633 = vmatprep.subr.mxu0 0.0
    %634 = vmatpush1.msra.mxu0 0.0
    %635 = vmatprep.subr.mxu0 0.0
    %636 = vmatpush1.msra.mxu0 0.0
    %637 = vmatprep.subr.mxu0 0.0
    %638 = vmatpush1.msra.mxu0 0.0
    %639 = vmatprep.subr.mxu0 0.0
    %640 = vmatpush1.msra.mxu0 0.0
    %641 = vmatprep.subr.mxu0 0.0
    %642 = vmatpush1.msra.mxu0 0.0
    %643 = vmatprep.subr.mxu0 0.0
    %644 = vmatpush1.msra.mxu0 0.0
    %645 = vmatprep.subr.mxu0 0.0
    %646 = vmatpush1.msra.mxu0 0.0
    %647 = vmatprep.subr.mxu0 0.0
    %648 = vmatpush1.msra.mxu0 0.0
    %649 = vmatprep.mubr.f32.mxu0 0.0
    %650 = vmatmul.mubr.f32.gmra.mrb[0].mxu0 %v583
    %v651 = vpop.f32.mrb[0].mxu0
    %v652 = vadd.f32 0.0, %v651
    %v653 = vpop.f32.mrb[0].mxu0
    %654 = vdwg.mxu0
    %655 = vst.msk [vmem:[#allocation10] sm:$0xff] %vm333, %v579
    %656 = vst.msk [vmem:[#allocation10 + $0x8] sm:$0xff] %vm333, %v652
    %s657 = scalar_lea.vmem [#allocation5], 16
    %v658 = vld [vmem:[%s657] sm:$0xff]
    %v659 = vld [vmem:[%s657 + $0x8] sm:$0xff]
    %v661 = vsel %vm77, %v658, 0
    %v664 = vsel %vm77, %v659, 0
    %666 = vmatprep.subr.mxu0 0.0
    %667 = vmatpush1.xpose.msra.mxu0 %v661
    %668 = vmatprep.subr.mxu0 0.0
    %669 = vmatpush1.xpose.msra.mxu0 %v664
    %670 = vmatprep.subr.mxu0 0.0
    %671 = vmatpush1.xpose.msra.mxu0 0.0
    %672 = vmatprep.subr.mxu0 0.0
    %673 = vmatpush1.xpose.msra.mxu0 0.0
    %674 = vmatprep.subr.mxu0 0.0
    %675 = vmatpush1.xpose.msra.mxu0 0.0
    %676 = vmatprep.subr.mxu0 0.0
    %677 = vmatpush1.xpose.msra.mxu0 0.0
    %678 = vmatprep.subr.mxu0 0.0
    %679 = vmatpush1.xpose.msra.mxu0 0.0
    %680 = vmatprep.subr.mxu0 0.0
    %681 = vmatpush1.xpose.msra.mxu0 0.0
    %682 = vmatprep.subr.mxu0 0.0
    %683 = vmatpush1.xpose.msra.mxu0 0.0
    %684 = vmatprep.subr.mxu0 0.0
    %685 = vmatpush1.xpose.msra.mxu0 0.0
    %686 = vmatprep.subr.mxu0 0.0
    %687 = vmatpush1.xpose.msra.mxu0 0.0
    %688 = vmatprep.subr.mxu0 0.0
    %689 = vmatpush1.xpose.msra.mxu0 0.0
    %690 = vmatprep.subr.mxu0 0.0
    %691 = vmatpush1.xpose.msra.mxu0 0.0
    %692 = vmatprep.subr.mxu0 0.0
    %693 = vmatpush1.xpose.msra.mxu0 0.0
    %694 = vmatprep.subr.mxu0 0.0
    %695 = vmatpush1.xpose.msra.mxu0 0.0
    %696 = vmatprep.subr.mxu0 0.0
    %697 = vmatpush1.xpose.msra.mxu0 0.0
    %698 = vmatprep.subr.mxu0 0.0
    %699 = vmatpush1.xpose.msra.mxu0 0.0
    %700 = vmatprep.subr.mxu0 0.0
    %701 = vmatpush1.xpose.msra.mxu0 0.0
    %702 = vmatprep.subr.mxu0 0.0
    %703 = vmatpush1.xpose.msra.mxu0 0.0
    %704 = vmatprep.subr.mxu0 0.0
    %705 = vmatpush1.xpose.msra.mxu0 0.0
    %706 = vmatprep.subr.mxu0 0.0
    %707 = vmatpush1.xpose.msra.mxu0 0.0
    %708 = vmatprep.subr.mxu0 0.0
    %709 = vmatpush1.xpose.msra.mxu0 0.0
    %710 = vmatprep.subr.mxu0 0.0
    %711 = vmatpush1.xpose.msra.mxu0 0.0
    %712 = vmatprep.subr.mxu0 0.0
    %713 = vmatpush1.xpose.msra.mxu0 0.0
    %714 = vmatprep.subr.mxu0 0.0
    %715 = vmatpush1.xpose.msra.mxu0 0.0
    %716 = vmatprep.subr.mxu0 0.0
    %717 = vmatpush1.xpose.msra.mxu0 0.0
    %718 = vmatprep.subr.mxu0 0.0
    %719 = vmatpush1.xpose.msra.mxu0 0.0
    %720 = vmatprep.subr.mxu0 0.0
    %721 = vmatpush1.xpose.msra.mxu0 0.0
    %722 = vmatprep.subr.mxu0 0.0
    %723 = vmatpush1.xpose.msra.mxu0 0.0
    %724 = vmatprep.subr.mxu0 0.0
    %725 = vmatpush1.xpose.msra.mxu0 0.0
    %726 = vmatprep.subr.mxu0 0.0
    %727 = vmatpush1.xpose.msra.mxu0 0.0
    %728 = vmatprep.subr.mxu0 0.0
    %729 = vmatpush1.xpose.msra.mxu0 0.0
    %730 = vmatprep.mubr.f32.mxu0 0.0
    %731 = vmatmul.mubr.f32.gmra.mrb[0].mxu0 %v79
    %v732 = vpop.f32.mrb[0].mxu0
    %v733 = vadd.f32 0.0, %v732
    %v734 = vpop.f32.mrb[0].mxu0
    %735 = vmatprep.mubr.f32.mxu0 0.0
    %736 = vmatmul.mubr.f32.gmra.mrb[0].mxu0 %v82
    %v737 = vpop.f32.mrb[0].mxu0
    %v738 = vadd.f32 0.0, %v737
    %v739 = vpop.f32.mrb[0].mxu0
    %740 = vdwg.mxu0
    %s741 = scalar_lea.vmem [#allocation7], 16
    %v742 = vld [vmem:[%s741] sm:$0xff]
    %v743 = vld [vmem:[%s741 + $0x8] sm:$0xff]
    %v745 = vsel %vm77, %v742, 0
    %v748 = vsel %vm77, %v743, 0
    %750 = vmatprep.subr.mxu0 0.0
    %751 = vmatpush1.xpose.msra.mxu0 %v745
    %752 = vmatprep.subr.mxu0 0.0
    %753 = vmatpush1.xpose.msra.mxu0 %v748
    %754 = vmatprep.subr.mxu0 0.0
    %755 = vmatpush1.xpose.msra.mxu0 0.0
    %756 = vmatprep.subr.mxu0 0.0
    %757 = vmatpush1.xpose.msra.mxu0 0.0
    %758 = vmatprep.subr.mxu0 0.0
    %759 = vmatpush1.xpose.msra.mxu0 0.0
    %760 = vmatprep.subr.mxu0 0.0
    %761 = vmatpush1.xpose.msra.mxu0 0.0
    %762 = vmatprep.subr.mxu0 0.0
    %763 = vmatpush1.xpose.msra.mxu0 0.0
    %764 = vmatprep.subr.mxu0 0.0
    %765 = vmatpush1.xpose.msra.mxu0 0.0
    %766 = vmatprep.subr.mxu0 0.0
    %767 = vmatpush1.xpose.msra.mxu0 0.0
    %768 = vmatprep.subr.mxu0 0.0
    %769 = vmatpush1.xpose.msra.mxu0 0.0
    %770 = vmatprep.subr.mxu0 0.0
    %771 = vmatpush1.xpose.msra.mxu0 0.0
    %772 = vmatprep.subr.mxu0 0.0
    %773 = vmatpush1.xpose.msra.mxu0 0.0
    %774 = vmatprep.subr.mxu0 0.0
    %775 = vmatpush1.xpose.msra.mxu0 0.0
    %776 = vmatprep.subr.mxu0 0.0
    %777 = vmatpush1.xpose.msra.mxu0 0.0
    %778 = vmatprep.subr.mxu0 0.0
    %779 = vmatpush1.xpose.msra.mxu0 0.0
    %780 = vmatprep.subr.mxu0 0.0
    %781 = vmatpush1.xpose.msra.mxu0 0.0
    %782 = vmatprep.subr.mxu0 0.0
    %783 = vmatpush1.xpose.msra.mxu0 0.0
    %784 = vmatprep.subr.mxu0 0.0
    %785 = vmatpush1.xpose.msra.mxu0 0.0
    %786 = vmatprep.subr.mxu0 0.0
    %787 = vmatpush1.xpose.msra.mxu0 0.0
    %788 = vmatprep.subr.mxu0 0.0
    %789 = vmatpush1.xpose.msra.mxu0 0.0
    %790 = vmatprep.subr.mxu0 0.0
    %791 = vmatpush1.xpose.msra.mxu0 0.0
    %792 = vmatprep.subr.mxu0 0.0
    %793 = vmatpush1.xpose.msra.mxu0 0.0
    %794 = vmatprep.subr.mxu0 0.0
    %795 = vmatpush1.xpose.msra.mxu0 0.0
    %796 = vmatprep.subr.mxu0 0.0
    %797 = vmatpush1.xpose.msra.mxu0 0.0
    %798 = vmatprep.subr.mxu0 0.0
    %799 = vmatpush1.xpose.msra.mxu0 0.0
    %800 = vmatprep.subr.mxu0 0.0
    %801 = vmatpush1.xpose.msra.mxu0 0.0
    %802 = vmatprep.subr.mxu0 0.0
    %803 = vmatpush1.xpose.msra.mxu0 0.0
    %804 = vmatprep.subr.mxu0 0.0
    %805 = vmatpush1.xpose.msra.mxu0 0.0
    %806 = vmatprep.subr.mxu0 0.0
    %807 = vmatpush1.xpose.msra.mxu0 0.0
    %808 = vmatprep.subr.mxu0 0.0
    %809 = vmatpush1.xpose.msra.mxu0 0.0
    %810 = vmatprep.subr.mxu0 0.0
    %811 = vmatpush1.xpose.msra.mxu0 0.0
    %812 = vmatprep.subr.mxu0 0.0
    %813 = vmatpush1.xpose.msra.mxu0 0.0
    %814 = vmatprep.mubr.f32.mxu0 0.0
    %815 = vmatmul.mubr.f32.gmra.mrb[0].mxu0 %v79
    %v816 = vpop.f32.mrb[0].mxu0
    %v817 = vadd.f32 0.0, %v816
    %v818 = vpop.f32.mrb[0].mxu0
    %819 = vmatprep.mubr.f32.mxu0 0.0
    %820 = vmatmul.mubr.f32.gmra.mrb[0].mxu0 %v82
    %v821 = vpop.f32.mrb[0].mxu0
    %v822 = vadd.f32 0.0, %v821
    %v823 = vpop.f32.mrb[0].mxu0
    %824 = vdwg.mxu0
    %s825 = scalar_lea.vmem [#allocation8], 16
    %v826 = vld [vmem:[%s825] sm:$0xff]
    %v827 = vld [vmem:[%s825 + $0x8] sm:$0xff]
    %v829 = vsel %vm77, %v826, 0
    %v832 = vsel %vm77, %v827, 0
    %834 = vmatprep.subr.mxu0 0.0
    %835 = vmatpush1.xpose.msra.mxu0 %v829
    %836 = vmatprep.subr.mxu0 0.0
    %837 = vmatpush1.xpose.msra.mxu0 %v832
    %838 = vmatprep.subr.mxu0 0.0
    %839 = vmatpush1.xpose.msra.mxu0 0.0
    %840 = vmatprep.subr.mxu0 0.0
    %841 = vmatpush1.xpose.msra.mxu0 0.0
    %842 = vmatprep.subr.mxu0 0.0
    %843 = vmatpush1.xpose.msra.mxu0 0.0
    %844 = vmatprep.subr.mxu0 0.0
    %845 = vmatpush1.xpose.msra.mxu0 0.0
    %846 = vmatprep.subr.mxu0 0.0
    %847 = vmatpush1.xpose.msra.mxu0 0.0
    %848 = vmatprep.subr.mxu0 0.0
    %849 = vmatpush1.xpose.msra.mxu0 0.0
    %850 = vmatprep.subr.mxu0 0.0
    %851 = vmatpush1.xpose.msra.mxu0 0.0
    %852 = vmatprep.subr.mxu0 0.0
    %853 = vmatpush1.xpose.msra.mxu0 0.0
    %854 = vmatprep.subr.mxu0 0.0
    %855 = vmatpush1.xpose.msra.mxu0 0.0
    %856 = vmatprep.subr.mxu0 0.0
    %857 = vmatpush1.xpose.msra.mxu0 0.0
    %858 = vmatprep.subr.mxu0 0.0
    %859 = vmatpush1.xpose.msra.mxu0 0.0
    %860 = vmatprep.subr.mxu0 0.0
    %861 = vmatpush1.xpose.msra.mxu0 0.0
    %862 = vmatprep.subr.mxu0 0.0
    %863 = vmatpush1.xpose.msra.mxu0 0.0
    %864 = vmatprep.subr.mxu0 0.0
    %865 = vmatpush1.xpose.msra.mxu0 0.0
    %866 = vmatprep.subr.mxu0 0.0
    %867 = vmatpush1.xpose.msra.mxu0 0.0
    %868 = vmatprep.subr.mxu0 0.0
    %869 = vmatpush1.xpose.msra.mxu0 0.0
    %870 = vmatprep.subr.mxu0 0.0
    %871 = vmatpush1.xpose.msra.mxu0 0.0
    %872 = vmatprep.subr.mxu0 0.0
    %873 = vmatpush1.xpose.msra.mxu0 0.0
    %874 = vmatprep.subr.mxu0 0.0
    %875 = vmatpush1.xpose.msra.mxu0 0.0
    %876 = vmatprep.subr.mxu0 0.0
    %877 = vmatpush1.xpose.msra.mxu0 0.0
    %878 = vmatprep.subr.mxu0 0.0
    %879 = vmatpush1.xpose.msra.mxu0 0.0
    %880 = vmatprep.subr.mxu0 0.0
    %881 = vmatpush1.xpose.msra.mxu0 0.0
    %882 = vmatprep.subr.mxu0 0.0
    %883 = vmatpush1.xpose.msra.mxu0 0.0
    %884 = vmatprep.subr.mxu0 0.0
    %885 = vmatpush1.xpose.msra.mxu0 0.0
    %886 = vmatprep.subr.mxu0 0.0
    %887 = vmatpush1.xpose.msra.mxu0 0.0
    %888 = vmatprep.subr.mxu0 0.0
    %889 = vmatpush1.xpose.msra.mxu0 0.0
    %890 = vmatprep.subr.mxu0 0.0
    %891 = vmatpush1.xpose.msra.mxu0 0.0
    %892 = vmatprep.subr.mxu0 0.0
    %893 = vmatpush1.xpose.msra.mxu0 0.0
    %894 = vmatprep.subr.mxu0 0.0
    %895 = vmatpush1.xpose.msra.mxu0 0.0
    %896 = vmatprep.subr.mxu0 0.0
    %897 = vmatpush1.xpose.msra.mxu0 0.0
    %898 = vmatprep.mubr.f32.mxu0 0.0
    %899 = vmatmul.mubr.f32.gmra.mrb[0].mxu0 %v79
    %v900 = vpop.f32.mrb[0].mxu0
    %v901 = vadd.f32 0.0, %v900
    %v902 = vpop.f32.mrb[0].mxu0
    %903 = vmatprep.mubr.f32.mxu0 0.0
    %904 = vmatmul.mubr.f32.gmra.mrb[0].mxu0 %v82
    %v905 = vpop.f32.mrb[0].mxu0
    %v906 = vadd.f32 0.0, %v905
    %v907 = vpop.f32.mrb[0].mxu0
    %908 = vdwg.mxu0
    %v909 = vmul.f32 %v733, 0.25
    %v910 = vmul.f32 %v738, 0.25
    %v912 = vsel %vm333, %v909, 0
    %v915 = vsel %vm333, %v817, 0
    %917 = vmatprep.subr.mxu0 0.0
    %918 = vmatpush1.xpose.msra.mxu0 %v915
    %919 = vmatprep.subr.mxu0 0.0
    %920 = vmatpush1.xpose.msra.mxu0 0.0
    %921 = vmatprep.subr.mxu0 0.0
    %922 = vmatpush1.xpose.msra.mxu0 0.0
    %923 = vmatprep.subr.mxu0 0.0
    %924 = vmatpush1.xpose.msra.mxu0 0.0
    %925 = vmatprep.subr.mxu0 0.0
    %926 = vmatpush1.xpose.msra.mxu0 0.0
    %927 = vmatprep.subr.mxu0 0.0
    %928 = vmatpush1.xpose.msra.mxu0 0.0
    %929 = vmatprep.subr.mxu0 0.0
    %930 = vmatpush1.xpose.msra.mxu0 0.0
    %931 = vmatprep.subr.mxu0 0.0
    %932 = vmatpush1.xpose.msra.mxu0 0.0
    %933 = vmatprep.subr.mxu0 0.0
    %934 = vmatpush1.xpose.msra.mxu0 0.0
    %935 = vmatprep.subr.mxu0 0.0
    %936 = vmatpush1.xpose.msra.mxu0 0.0
    %937 = vmatprep.subr.mxu0 0.0
    %938 = vmatpush1.xpose.msra.mxu0 0.0
    %939 = vmatprep.subr.mxu0 0.0
    %940 = vmatpush1.xpose.msra.mxu0 0.0
    %941 = vmatprep.subr.mxu0 0.0
    %942 = vmatpush1.xpose.msra.mxu0 0.0
    %943 = vmatprep.subr.mxu0 0.0
    %944 = vmatpush1.xpose.msra.mxu0 0.0
    %945 = vmatprep.subr.mxu0 0.0
    %946 = vmatpush1.xpose.msra.mxu0 0.0
    %947 = vmatprep.subr.mxu0 0.0
    %948 = vmatpush1.xpose.msra.mxu0 0.0
    %949 = vmatprep.subr.mxu0 0.0
    %950 = vmatpush1.xpose.msra.mxu0 0.0
    %951 = vmatprep.subr.mxu0 0.0
    %952 = vmatpush1.xpose.msra.mxu0 0.0
    %953 = vmatprep.subr.mxu0 0.0
    %954 = vmatpush1.xpose.msra.mxu0 0.0
    %955 = vmatprep.subr.mxu0 0.0
    %956 = vmatpush1.xpose.msra.mxu0 0.0
    %957 = vmatprep.subr.mxu0 0.0
    %958 = vmatpush1.xpose.msra.mxu0 0.0
    %959 = vmatprep.subr.mxu0 0.0
    %960 = vmatpush1.xpose.msra.mxu0 0.0
    %961 = vmatprep.subr.mxu0 0.0
    %962 = vmatpush1.xpose.msra.mxu0 0.0
    %963 = vmatprep.subr.mxu0 0.0
    %964 = vmatpush1.xpose.msra.mxu0 0.0
    %965 = vmatprep.subr.mxu0 0.0
    %966 = vmatpush1.xpose.msra.mxu0 0.0
    %967 = vmatprep.subr.mxu0 0.0
    %968 = vmatpush1.xpose.msra.mxu0 0.0
    %969 = vmatprep.subr.mxu0 0.0
    %970 = vmatpush1.xpose.msra.mxu0 0.0
    %971 = vmatprep.subr.mxu0 0.0
    %972 = vmatpush1.xpose.msra.mxu0 0.0
    %973 = vmatprep.subr.mxu0 0.0
    %974 = vmatpush1.xpose.msra.mxu0 0.0
    %975 = vmatprep.subr.mxu0 0.0
    %976 = vmatpush1.xpose.msra.mxu0 0.0
    %977 = vmatprep.subr.mxu0 0.0
    %978 = vmatpush1.xpose.msra.mxu0 0.0
    %979 = vmatprep.subr.mxu0 0.0
    %980 = vmatpush1.xpose.msra.mxu0 0.0
    %981 = vmatprep.mubr.f32.mxu0 0.0
    %982 = vmatmul.mubr.f32.gmra.mrb[0].mxu0 %v912
    %v983 = vpop.f32.mrb[0].mxu0
    %v984 = vadd.f32 0.0, %v983
    %v985 = vpop.f32.mrb[0].mxu0
    %986 = vdwg.mxu0
    %v988 = vsel %vm333, %v910, 0
    %v991 = vsel %vm333, %v822, 0
    %993 = vmatprep.subr.mxu0 0.0
    %994 = vmatpush1.xpose.msra.mxu0 %v991
    %995 = vmatprep.subr.mxu0 0.0
    %996 = vmatpush1.xpose.msra.mxu0 0.0
    %997 = vmatprep.subr.mxu0 0.0
    %998 = vmatpush1.xpose.msra.mxu0 0.0
    %999 = vmatprep.subr.mxu0 0.0
    %1000 = vmatpush1.xpose.msra.mxu0 0.0
    %1001 = vmatprep.subr.mxu0 0.0
    %1002 = vmatpush1.xpose.msra.mxu0 0.0
    %1003 = vmatprep.subr.mxu0 0.0
    %1004 = vmatpush1.xpose.msra.mxu0 0.0
    %1005 = vmatprep.subr.mxu0 0.0
    %1006 = vmatpush1.xpose.msra.mxu0 0.0
    %1007 = vmatprep.subr.mxu0 0.0
    %1008 = vmatpush1.xpose.msra.mxu0 0.0
    %1009 = vmatprep.subr.mxu0 0.0
    %1010 = vmatpush1.xpose.msra.mxu0 0.0
    %1011 = vmatprep.subr.mxu0 0.0
    %1012 = vmatpush1.xpose.msra.mxu0 0.0
    %1013 = vmatprep.subr.mxu0 0.0
    %1014 = vmatpush1.xpose.msra.mxu0 0.0
    %1015 = vmatprep.subr.mxu0 0.0
    %1016 = vmatpush1.xpose.msra.mxu0 0.0
    %1017 = vmatprep.subr.mxu0 0.0
    %1018 = vmatpush1.xpose.msra.mxu0 0.0
    %1019 = vmatprep.subr.mxu0 0.0
    %1020 = vmatpush1.xpose.msra.mxu0 0.0
    %1021 = vmatprep.subr.mxu0 0.0
    %1022 = vmatpush1.xpose.msra.mxu0 0.0
    %1023 = vmatprep.subr.mxu0 0.0
    %1024 = vmatpush1.xpose.msra.mxu0 0.0
    %1025 = vmatprep.subr.mxu0 0.0
    %1026 = vmatpush1.xpose.msra.mxu0 0.0
    %1027 = vmatprep.subr.mxu0 0.0
    %1028 = vmatpush1.xpose.msra.mxu0 0.0
    %1029 = vmatprep.subr.mxu0 0.0
    %1030 = vmatpush1.xpose.msra.mxu0 0.0
    %1031 = vmatprep.subr.mxu0 0.0
    %1032 = vmatpush1.xpose.msra.mxu0 0.0
    %1033 = vmatprep.subr.mxu0 0.0
    %1034 = vmatpush1.xpose.msra.mxu0 0.0
    %1035 = vmatprep.subr.mxu0 0.0
    %1036 = vmatpush1.xpose.msra.mxu0 0.0
    %1037 = vmatprep.subr.mxu0 0.0
    %1038 = vmatpush1.xpose.msra.mxu0 0.0
    %1039 = vmatprep.subr.mxu0 0.0
    %1040 = vmatpush1.xpose.msra.mxu0 0.0
    %1041 = vmatprep.subr.mxu0 0.0
    %1042 = vmatpush1.xpose.msra.mxu0 0.0
    %1043 = vmatprep.subr.mxu0 0.0
    %1044 = vmatpush1.xpose.msra.mxu0 0.0
    %1045 = vmatprep.subr.mxu0 0.0
    %1046 = vmatpush1.xpose.msra.mxu0 0.0
    %1047 = vmatprep.subr.mxu0 0.0
    %1048 = vmatpush1.xpose.msra.mxu0 0.0
    %1049 = vmatprep.subr.mxu0 0.0
    %1050 = vmatpush1.xpose.msra.mxu0 0.0
    %1051 = vmatprep.subr.mxu0 0.0
    %1052 = vmatpush1.xpose.msra.mxu0 0.0
    %1053 = vmatprep.subr.mxu0 0.0
    %1054 = vmatpush1.xpose.msra.mxu0 0.0
    %1055 = vmatprep.subr.mxu0 0.0
    %1056 = vmatpush1.xpose.msra.mxu0 0.0
    %1057 = vmatprep.mubr.f32.mxu0 0.0
    %1058 = vmatmul.mubr.f32.gmra.mrb[0].mxu0 %v988
    %v1059 = vpop.f32.mrb[0].mxu0
    %v1060 = vadd.f32 0.0, %v1059
    %v1061 = vpop.f32.mrb[0].mxu0
    %1062 = vdwg.mxu0
    %v1063 = vsel %vm486, %v984, -inf
    %1064 = vmax.xlane.f32.xlu0 %v1063
    %v1065 = vpop.xlane.xlu0 %1064
    %v1066 = vsel %vm486, %v1060, -inf
    %1067 = vmax.xlane.f32.xlu0 %v1066
    %v1068 = vpop.xlane.xlu0 %1067
    %v1069 = vsub.f32 %v984, %v1065
    %v1070 = vsub.f32 %v1060, %v1068
    %v1071 = vmul.f32 %v1069, 1.442695
    %v1072 = vpow.pop %v1071
    %v1073 = vmul.f32 %v1070, 1.442695
    %v1074 = vpow.pop %v1073
    %v1075 = vsel %vm486, %v1072, 0.0
    %1076 = vadd.xlane.f32.xlu0 %v1075
    %v1077 = vpop.xlane.xlu0 %1076
    %v1078 = vsel %vm486, %v1074, 0.0
    %1079 = vadd.xlane.f32.xlu0 %v1078
    %v1080 = vpop.xlane.xlu0 %1079
    %v1081 = vrcp.pop %v1077
    %v1082 = vrcp.pop %v1080
    %v1083 = vmul.f32 %v1072, %v1081
    %v1084 = vmul.f32 %v1074, %v1082
    %v1086 = vsel %vm486, %v1083, 0
    %1088 = vmatprep.subr.mxu0 0.0
    %1089 = vmatpush1.msra.mxu0 %v901
    %1090 = vmatprep.subr.mxu0 0.0
    %1091 = vmatpush1.msra.mxu0 0.0
    %1092 = vmatprep.subr.mxu0 0.0
    %1093 = vmatpush1.msra.mxu0 0.0
    %1094 = vmatprep.subr.mxu0 0.0
    %1095 = vmatpush1.msra.mxu0 0.0
    %1096 = vmatprep.subr.mxu0 0.0
    %1097 = vmatpush1.msra.mxu0 0.0
    %1098 = vmatprep.subr.mxu0 0.0
    %1099 = vmatpush1.msra.mxu0 0.0
    %1100 = vmatprep.subr.mxu0 0.0
    %1101 = vmatpush1.msra.mxu0 0.0
    %1102 = vmatprep.subr.mxu0 0.0
    %1103 = vmatpush1.msra.mxu0 0.0
    %1104 = vmatprep.subr.mxu0 0.0
    %1105 = vmatpush1.msra.mxu0 0.0
    %1106 = vmatprep.subr.mxu0 0.0
    %1107 = vmatpush1.msra.mxu0 0.0
    %1108 = vmatprep.subr.mxu0 0.0
    %1109 = vmatpush1.msra.mxu0 0.0
    %1110 = vmatprep.subr.mxu0 0.0
    %1111 = vmatpush1.msra.mxu0 0.0
    %1112 = vmatprep.subr.mxu0 0.0
    %1113 = vmatpush1.msra.mxu0 0.0
    %1114 = vmatprep.subr.mxu0 0.0
    %1115 = vmatpush1.msra.mxu0 0.0
    %1116 = vmatprep.subr.mxu0 0.0
    %1117 = vmatpush1.msra.mxu0 0.0
    %1118 = vmatprep.subr.mxu0 0.0
    %1119 = vmatpush1.msra.mxu0 0.0
    %1120 = vmatprep.subr.mxu0 0.0
    %1121 = vmatpush1.msra.mxu0 0.0
    %1122 = vmatprep.subr.mxu0 0.0
    %1123 = vmatpush1.msra.mxu0 0.0
    %1124 = vmatprep.subr.mxu0 0.0
    %1125 = vmatpush1.msra.mxu0 0.0
    %1126 = vmatprep.subr.mxu0 0.0
    %1127 = vmatpush1.msra.mxu0 0.0
    %1128 = vmatprep.subr.mxu0 0.0
    %1129 = vmatpush1.msra.mxu0 0.0
    %1130 = vmatprep.subr.mxu0 0.0
    %1131 = vmatpush1.msra.mxu0 0.0
    %1132 = vmatprep.subr.mxu0 0.0
    %1133 = vmatpush1.msra.mxu0 0.0
    %1134 = vmatprep.subr.mxu0 0.0
    %1135 = vmatpush1.msra.mxu0 0.0
    %1136 = vmatprep.subr.mxu0 0.0
    %1137 = vmatpush1.msra.mxu0 0.0
    %1138 = vmatprep.subr.mxu0 0.0
    %1139 = vmatpush1.msra.mxu0 0.0
    %1140 = vmatprep.subr.mxu0 0.0
    %1141 = vmatpush1.msra.mxu0 0.0
    %1142 = vmatprep.subr.mxu0 0.0
    %1143 = vmatpush1.msra.mxu0 0.0
    %1144 = vmatprep.subr.mxu0 0.0
    %1145 = vmatpush1.msra.mxu0 0.0
    %1146 = vmatprep.subr.mxu0 0.0
    %1147 = vmatpush1.msra.mxu0 0.0
    %1148 = vmatprep.subr.mxu0 0.0
    %1149 = vmatpush1.msra.mxu0 0.0
    %1150 = vmatprep.subr.mxu0 0.0
    %1151 = vmatpush1.msra.mxu0 0.0
    %1152 = vmatprep.mubr.f32.mxu0 0.0
    %1153 = vmatmul.mubr.f32.gmra.mrb[0].mxu0 %v1086
    %v1154 = vpop.f32.mrb[0].mxu0
    %v1155 = vadd.f32 0.0, %v1154
    %v1156 = vpop.f32.mrb[0].mxu0
    %1157 = vdwg.mxu0
    %v1159 = vsel %vm486, %v1084, 0
    %1161 = vmatprep.subr.mxu0 0.0
    %1162 = vmatpush1.msra.mxu0 %v906
    %1163 = vmatprep.subr.mxu0 0.0
    %1164 = vmatpush1.msra.mxu0 0.0
    %1165 = vmatprep.subr.mxu0 0.0
    %1166 = vmatpush1.msra.mxu0 0.0
    %1167 = vmatprep.subr.mxu0 0.0
    %1168 = vmatpush1.msra.mxu0 0.0
    %1169 = vmatprep.subr.mxu0 0.0
    %1170 = vmatpush1.msra.mxu0 0.0
    %1171 = vmatprep.subr.mxu0 0.0
    %1172 = vmatpush1.msra.mxu0 0.0
    %1173 = vmatprep.subr.mxu0 0.0
    %1174 = vmatpush1.msra.mxu0 0.0
    %1175 = vmatprep.subr.mxu0 0.0
    %1176 = vmatpush1.msra.mxu0 0.0
    %1177 = vmatprep.subr.mxu0 0.0
    %1178 = vmatpush1.msra.mxu0 0.0
    %1179 = vmatprep.subr.mxu0 0.0
    %1180 = vmatpush1.msra.mxu0 0.0
    %1181 = vmatprep.subr.mxu0 0.0
    %1182 = vmatpush1.msra.mxu0 0.0
    %1183 = vmatprep.subr.mxu0 0.0
    %1184 = vmatpush1.msra.mxu0 0.0
    %1185 = vmatprep.subr.mxu0 0.0
    %1186 = vmatpush1.msra.mxu0 0.0
    %1187 = vmatprep.subr.mxu0 0.0
    %1188 = vmatpush1.msra.mxu0 0.0
    %1189 = vmatprep.subr.mxu0 0.0
    %1190 = vmatpush1.msra.mxu0 0.0
    %1191 = vmatprep.subr.mxu0 0.0
    %1192 = vmatpush1.msra.mxu0 0.0
    %1193 = vmatprep.subr.mxu0 0.0
    %1194 = vmatpush1.msra.mxu0 0.0
    %1195 = vmatprep.subr.mxu0 0.0
    %1196 = vmatpush1.msra.mxu0 0.0
    %1197 = vmatprep.subr.mxu0 0.0
    %1198 = vmatpush1.msra.mxu0 0.0
    %1199 = vmatprep.subr.mxu0 0.0
    %1200 = vmatpush1.msra.mxu0 0.0
    %1201 = vmatprep.subr.mxu0 0.0
    %1202 = vmatpush1.msra.mxu0 0.0
    %1203 = vmatprep.subr.mxu0 0.0
    %1204 = vmatpush1.msra.mxu0 0.0
    %1205 = vmatprep.subr.mxu0 0.0
    %1206 = vmatpush1.msra.mxu0 0.0
    %1207 = vmatprep.subr.mxu0 0.0
    %1208 = vmatpush1.msra.mxu0 0.0
    %1209 = vmatprep.subr.mxu0 0.0
    %1210 = vmatpush1.msra.mxu0 0.0
    %1211 = vmatprep.subr.mxu0 0.0
    %1212 = vmatpush1.msra.mxu0 0.0
    %1213 = vmatprep.subr.mxu0 0.0
    %1214 = vmatpush1.msra.mxu0 0.0
    %1215 = vmatprep.subr.mxu0 0.0
    %1216 = vmatpush1.msra.mxu0 0.0
    %1217 = vmatprep.subr.mxu0 0.0
    %1218 = vmatpush1.msra.mxu0 0.0
    %1219 = vmatprep.subr.mxu0 0.0
    %1220 = vmatpush1.msra.mxu0 0.0
    %1221 = vmatprep.subr.mxu0 0.0
    %1222 = vmatpush1.msra.mxu0 0.0
    %1223 = vmatprep.subr.mxu0 0.0
    %1224 = vmatpush1.msra.mxu0 0.0
    %1225 = vmatprep.mubr.f32.mxu0 0.0
    %1226 = vmatmul.mubr.f32.gmra.mrb[0].mxu0 %v1159
    %v1227 = vpop.f32.mrb[0].mxu0
    %v1228 = vadd.f32 0.0, %v1227
    %v1229 = vpop.f32.mrb[0].mxu0
    %1230 = vdwg.mxu0
    %1233 = vrot.lane.b32.xlu0 %v1155, 16
    %v1234 = vpop.permute.xlu0 %1233
    %1235 = vrot.lane.b32.xlu0 %v1228, 16
    %v1236 = vpop.permute.xlu0 %1235
    %vm1239 = vcmask 261248
    %1240 = vst.msk [vmem:[#allocation10] sm:$0xff] %vm1239, %v1234
    %1241 = vst.msk [vmem:[#allocation10 + $0x8] sm:$0xff] %vm1239, %v1236
    %s1242 = scalar_lea.vmem [#allocation5], 32
    %v1243 = vld [vmem:[%s1242] sm:$0xff]
    %v1244 = vld [vmem:[%s1242 + $0x8] sm:$0xff]
    %v1246 = vsel %vm77, %v1243, 0
    %v1249 = vsel %vm77, %v1244, 0
    %1251 = vmatprep.subr.mxu0 0.0
    %1252 = vmatpush1.xpose.msra.mxu0 %v1246
    %1253 = vmatprep.subr.mxu0 0.0
    %1254 = vmatpush1.xpose.msra.mxu0 %v1249
    %1255 = vmatprep.subr.mxu0 0.0
    %1256 = vmatpush1.xpose.msra.mxu0 0.0
    %1257 = vmatprep.subr.mxu0 0.0
    %1258 = vmatpush1.xpose.msra.mxu0 0.0
    %1259 = vmatprep.subr.mxu0 0.0
    %1260 = vmatpush1.xpose.msra.mxu0 0.0
    %1261 = vmatprep.subr.mxu0 0.0
    %1262 = vmatpush1.xpose.msra.mxu0 0.0
    %1263 = vmatprep.subr.mxu0 0.0
    %1264 = vmatpush1.xpose.msra.mxu0 0.0
    %1265 = vmatprep.subr.mxu0 0.0
    %1266 = vmatpush1.xpose.msra.mxu0 0.0
    %1267 = vmatprep.subr.mxu0 0.0
    %1268 = vmatpush1.xpose.msra.mxu0 0.0
    %1269 = vmatprep.subr.mxu0 0.0
    %1270 = vmatpush1.xpose.msra.mxu0 0.0
    %1271 = vmatprep.subr.mxu0 0.0
    %1272 = vmatpush1.xpose.msra.mxu0 0.0
    %1273 = vmatprep.subr.mxu0 0.0
    %1274 = vmatpush1.xpose.msra.mxu0 0.0
    %1275 = vmatprep.subr.mxu0 0.0
    %1276 = vmatpush1.xpose.msra.mxu0 0.0
    %1277 = vmatprep.subr.mxu0 0.0
    %1278 = vmatpush1.xpose.msra.mxu0 0.0
    %1279 = vmatprep.subr.mxu0 0.0
    %1280 = vmatpush1.xpose.msra.mxu0 0.0
    %1281 = vmatprep.subr.mxu0 0.0
    %1282 = vmatpush1.xpose.msra.mxu0 0.0
    %1283 = vmatprep.subr.mxu0 0.0
    %1284 = vmatpush1.xpose.msra.mxu0 0.0
    %1285 = vmatprep.subr.mxu0 0.0
    %1286 = vmatpush1.xpose.msra.mxu0 0.0
    %1287 = vmatprep.subr.mxu0 0.0
    %1288 = vmatpush1.xpose.msra.mxu0 0.0
    %1289 = vmatprep.subr.mxu0 0.0
    %1290 = vmatpush1.xpose.msra.mxu0 0.0
    %1291 = vmatprep.subr.mxu0 0.0
    %1292 = vmatpush1.xpose.msra.mxu0 0.0
    %1293 = vmatprep.subr.mxu0 0.0
    %1294 = vmatpush1.xpose.msra.mxu0 0.0
    %1295 = vmatprep.subr.mxu0 0.0
    %1296 = vmatpush1.xpose.msra.mxu0 0.0
    %1297 = vmatprep.subr.mxu0 0.0
    %1298 = vmatpush1.xpose.msra.mxu0 0.0
    %1299 = vmatprep.subr.mxu0 0.0
    %1300 = vmatpush1.xpose.msra.mxu0 0.0
    %1301 = vmatprep.subr.mxu0 0.0
    %1302 = vmatpush1.xpose.msra.mxu0 0.0
    %1303 = vmatprep.subr.mxu0 0.0
    %1304 = vmatpush1.xpose.msra.mxu0 0.0
    %1305 = vmatprep.subr.mxu0 0.0
    %1306 = vmatpush1.xpose.msra.mxu0 0.0
    %1307 = vmatprep.subr.mxu0 0.0
    %1308 = vmatpush1.xpose.msra.mxu0 0.0
    %1309 = vmatprep.subr.mxu0 0.0
    %1310 = vmatpush1.xpose.msra.mxu0 0.0
    %1311 = vmatprep.subr.mxu0 0.0
    %1312 = vmatpush1.xpose.msra.mxu0 0.0
    %1313 = vmatprep.subr.mxu0 0.0
    %1314 = vmatpush1.xpose.msra.mxu0 0.0
    %1315 = vmatprep.mubr.f32.mxu0 0.0
    %1316 = vmatmul.mubr.f32.gmra.mrb[0].mxu0 %v79
    %v1317 = vpop.f32.mrb[0].mxu0
    %v1318 = vadd.f32 0.0, %v1317
    %v1319 = vpop.f32.mrb[0].mxu0
    %1320 = vmatprep.mubr.f32.mxu0 0.0
    %1321 = vmatmul.mubr.f32.gmra.mrb[0].mxu0 %v82
    %v1322 = vpop.f32.mrb[0].mxu0
    %v1323 = vadd.f32 0.0, %v1322
    %v1324 = vpop.f32.mrb[0].mxu0
    %1325 = vdwg.mxu0
    %s1326 = scalar_lea.vmem [#allocation7], 32
    %v1327 = vld [vmem:[%s1326] sm:$0xff]
    %v1328 = vld [vmem:[%s1326 + $0x8] sm:$0xff]
    %v1330 = vsel %vm77, %v1327, 0
    %v1333 = vsel %vm77, %v1328, 0
    %1335 = vmatprep.subr.mxu0 0.0
    %1336 = vmatpush1.xpose.msra.mxu0 %v1330
    %1337 = vmatprep.subr.mxu0 0.0
    %1338 = vmatpush1.xpose.msra.mxu0 %v1333
    %1339 = vmatprep.subr.mxu0 0.0
    %1340 = vmatpush1.xpose.msra.mxu0 0.0
    %1341 = vmatprep.subr.mxu0 0.0
    %1342 = vmatpush1.xpose.msra.mxu0 0.0
    %1343 = vmatprep.subr.mxu0 0.0
    %1344 = vmatpush1.xpose.msra.mxu0 0.0
    %1345 = vmatprep.subr.mxu0 0.0
    %1346 = vmatpush1.xpose.msra.mxu0 0.0
    %1347 = vmatprep.subr.mxu0 0.0
    %1348 = vmatpush1.xpose.msra.mxu0 0.0
    %1349 = vmatprep.subr.mxu0 0.0
    %1350 = vmatpush1.xpose.msra.mxu0 0.0
    %1351 = vmatprep.subr.mxu0 0.0
    %1352 = vmatpush1.xpose.msra.mxu0 0.0
    %1353 = vmatprep.subr.mxu0 0.0
    %1354 = vmatpush1.xpose.msra.mxu0 0.0
    %1355 = vmatprep.subr.mxu0 0.0
    %1356 = vmatpush1.xpose.msra.mxu0 0.0
    %1357 = vmatprep.subr.mxu0 0.0
    %1358 = vmatpush1.xpose.msra.mxu0 0.0
    %1359 = vmatprep.subr.mxu0 0.0
    %1360 = vmatpush1.xpose.msra.mxu0 0.0
    %1361 = vmatprep.subr.mxu0 0.0
    %1362 = vmatpush1.xpose.msra.mxu0 0.0
    %1363 = vmatprep.subr.mxu0 0.0
    %1364 = vmatpush1.xpose.msra.mxu0 0.0
    %1365 = vmatprep.subr.mxu0 0.0
    %1366 = vmatpush1.xpose.msra.mxu0 0.0
    %1367 = vmatprep.subr.mxu0 0.0
    %1368 = vmatpush1.xpose.msra.mxu0 0.0
    %1369 = vmatprep.subr.mxu0 0.0
    %1370 = vmatpush1.xpose.msra.mxu0 0.0
    %1371 = vmatprep.subr.mxu0 0.0
    %1372 = vmatpush1.xpose.msra.mxu0 0.0
    %1373 = vmatprep.subr.mxu0 0.0
    %1374 = vmatpush1.xpose.msra.mxu0 0.0
    %1375 = vmatprep.subr.mxu0 0.0
    %1376 = vmatpush1.xpose.msra.mxu0 0.0
    %1377 = vmatprep.subr.mxu0 0.0
    %1378 = vmatpush1.xpose.msra.mxu0 0.0
    %1379 = vmatprep.subr.mxu0 0.0
    %1380 = vmatpush1.xpose.msra.mxu0 0.0
    %1381 = vmatprep.subr.mxu0 0.0
    %1382 = vmatpush1.xpose.msra.mxu0 0.0
    %1383 = vmatprep.subr.mxu0 0.0
    %1384 = vmatpush1.xpose.msra.mxu0 0.0
    %1385 = vmatprep.subr.mxu0 0.0
    %1386 = vmatpush1.xpose.msra.mxu0 0.0
    %1387 = vmatprep.subr.mxu0 0.0
    %1388 = vmatpush1.xpose.msra.mxu0 0.0
    %1389 = vmatprep.subr.mxu0 0.0
    %1390 = vmatpush1.xpose.msra.mxu0 0.0
    %1391 = vmatprep.subr.mxu0 0.0
    %1392 = vmatpush1.xpose.msra.mxu0 0.0
    %1393 = vmatprep.subr.mxu0 0.0
    %1394 = vmatpush1.xpose.msra.mxu0 0.0
    %1395 = vmatprep.subr.mxu0 0.0
    %1396 = vmatpush1.xpose.msra.mxu0 0.0
    %1397 = vmatprep.subr.mxu0 0.0
    %1398 = vmatpush1.xpose.msra.mxu0 0.0
    %1399 = vmatprep.mubr.f32.mxu0 0.0
    %1400 = vmatmul.mubr.f32.gmra.mrb[0].mxu0 %v79
    %v1401 = vpop.f32.mrb[0].mxu0
    %v1402 = vadd.f32 0.0, %v1401
    %v1403 = vpop.f32.mrb[0].mxu0
    %1404 = vmatprep.mubr.f32.mxu0 0.0
    %1405 = vmatmul.mubr.f32.gmra.mrb[0].mxu0 %v82
    %v1406 = vpop.f32.mrb[0].mxu0
    %v1407 = vadd.f32 0.0, %v1406
    %v1408 = vpop.f32.mrb[0].mxu0
    %1409 = vdwg.mxu0
    %s1410 = scalar_lea.vmem [#allocation8], 32
    %v1411 = vld [vmem:[%s1410] sm:$0xff]
    %v1412 = vld [vmem:[%s1410 + $0x8] sm:$0xff]
    %v1414 = vsel %vm77, %v1411, 0
    %v1417 = vsel %vm77, %v1412, 0
    %1419 = vmatprep.subr.mxu0 0.0
    %1420 = vmatpush1.xpose.msra.mxu0 %v1414
    %1421 = vmatprep.subr.mxu0 0.0
    %1422 = vmatpush1.xpose.msra.mxu0 %v1417
    %1423 = vmatprep.subr.mxu0 0.0
    %1424 = vmatpush1.xpose.msra.mxu0 0.0
    %1425 = vmatprep.subr.mxu0 0.0
    %1426 = vmatpush1.xpose.msra.mxu0 0.0
    %1427 = vmatprep.subr.mxu0 0.0
    %1428 = vmatpush1.xpose.msra.mxu0 0.0
    %1429 = vmatprep.subr.mxu0 0.0
    %1430 = vmatpush1.xpose.msra.mxu0 0.0
    %1431 = vmatprep.subr.mxu0 0.0
    %1432 = vmatpush1.xpose.msra.mxu0 0.0
    %1433 = vmatprep.subr.mxu0 0.0
    %1434 = vmatpush1.xpose.msra.mxu0 0.0
    %1435 = vmatprep.subr.mxu0 0.0
    %1436 = vmatpush1.xpose.msra.mxu0 0.0
    %1437 = vmatprep.subr.mxu0 0.0
    %1438 = vmatpush1.xpose.msra.mxu0 0.0
    %1439 = vmatprep.subr.mxu0 0.0
    %1440 = vmatpush1.xpose.msra.mxu0 0.0
    %1441 = vmatprep.subr.mxu0 0.0
    %1442 = vmatpush1.xpose.msra.mxu0 0.0
    %1443 = vmatprep.subr.mxu0 0.0
    %1444 = vmatpush1.xpose.msra.mxu0 0.0
    %1445 = vmatprep.subr.mxu0 0.0
    %1446 = vmatpush1.xpose.msra.mxu0 0.0
    %1447 = vmatprep.subr.mxu0 0.0
    %1448 = vmatpush1.xpose.msra.mxu0 0.0
    %1449 = vmatprep.subr.mxu0 0.0
    %1450 = vmatpush1.xpose.msra.mxu0 0.0
    %1451 = vmatprep.subr.mxu0 0.0
    %1452 = vmatpush1.xpose.msra.mxu0 0.0
    %1453 = vmatprep.subr.mxu0 0.0
    %1454 = vmatpush1.xpose.msra.mxu0 0.0
    %1455 = vmatprep.subr.mxu0 0.0
    %1456 = vmatpush1.xpose.msra.mxu0 0.0
    %1457 = vmatprep.subr.mxu0 0.0
    %1458 = vmatpush1.xpose.msra.mxu0 0.0
    %1459 = vmatprep.subr.mxu0 0.0
    %1460 = vmatpush1.xpose.msra.mxu0 0.0
    %1461 = vmatprep.subr.mxu0 0.0
    %1462 = vmatpush1.xpose.msra.mxu0 0.0
    %1463 = vmatprep.subr.mxu0 0.0
    %1464 = vmatpush1.xpose.msra.mxu0 0.0
    %1465 = vmatprep.subr.mxu0 0.0
    %1466 = vmatpush1.xpose.msra.mxu0 0.0
    %1467 = vmatprep.subr.mxu0 0.0
    %1468 = vmatpush1.xpose.msra.mxu0 0.0
    %1469 = vmatprep.subr.mxu0 0.0
    %1470 = vmatpush1.xpose.msra.mxu0 0.0
    %1471 = vmatprep.subr.mxu0 0.0
    %1472 = vmatpush1.xpose.msra.mxu0 0.0
    %1473 = vmatprep.subr.mxu0 0.0
    %1474 = vmatpush1.xpose.msra.mxu0 0.0
    %1475 = vmatprep.subr.mxu0 0.0
    %1476 = vmatpush1.xpose.msra.mxu0 0.0
    %1477 = vmatprep.subr.mxu0 0.0
    %1478 = vmatpush1.xpose.msra.mxu0 0.0
    %1479 = vmatprep.subr.mxu0 0.0
    %1480 = vmatpush1.xpose.msra.mxu0 0.0
    %1481 = vmatprep.subr.mxu0 0.0
    %1482 = vmatpush1.xpose.msra.mxu0 0.0
    %1483 = vmatprep.mubr.f32.mxu0 0.0
    %1484 = vmatmul.mubr.f32.gmra.mrb[0].mxu0 %v79
    %v1485 = vpop.f32.mrb[0].mxu0
    %v1486 = vadd.f32 0.0, %v1485
    %v1487 = vpop.f32.mrb[0].mxu0
    %1488 = vmatprep.mubr.f32.mxu0 0.0
    %1489 = vmatmul.mubr.f32.gmra.mrb[0].mxu0 %v82
    %v1490 = vpop.f32.mrb[0].mxu0
    %v1491 = vadd.f32 0.0, %v1490
    %v1492 = vpop.f32.mrb[0].mxu0
    %1493 = vdwg.mxu0
    %v1494 = vmul.f32 %v1318, 0.25
    %v1495 = vmul.f32 %v1323, 0.25
    %v1497 = vsel %vm333, %v1494, 0
    %v1500 = vsel %vm333, %v1402, 0
    %1502 = vmatprep.subr.mxu0 0.0
    %1503 = vmatpush1.xpose.msra.mxu0 %v1500
    %1504 = vmatprep.subr.mxu0 0.0
    %1505 = vmatpush1.xpose.msra.mxu0 0.0
    %1506 = vmatprep.subr.mxu0 0.0
    %1507 = vmatpush1.xpose.msra.mxu0 0.0
    %1508 = vmatprep.subr.mxu0 0.0
    %1509 = vmatpush1.xpose.msra.mxu0 0.0
    %1510 = vmatprep.subr.mxu0 0.0
    %1511 = vmatpush1.xpose.msra.mxu0 0.0
    %1512 = vmatprep.subr.mxu0 0.0
    %1513 = vmatpush1.xpose.msra.mxu0 0.0
    %1514 = vmatprep.subr.mxu0 0.0
    %1515 = vmatpush1.xpose.msra.mxu0 0.0
    %1516 = vmatprep.subr.mxu0 0.0
    %1517 = vmatpush1.xpose.msra.mxu0 0.0
    %1518 = vmatprep.subr.mxu0 0.0
    %1519 = vmatpush1.xpose.msra.mxu0 0.0
    %1520 = vmatprep.subr.mxu0 0.0
    %1521 = vmatpush1.xpose.msra.mxu0 0.0
    %1522 = vmatprep.subr.mxu0 0.0
    %1523 = vmatpush1.xpose.msra.mxu0 0.0
    %1524 = vmatprep.subr.mxu0 0.0
    %1525 = vmatpush1.xpose.msra.mxu0 0.0
    %1526 = vmatprep.subr.mxu0 0.0
    %1527 = vmatpush1.xpose.msra.mxu0 0.0
    %1528 = vmatprep.subr.mxu0 0.0
    %1529 = vmatpush1.xpose.msra.mxu0 0.0
    %1530 = vmatprep.subr.mxu0 0.0
    %1531 = vmatpush1.xpose.msra.mxu0 0.0
    %1532 = vmatprep.subr.mxu0 0.0
    %1533 = vmatpush1.xpose.msra.mxu0 0.0
    %1534 = vmatprep.subr.mxu0 0.0
    %1535 = vmatpush1.xpose.msra.mxu0 0.0
    %1536 = vmatprep.subr.mxu0 0.0
    %1537 = vmatpush1.xpose.msra.mxu0 0.0
    %1538 = vmatprep.subr.mxu0 0.0
    %1539 = vmatpush1.xpose.msra.mxu0 0.0
    %1540 = vmatprep.subr.mxu0 0.0
    %1541 = vmatpush1.xpose.msra.mxu0 0.0
    %1542 = vmatprep.subr.mxu0 0.0
    %1543 = vmatpush1.xpose.msra.mxu0 0.0
    %1544 = vmatprep.subr.mxu0 0.0
    %1545 = vmatpush1.xpose.msra.mxu0 0.0
    %1546 = vmatprep.subr.mxu0 0.0
    %1547 = vmatpush1.xpose.msra.mxu0 0.0
    %1548 = vmatprep.subr.mxu0 0.0
    %1549 = vmatpush1.xpose.msra.mxu0 0.0
    %1550 = vmatprep.subr.mxu0 0.0
    %1551 = vmatpush1.xpose.msra.mxu0 0.0
    %1552 = vmatprep.subr.mxu0 0.0
    %1553 = vmatpush1.xpose.msra.mxu0 0.0
    %1554 = vmatprep.subr.mxu0 0.0
    %1555 = vmatpush1.xpose.msra.mxu0 0.0
    %1556 = vmatprep.subr.mxu0 0.0
    %1557 = vmatpush1.xpose.msra.mxu0 0.0
    %1558 = vmatprep.subr.mxu0 0.0
    %1559 = vmatpush1.xpose.msra.mxu0 0.0
    %1560 = vmatprep.subr.mxu0 0.0
    %1561 = vmatpush1.xpose.msra.mxu0 0.0
    %1562 = vmatprep.subr.mxu0 0.0
    %1563 = vmatpush1.xpose.msra.mxu0 0.0
    %1564 = vmatprep.subr.mxu0 0.0
    %1565 = vmatpush1.xpose.msra.mxu0 0.0
    %1566 = vmatprep.mubr.f32.mxu0 0.0
    %1567 = vmatmul.mubr.f32.gmra.mrb[0].mxu0 %v1497
    %v1568 = vpop.f32.mrb[0].mxu0
    %v1569 = vadd.f32 0.0, %v1568
    %v1570 = vpop.f32.mrb[0].mxu0
    %1571 = vdwg.mxu0
    %v1573 = vsel %vm333, %v1495, 0
    %v1576 = vsel %vm333, %v1407, 0
    %1578 = vmatprep.subr.mxu0 0.0
    %1579 = vmatpush1.xpose.msra.mxu0 %v1576
    %1580 = vmatprep.subr.mxu0 0.0
    %1581 = vmatpush1.xpose.msra.mxu0 0.0
    %1582 = vmatprep.subr.mxu0 0.0
    %1583 = vmatpush1.xpose.msra.mxu0 0.0
    %1584 = vmatprep.subr.mxu0 0.0
    %1585 = vmatpush1.xpose.msra.mxu0 0.0
    %1586 = vmatprep.subr.mxu0 0.0
    %1587 = vmatpush1.xpose.msra.mxu0 0.0
    %1588 = vmatprep.subr.mxu0 0.0
    %1589 = vmatpush1.xpose.msra.mxu0 0.0
    %1590 = vmatprep.subr.mxu0 0.0
    %1591 = vmatpush1.xpose.msra.mxu0 0.0
    %1592 = vmatprep.subr.mxu0 0.0
    %1593 = vmatpush1.xpose.msra.mxu0 0.0
    %1594 = vmatprep.subr.mxu0 0.0
    %1595 = vmatpush1.xpose.msra.mxu0 0.0
    %1596 = vmatprep.subr.mxu0 0.0
    %1597 = vmatpush1.xpose.msra.mxu0 0.0
    %1598 = vmatprep.subr.mxu0 0.0
    %1599 = vmatpush1.xpose.msra.mxu0 0.0
    %1600 = vmatprep.subr.mxu0 0.0
    %1601 = vmatpush1.xpose.msra.mxu0 0.0
    %1602 = vmatprep.subr.mxu0 0.0
    %1603 = vmatpush1.xpose.msra.mxu0 0.0
    %1604 = vmatprep.subr.mxu0 0.0
    %1605 = vmatpush1.xpose.msra.mxu0 0.0
    %1606 = vmatprep.subr.mxu0 0.0
    %1607 = vmatpush1.xpose.msra.mxu0 0.0
    %1608 = vmatprep.subr.mxu0 0.0
    %1609 = vmatpush1.xpose.msra.mxu0 0.0
    %1610 = vmatprep.subr.mxu0 0.0
    %1611 = vmatpush1.xpose.msra.mxu0 0.0
    %1612 = vmatprep.subr.mxu0 0.0
    %1613 = vmatpush1.xpose.msra.mxu0 0.0
    %1614 = vmatprep.subr.mxu0 0.0
    %1615 = vmatpush1.xpose.msra.mxu0 0.0
    %1616 = vmatprep.subr.mxu0 0.0
    %1617 = vmatpush1.xpose.msra.mxu0 0.0
    %1618 = vmatprep.subr.mxu0 0.0
    %1619 = vmatpush1.xpose.msra.mxu0 0.0
    %1620 = vmatprep.subr.mxu0 0.0
    %1621 = vmatpush1.xpose.msra.mxu0 0.0
    %1622 = vmatprep.subr.mxu0 0.0
    %1623 = vmatpush1.xpose.msra.mxu0 0.0
    %1624 = vmatprep.subr.mxu0 0.0
    %1625 = vmatpush1.xpose.msra.mxu0 0.0
    %1626 = vmatprep.subr.mxu0 0.0
    %1627 = vmatpush1.xpose.msra.mxu0 0.0
    %1628 = vmatprep.subr.mxu0 0.0
    %1629 = vmatpush1.xpose.msra.mxu0 0.0
    %1630 = vmatprep.subr.mxu0 0.0
    %1631 = vmatpush1.xpose.msra.mxu0 0.0
    %1632 = vmatprep.subr.mxu0 0.0
    %1633 = vmatpush1.xpose.msra.mxu0 0.0
    %1634 = vmatprep.subr.mxu0 0.0
    %1635 = vmatpush1.xpose.msra.mxu0 0.0
    %1636 = vmatprep.subr.mxu0 0.0
    %1637 = vmatpush1.xpose.msra.mxu0 0.0
    %1638 = vmatprep.subr.mxu0 0.0
    %1639 = vmatpush1.xpose.msra.mxu0 0.0
    %1640 = vmatprep.subr.mxu0 0.0
    %1641 = vmatpush1.xpose.msra.mxu0 0.0
    %1642 = vmatprep.mubr.f32.mxu0 0.0
    %1643 = vmatmul.mubr.f32.gmra.mrb[0].mxu0 %v1573
    %v1644 = vpop.f32.mrb[0].mxu0
    %v1645 = vadd.f32 0.0, %v1644
    %v1646 = vpop.f32.mrb[0].mxu0
    %1647 = vdwg.mxu0
    %v1648 = vsel %vm486, %v1569, -inf
    %1649 = vmax.xlane.f32.xlu0 %v1648
    %v1650 = vpop.xlane.xlu0 %1649
    %v1651 = vsel %vm486, %v1645, -inf
    %1652 = vmax.xlane.f32.xlu0 %v1651
    %v1653 = vpop.xlane.xlu0 %1652
    %v1654 = vsub.f32 %v1569, %v1650
    %v1655 = vsub.f32 %v1645, %v1653
    %v1656 = vmul.f32 %v1654, 1.442695
    %v1657 = vpow.pop %v1656
    %v1658 = vmul.f32 %v1655, 1.442695
    %v1659 = vpow.pop %v1658
    %v1660 = vsel %vm486, %v1657, 0.0
    %1661 = vadd.xlane.f32.xlu0 %v1660
    %v1662 = vpop.xlane.xlu0 %1661
    %v1663 = vsel %vm486, %v1659, 0.0
    %1664 = vadd.xlane.f32.xlu0 %v1663
    %v1665 = vpop.xlane.xlu0 %1664
    %v1666 = vrcp.pop %v1662
    %v1667 = vrcp.pop %v1665
    %v1668 = vmul.f32 %v1657, %v1666
    %v1669 = vmul.f32 %v1659, %v1667
    %v1671 = vsel %vm486, %v1668, 0
    %1673 = vmatprep.subr.mxu0 0.0
    %1674 = vmatpush1.msra.mxu0 %v1486
    %1675 = vmatprep.subr.mxu0 0.0
    %1676 = vmatpush1.msra.mxu0 0.0
    %1677 = vmatprep.subr.mxu0 0.0
    %1678 = vmatpush1.msra.mxu0 0.0
    %1679 = vmatprep.subr.mxu0 0.0
    %1680 = vmatpush1.msra.mxu0 0.0
    %1681 = vmatprep.subr.mxu0 0.0
    %1682 = vmatpush1.msra.mxu0 0.0
    %1683 = vmatprep.subr.mxu0 0.0
    %1684 = vmatpush1.msra.mxu0 0.0
    %1685 = vmatprep.subr.mxu0 0.0
    %1686 = vmatpush1.msra.mxu0 0.0
    %1687 = vmatprep.subr.mxu0 0.0
    %1688 = vmatpush1.msra.mxu0 0.0
    %1689 = vmatprep.subr.mxu0 0.0
    %1690 = vmatpush1.msra.mxu0 0.0
    %1691 = vmatprep.subr.mxu0 0.0
    %1692 = vmatpush1.msra.mxu0 0.0
    %1693 = vmatprep.subr.mxu0 0.0
    %1694 = vmatpush1.msra.mxu0 0.0
    %1695 = vmatprep.subr.mxu0 0.0
    %1696 = vmatpush1.msra.mxu0 0.0
    %1697 = vmatprep.subr.mxu0 0.0
    %1698 = vmatpush1.msra.mxu0 0.0
    %1699 = vmatprep.subr.mxu0 0.0
    %1700 = vmatpush1.msra.mxu0 0.0
    %1701 = vmatprep.subr.mxu0 0.0
    %1702 = vmatpush1.msra.mxu0 0.0
    %1703 = vmatprep.subr.mxu0 0.0
    %1704 = vmatpush1.msra.mxu0 0.0
    %1705 = vmatprep.subr.mxu0 0.0
    %1706 = vmatpush1.msra.mxu0 0.0
    %1707 = vmatprep.subr.mxu0 0.0
    %1708 = vmatpush1.msra.mxu0 0.0
    %1709 = vmatprep.subr.mxu0 0.0
    %1710 = vmatpush1.msra.mxu0 0.0
    %1711 = vmatprep.subr.mxu0 0.0
    %1712 = vmatpush1.msra.mxu0 0.0
    %1713 = vmatprep.subr.mxu0 0.0
    %1714 = vmatpush1.msra.mxu0 0.0
    %1715 = vmatprep.subr.mxu0 0.0
    %1716 = vmatpush1.msra.mxu0 0.0
    %1717 = vmatprep.subr.mxu0 0.0
    %1718 = vmatpush1.msra.mxu0 0.0
    %1719 = vmatprep.subr.mxu0 0.0
    %1720 = vmatpush1.msra.mxu0 0.0
    %1721 = vmatprep.subr.mxu0 0.0
    %1722 = vmatpush1.msra.mxu0 0.0
    %1723 = vmatprep.subr.mxu0 0.0
    %1724 = vmatpush1.msra.mxu0 0.0
    %1725 = vmatprep.subr.mxu0 0.0
    %1726 = vmatpush1.msra.mxu0 0.0
    %1727 = vmatprep.subr.mxu0 0.0
    %1728 = vmatpush1.msra.mxu0 0.0
    %1729 = vmatprep.subr.mxu0 0.0
    %1730 = vmatpush1.msra.mxu0 0.0
    %1731 = vmatprep.subr.mxu0 0.0
    %1732 = vmatpush1.msra.mxu0 0.0
    %1733 = vmatprep.subr.mxu0 0.0
    %1734 = vmatpush1.msra.mxu0 0.0
    %1735 = vmatprep.subr.mxu0 0.0
    %1736 = vmatpush1.msra.mxu0 0.0
    %1737 = vmatprep.mubr.f32.mxu0 0.0
    %1738 = vmatmul.mubr.f32.gmra.mrb[0].mxu0 %v1671
    %v1739 = vpop.f32.mrb[0].mxu0
    %v1740 = vadd.f32 0.0, %v1739
    %v1741 = vpop.f32.mrb[0].mxu0
    %1742 = vdwg.mxu0
    %v1744 = vsel %vm486, %v1669, 0
    %1746 = vmatprep.subr.mxu0 0.0
    %1747 = vmatpush1.msra.mxu0 %v1491
    %1748 = vmatprep.subr.mxu0 0.0
    %1749 = vmatpush1.msra.mxu0 0.0
    %1750 = vmatprep.subr.mxu0 0.0
    %1751 = vmatpush1.msra.mxu0 0.0
    %1752 = vmatprep.subr.mxu0 0.0
    %1753 = vmatpush1.msra.mxu0 0.0
    %1754 = vmatprep.subr.mxu0 0.0
    %1755 = vmatpush1.msra.mxu0 0.0
    %1756 = vmatprep.subr.mxu0 0.0
    %1757 = vmatpush1.msra.mxu0 0.0
    %1758 = vmatprep.subr.mxu0 0.0
    %1759 = vmatpush1.msra.mxu0 0.0
    %1760 = vmatprep.subr.mxu0 0.0
    %1761 = vmatpush1.msra.mxu0 0.0
    %1762 = vmatprep.subr.mxu0 0.0
    %1763 = vmatpush1.msra.mxu0 0.0
    %1764 = vmatprep.subr.mxu0 0.0
    %1765 = vmatpush1.msra.mxu0 0.0
    %1766 = vmatprep.subr.mxu0 0.0
    %1767 = vmatpush1.msra.mxu0 0.0
    %1768 = vmatprep.subr.mxu0 0.0
    %1769 = vmatpush1.msra.mxu0 0.0
    %1770 = vmatprep.subr.mxu0 0.0
    %1771 = vmatpush1.msra.mxu0 0.0
    %1772 = vmatprep.subr.mxu0 0.0
    %1773 = vmatpush1.msra.mxu0 0.0
    %1774 = vmatprep.subr.mxu0 0.0
    %1775 = vmatpush1.msra.mxu0 0.0
    %1776 = vmatprep.subr.mxu0 0.0
    %1777 = vmatpush1.msra.mxu0 0.0
    %1778 = vmatprep.subr.mxu0 0.0
    %1779 = vmatpush1.msra.mxu0 0.0
    %1780 = vmatprep.subr.mxu0 0.0
    %1781 = vmatpush1.msra.mxu0 0.0
    %1782 = vmatprep.subr.mxu0 0.0
    %1783 = vmatpush1.msra.mxu0 0.0
    %1784 = vmatprep.subr.mxu0 0.0
    %1785 = vmatpush1.msra.mxu0 0.0
    %1786 = vmatprep.subr.mxu0 0.0
    %1787 = vmatpush1.msra.mxu0 0.0
    %1788 = vmatprep.subr.mxu0 0.0
    %1789 = vmatpush1.msra.mxu0 0.0
    %1790 = vmatprep.subr.mxu0 0.0
    %1791 = vmatpush1.msra.mxu0 0.0
    %1792 = vmatprep.subr.mxu0 0.0
    %1793 = vmatpush1.msra.mxu0 0.0
    %1794 = vmatprep.subr.mxu0 0.0
    %1795 = vmatpush1.msra.mxu0 0.0
    %1796 = vmatprep.subr.mxu0 0.0
    %1797 = vmatpush1.msra.mxu0 0.0
    %1798 = vmatprep.subr.mxu0 0.0
    %1799 = vmatpush1.msra.mxu0 0.0
    %1800 = vmatprep.subr.mxu0 0.0
    %1801 = vmatpush1.msra.mxu0 0.0
    %1802 = vmatprep.subr.mxu0 0.0
    %1803 = vmatpush1.msra.mxu0 0.0
    %1804 = vmatprep.subr.mxu0 0.0
    %1805 = vmatpush1.msra.mxu0 0.0
    %1806 = vmatprep.subr.mxu0 0.0
    %1807 = vmatpush1.msra.mxu0 0.0
    %1808 = vmatprep.subr.mxu0 0.0
    %1809 = vmatpush1.msra.mxu0 0.0
    %1810 = vmatprep.mubr.f32.mxu0 0.0
    %1811 = vmatmul.mubr.f32.gmra.mrb[0].mxu0 %v1744
    %v1812 = vpop.f32.mrb[0].mxu0
    %v1813 = vadd.f32 0.0, %v1812
    %v1814 = vpop.f32.mrb[0].mxu0
    %1815 = vdwg.mxu0
    %1818 = vrot.lane.b32.xlu0 %v1740, 32
    %v1819 = vpop.permute.xlu0 %1818
    %1820 = vrot.lane.b32.xlu0 %v1813, 32
    %v1821 = vpop.permute.xlu0 %1820
    %vm1824 = vcmask 392448
    %1825 = vst.msk [vmem:[#allocation10] sm:$0xff] %vm1824, %v1819
    %1826 = vst.msk [vmem:[#allocation10 + $0x8] sm:$0xff] %vm1824, %v1821
    %s1827 = scalar_lea.vmem [#allocation5], 48
    %v1828 = vld [vmem:[%s1827] sm:$0xff]
    %v1829 = vld [vmem:[%s1827 + $0x8] sm:$0xff]
    %v1831 = vsel %vm77, %v1828, 0
    %v1834 = vsel %vm77, %v1829, 0
    %1836 = vmatprep.subr.mxu0 0.0
    %1837 = vmatpush1.xpose.msra.mxu0 %v1831
    %1838 = vmatprep.subr.mxu0 0.0
    %1839 = vmatpush1.xpose.msra.mxu0 %v1834
    %1840 = vmatprep.subr.mxu0 0.0
    %1841 = vmatpush1.xpose.msra.mxu0 0.0
    %1842 = vmatprep.subr.mxu0 0.0
    %1843 = vmatpush1.xpose.msra.mxu0 0.0
    %1844 = vmatprep.subr.mxu0 0.0
    %1845 = vmatpush1.xpose.msra.mxu0 0.0
    %1846 = vmatprep.subr.mxu0 0.0
    %1847 = vmatpush1.xpose.msra.mxu0 0.0
    %1848 = vmatprep.subr.mxu0 0.0
    %1849 = vmatpush1.xpose.msra.mxu0 0.0
    %1850 = vmatprep.subr.mxu0 0.0
    %1851 = vmatpush1.xpose.msra.mxu0 0.0
    %1852 = vmatprep.subr.mxu0 0.0
    %1853 = vmatpush1.xpose.msra.mxu0 0.0
    %1854 = vmatprep.subr.mxu0 0.0
    %1855 = vmatpush1.xpose.msra.mxu0 0.0
    %1856 = vmatprep.subr.mxu0 0.0
    %1857 = vmatpush1.xpose.msra.mxu0 0.0
    %1858 = vmatprep.subr.mxu0 0.0
    %1859 = vmatpush1.xpose.msra.mxu0 0.0
    %1860 = vmatprep.subr.mxu0 0.0
    %1861 = vmatpush1.xpose.msra.mxu0 0.0
    %1862 = vmatprep.subr.mxu0 0.0
    %1863 = vmatpush1.xpose.msra.mxu0 0.0
    %1864 = vmatprep.subr.mxu0 0.0
    %1865 = vmatpush1.xpose.msra.mxu0 0.0
    %1866 = vmatprep.subr.mxu0 0.0
    %1867 = vmatpush1.xpose.msra.mxu0 0.0
    %1868 = vmatprep.subr.mxu0 0.0
    %1869 = vmatpush1.xpose.msra.mxu0 0.0
    %1870 = vmatprep.subr.mxu0 0.0
    %1871 = vmatpush1.xpose.msra.mxu0 0.0
    %1872 = vmatprep.subr.mxu0 0.0
    %1873 = vmatpush1.xpose.msra.mxu0 0.0
    %1874 = vmatprep.subr.mxu0 0.0
    %1875 = vmatpush1.xpose.msra.mxu0 0.0
    %1876 = vmatprep.subr.mxu0 0.0
    %1877 = vmatpush1.xpose.msra.mxu0 0.0
    %1878 = vmatprep.subr.mxu0 0.0
    %1879 = vmatpush1.xpose.msra.mxu0 0.0
    %1880 = vmatprep.subr.mxu0 0.0
    %1881 = vmatpush1.xpose.msra.mxu0 0.0
    %1882 = vmatprep.subr.mxu0 0.0
    %1883 = vmatpush1.xpose.msra.mxu0 0.0
    %1884 = vmatprep.subr.mxu0 0.0
    %1885 = vmatpush1.xpose.msra.mxu0 0.0
    %1886 = vmatprep.subr.mxu0 0.0
    %1887 = vmatpush1.xpose.msra.mxu0 0.0
    %1888 = vmatprep.subr.mxu0 0.0
    %1889 = vmatpush1.xpose.msra.mxu0 0.0
    %1890 = vmatprep.subr.mxu0 0.0
    %1891 = vmatpush1.xpose.msra.mxu0 0.0
    %1892 = vmatprep.subr.mxu0 0.0
    %1893 = vmatpush1.xpose.msra.mxu0 0.0
    %1894 = vmatprep.subr.mxu0 0.0
    %1895 = vmatpush1.xpose.msra.mxu0 0.0
    %1896 = vmatprep.subr.mxu0 0.0
    %1897 = vmatpush1.xpose.msra.mxu0 0.0
    %1898 = vmatprep.subr.mxu0 0.0
    %1899 = vmatpush1.xpose.msra.mxu0 0.0
    %1900 = vmatprep.mubr.f32.mxu0 0.0
    %1901 = vmatmul.mubr.f32.gmra.mrb[0].mxu0 %v79
    %v1902 = vpop.f32.mrb[0].mxu0
    %v1903 = vadd.f32 0.0, %v1902
    %v1904 = vpop.f32.mrb[0].mxu0
    %1905 = vmatprep.mubr.f32.mxu0 0.0
    %1906 = vmatmul.mubr.f32.gmra.mrb[0].mxu0 %v82
    %v1907 = vpop.f32.mrb[0].mxu0
    %v1908 = vadd.f32 0.0, %v1907
    %v1909 = vpop.f32.mrb[0].mxu0
    %1910 = vdwg.mxu0
    %s1911 = scalar_lea.vmem [#allocation7], 48
    %v1912 = vld [vmem:[%s1911] sm:$0xff]
    %v1913 = vld [vmem:[%s1911 + $0x8] sm:$0xff]
    %v1915 = vsel %vm77, %v1912, 0
    %v1918 = vsel %vm77, %v1913, 0
    %1920 = vmatprep.subr.mxu0 0.0
    %1921 = vmatpush1.xpose.msra.mxu0 %v1915
    %1922 = vmatprep.subr.mxu0 0.0
    %1923 = vmatpush1.xpose.msra.mxu0 %v1918
    %1924 = vmatprep.subr.mxu0 0.0
    %1925 = vmatpush1.xpose.msra.mxu0 0.0
    %1926 = vmatprep.subr.mxu0 0.0
    %1927 = vmatpush1.xpose.msra.mxu0 0.0
    %1928 = vmatprep.subr.mxu0 0.0
    %1929 = vmatpush1.xpose.msra.mxu0 0.0
    %1930 = vmatprep.subr.mxu0 0.0
    %1931 = vmatpush1.xpose.msra.mxu0 0.0
    %1932 = vmatprep.subr.mxu0 0.0
    %1933 = vmatpush1.xpose.msra.mxu0 0.0
    %1934 = vmatprep.subr.mxu0 0.0
    %1935 = vmatpush1.xpose.msra.mxu0 0.0
    %1936 = vmatprep.subr.mxu0 0.0
    %1937 = vmatpush1.xpose.msra.mxu0 0.0
    %1938 = vmatprep.subr.mxu0 0.0
    %1939 = vmatpush1.xpose.msra.mxu0 0.0
    %1940 = vmatprep.subr.mxu0 0.0
    %1941 = vmatpush1.xpose.msra.mxu0 0.0
    %1942 = vmatprep.subr.mxu0 0.0
    %1943 = vmatpush1.xpose.msra.mxu0 0.0
    %1944 = vmatprep.subr.mxu0 0.0
    %1945 = vmatpush1.xpose.msra.mxu0 0.0
    %1946 = vmatprep.subr.mxu0 0.0
    %1947 = vmatpush1.xpose.msra.mxu0 0.0
    %1948 = vmatprep.subr.mxu0 0.0
    %1949 = vmatpush1.xpose.msra.mxu0 0.0
    %1950 = vmatprep.subr.mxu0 0.0
    %1951 = vmatpush1.xpose.msra.mxu0 0.0
    %1952 = vmatprep.subr.mxu0 0.0
    %1953 = vmatpush1.xpose.msra.mxu0 0.0
    %1954 = vmatprep.subr.mxu0 0.0
    %1955 = vmatpush1.xpose.msra.mxu0 0.0
    %1956 = vmatprep.subr.mxu0 0.0
    %1957 = vmatpush1.xpose.msra.mxu0 0.0
    %1958 = vmatprep.subr.mxu0 0.0
    %1959 = vmatpush1.xpose.msra.mxu0 0.0
    %1960 = vmatprep.subr.mxu0 0.0
    %1961 = vmatpush1.xpose.msra.mxu0 0.0
    %1962 = vmatprep.subr.mxu0 0.0
    %1963 = vmatpush1.xpose.msra.mxu0 0.0
    %1964 = vmatprep.subr.mxu0 0.0
    %1965 = vmatpush1.xpose.msra.mxu0 0.0
    %1966 = vmatprep.subr.mxu0 0.0
    %1967 = vmatpush1.xpose.msra.mxu0 0.0
    %1968 = vmatprep.subr.mxu0 0.0
    %1969 = vmatpush1.xpose.msra.mxu0 0.0
    %1970 = vmatprep.subr.mxu0 0.0
    %1971 = vmatpush1.xpose.msra.mxu0 0.0
    %1972 = vmatprep.subr.mxu0 0.0
    %1973 = vmatpush1.xpose.msra.mxu0 0.0
    %1974 = vmatprep.subr.mxu0 0.0
    %1975 = vmatpush1.xpose.msra.mxu0 0.0
    %1976 = vmatprep.subr.mxu0 0.0
    %1977 = vmatpush1.xpose.msra.mxu0 0.0
    %1978 = vmatprep.subr.mxu0 0.0
    %1979 = vmatpush1.xpose.msra.mxu0 0.0
    %1980 = vmatprep.subr.mxu0 0.0
    %1981 = vmatpush1.xpose.msra.mxu0 0.0
    %1982 = vmatprep.subr.mxu0 0.0
    %1983 = vmatpush1.xpose.msra.mxu0 0.0
    %1984 = vmatprep.mubr.f32.mxu0 0.0
    %1985 = vmatmul.mubr.f32.gmra.mrb[0].mxu0 %v79
    %v1986 = vpop.f32.mrb[0].mxu0
    %v1987 = vadd.f32 0.0, %v1986
    %v1988 = vpop.f32.mrb[0].mxu0
    %1989 = vmatprep.mubr.f32.mxu0 0.0
    %1990 = vmatmul.mubr.f32.gmra.mrb[0].mxu0 %v82
    %v1991 = vpop.f32.mrb[0].mxu0
    %v1992 = vadd.f32 0.0, %v1991
    %v1993 = vpop.f32.mrb[0].mxu0
    %1994 = vdwg.mxu0
    %s1995 = scalar_lea.vmem [#allocation8], 48
    %v1996 = vld [vmem:[%s1995] sm:$0xff]
    %v1997 = vld [vmem:[%s1995 + $0x8] sm:$0xff]
    %v1999 = vsel %vm77, %v1996, 0
    %v2002 = vsel %vm77, %v1997, 0
    %2004 = vmatprep.subr.mxu0 0.0
    %2005 = vmatpush1.xpose.msra.mxu0 %v1999
    %2006 = vmatprep.subr.mxu0 0.0
    %2007 = vmatpush1.xpose.msra.mxu0 %v2002
    %2008 = vmatprep.subr.mxu0 0.0
    %2009 = vmatpush1.xpose.msra.mxu0 0.0
    %2010 = vmatprep.subr.mxu0 0.0
    %2011 = vmatpush1.xpose.msra.mxu0 0.0
    %2012 = vmatprep.subr.mxu0 0.0
    %2013 = vmatpush1.xpose.msra.mxu0 0.0
    %2014 = vmatprep.subr.mxu0 0.0
    %2015 = vmatpush1.xpose.msra.mxu0 0.0
    %2016 = vmatprep.subr.mxu0 0.0
    %2017 = vmatpush1.xpose.msra.mxu0 0.0
    %2018 = vmatprep.subr.mxu0 0.0
    %2019 = vmatpush1.xpose.msra.mxu0 0.0
    %2020 = vmatprep.subr.mxu0 0.0
    %2021 = vmatpush1.xpose.msra.mxu0 0.0
    %2022 = vmatprep.subr.mxu0 0.0
    %2023 = vmatpush1.xpose.msra.mxu0 0.0
    %2024 = vmatprep.subr.mxu0 0.0
    %2025 = vmatpush1.xpose.msra.mxu0 0.0
    %2026 = vmatprep.subr.mxu0 0.0
    %2027 = vmatpush1.xpose.msra.mxu0 0.0
    %2028 = vmatprep.subr.mxu0 0.0
    %2029 = vmatpush1.xpose.msra.mxu0 0.0
    %2030 = vmatprep.subr.mxu0 0.0
    %2031 = vmatpush1.xpose.msra.mxu0 0.0
    %2032 = vmatprep.subr.mxu0 0.0
    %2033 = vmatpush1.xpose.msra.mxu0 0.0
    %2034 = vmatprep.subr.mxu0 0.0
    %2035 = vmatpush1.xpose.msra.mxu0 0.0
    %2036 = vmatprep.subr.mxu0 0.0
    %2037 = vmatpush1.xpose.msra.mxu0 0.0
    %2038 = vmatprep.subr.mxu0 0.0
    %2039 = vmatpush1.xpose.msra.mxu0 0.0
    %2040 = vmatprep.subr.mxu0 0.0
    %2041 = vmatpush1.xpose.msra.mxu0 0.0
    %2042 = vmatprep.subr.mxu0 0.0
    %2043 = vmatpush1.xpose.msra.mxu0 0.0
    %2044 = vmatprep.subr.mxu0 0.0
    %2045 = vmatpush1.xpose.msra.mxu0 0.0
    %2046 = vmatprep.subr.mxu0 0.0
    %2047 = vmatpush1.xpose.msra.mxu0 0.0
    %2048 = vmatprep.subr.mxu0 0.0
    %2049 = vmatpush1.xpose.msra.mxu0 0.0
    %2050 = vmatprep.subr.mxu0 0.0
    %2051 = vmatpush1.xpose.msra.mxu0 0.0
    %2052 = vmatprep.subr.mxu0 0.0
    %2053 = vmatpush1.xpose.msra.mxu0 0.0
    %2054 = vmatprep.subr.mxu0 0.0
    %2055 = vmatpush1.xpose.msra.mxu0 0.0
    %2056 = vmatprep.subr.mxu0 0.0
    %2057 = vmatpush1.xpose.msra.mxu0 0.0
    %2058 = vmatprep.subr.mxu0 0.0
    %2059 = vmatpush1.xpose.msra.mxu0 0.0
    %2060 = vmatprep.subr.mxu0 0.0
    %2061 = vmatpush1.xpose.msra.mxu0 0.0
    %2062 = vmatprep.subr.mxu0 0.0
    %2063 = vmatpush1.xpose.msra.mxu0 0.0
    %2064 = vmatprep.subr.mxu0 0.0
    %2065 = vmatpush1.xpose.msra.mxu0 0.0
    %2066 = vmatprep.subr.mxu0 0.0
    %2067 = vmatpush1.xpose.msra.mxu0 0.0
    %2068 = vmatprep.mubr.f32.mxu0 0.0
    %2069 = vmatmul.mubr.f32.gmra.mrb[0].mxu0 %v79
    %v2070 = vpop.f32.mrb[0].mxu0
    %v2071 = vadd.f32 0.0, %v2070
    %v2072 = vpop.f32.mrb[0].mxu0
    %2073 = vmatprep.mubr.f32.mxu0 0.0
    %2074 = vmatmul.mubr.f32.gmra.mrb[0].mxu0 %v82
    %v2075 = vpop.f32.mrb[0].mxu0
    %v2076 = vadd.f32 0.0, %v2075
    %v2077 = vpop.f32.mrb[0].mxu0
    %2078 = vdwg.mxu0
    %v2079 = vmul.f32 %v1903, 0.25
    %v2080 = vmul.f32 %v1908, 0.25
    %v2082 = vsel %vm333, %v2079, 0
    %v2085 = vsel %vm333, %v1987, 0
    %2087 = vmatprep.subr.mxu0 0.0
    %2088 = vmatpush1.xpose.msra.mxu0 %v2085
    %2089 = vmatprep.subr.mxu0 0.0
    %2090 = vmatpush1.xpose.msra.mxu0 0.0
    %2091 = vmatprep.subr.mxu0 0.0
    %2092 = vmatpush1.xpose.msra.mxu0 0.0
    %2093 = vmatprep.subr.mxu0 0.0
    %2094 = vmatpush1.xpose.msra.mxu0 0.0
    %2095 = vmatprep.subr.mxu0 0.0
    %2096 = vmatpush1.xpose.msra.mxu0 0.0
    %2097 = vmatprep.subr.mxu0 0.0
    %2098 = vmatpush1.xpose.msra.mxu0 0.0
    %2099 = vmatprep.subr.mxu0 0.0
    %2100 = vmatpush1.xpose.msra.mxu0 0.0
    %2101 = vmatprep.subr.mxu0 0.0
    %2102 = vmatpush1.xpose.msra.mxu0 0.0
    %2103 = vmatprep.subr.mxu0 0.0
    %2104 = vmatpush1.xpose.msra.mxu0 0.0
    %2105 = vmatprep.subr.mxu0 0.0
    %2106 = vmatpush1.xpose.msra.mxu0 0.0
    %2107 = vmatprep.subr.mxu0 0.0
    %2108 = vmatpush1.xpose.msra.mxu0 0.0
    %2109 = vmatprep.subr.mxu0 0.0
    %2110 = vmatpush1.xpose.msra.mxu0 0.0
    %2111 = vmatprep.subr.mxu0 0.0
    %2112 = vmatpush1.xpose.msra.mxu0 0.0
    %2113 = vmatprep.subr.mxu0 0.0
    %2114 = vmatpush1.xpose.msra.mxu0 0.0
    %2115 = vmatprep.subr.mxu0 0.0
    %2116 = vmatpush1.xpose.msra.mxu0 0.0
    %2117 = vmatprep.subr.mxu0 0.0
    %2118 = vmatpush1.xpose.msra.mxu0 0.0
    %2119 = vmatprep.subr.mxu0 0.0
    %2120 = vmatpush1.xpose.msra.mxu0 0.0
    %2121 = vmatprep.subr.mxu0 0.0
    %2122 = vmatpush1.xpose.msra.mxu0 0.0
    %2123 = vmatprep.subr.mxu0 0.0
    %2124 = vmatpush1.xpose.msra.mxu0 0.0
    %2125 = vmatprep.subr.mxu0 0.0
    %2126 = vmatpush1.xpose.msra.mxu0 0.0
    %2127 = vmatprep.subr.mxu0 0.0
    %2128 = vmatpush1.xpose.msra.mxu0 0.0
    %2129 = vmatprep.subr.mxu0 0.0
    %2130 = vmatpush1.xpose.msra.mxu0 0.0
    %2131 = vmatprep.subr.mxu0 0.0
    %2132 = vmatpush1.xpose.msra.mxu0 0.0
    %2133 = vmatprep.subr.mxu0 0.0
    %2134 = vmatpush1.xpose.msra.mxu0 0.0
    %2135 = vmatprep.subr.mxu0 0.0
    %2136 = vmatpush1.xpose.msra.mxu0 0.0
    %2137 = vmatprep.subr.mxu0 0.0
    %2138 = vmatpush1.xpose.msra.mxu0 0.0
    %2139 = vmatprep.subr.mxu0 0.0
    %2140 = vmatpush1.xpose.msra.mxu0 0.0
    %2141 = vmatprep.subr.mxu0 0.0
    %2142 = vmatpush1.xpose.msra.mxu0 0.0
    %2143 = vmatprep.subr.mxu0 0.0
    %2144 = vmatpush1.xpose.msra.mxu0 0.0
    %2145 = vmatprep.subr.mxu0 0.0
    %2146 = vmatpush1.xpose.msra.mxu0 0.0
    %2147 = vmatprep.subr.mxu0 0.0
    %2148 = vmatpush1.xpose.msra.mxu0 0.0
    %2149 = vmatprep.subr.mxu0 0.0
    %2150 = vmatpush1.xpose.msra.mxu0 0.0
    %2151 = vmatprep.mubr.f32.mxu0 0.0
    %2152 = vmatmul.mubr.f32.gmra.mrb[0].mxu0 %v2082
    %v2153 = vpop.f32.mrb[0].mxu0
    %v2154 = vadd.f32 0.0, %v2153
    %v2155 = vpop.f32.mrb[0].mxu0
    %2156 = vdwg.mxu0
    %v2158 = vsel %vm333, %v2080, 0
    %v2161 = vsel %vm333, %v1992, 0
    %2163 = vmatprep.subr.mxu0 0.0
    %2164 = vmatpush1.xpose.msra.mxu0 %v2161
    %2165 = vmatprep.subr.mxu0 0.0
    %2166 = vmatpush1.xpose.msra.mxu0 0.0
    %2167 = vmatprep.subr.mxu0 0.0
    %2168 = vmatpush1.xpose.msra.mxu0 0.0
    %2169 = vmatprep.subr.mxu0 0.0
    %2170 = vmatpush1.xpose.msra.mxu0 0.0
    %2171 = vmatprep.subr.mxu0 0.0
    %2172 = vmatpush1.xpose.msra.mxu0 0.0
    %2173 = vmatprep.subr.mxu0 0.0
    %2174 = vmatpush1.xpose.msra.mxu0 0.0
    %2175 = vmatprep.subr.mxu0 0.0
    %2176 = vmatpush1.xpose.msra.mxu0 0.0
    %2177 = vmatprep.subr.mxu0 0.0
    %2178 = vmatpush1.xpose.msra.mxu0 0.0
    %2179 = vmatprep.subr.mxu0 0.0
    %2180 = vmatpush1.xpose.msra.mxu0 0.0
    %2181 = vmatprep.subr.mxu0 0.0
    %2182 = vmatpush1.xpose.msra.mxu0 0.0
    %2183 = vmatprep.subr.mxu0 0.0
    %2184 = vmatpush1.xpose.msra.mxu0 0.0
    %2185 = vmatprep.subr.mxu0 0.0
    %2186 = vmatpush1.xpose.msra.mxu0 0.0
    %2187 = vmatprep.subr.mxu0 0.0
    %2188 = vmatpush1.xpose.msra.mxu0 0.0
    %2189 = vmatprep.subr.mxu0 0.0
    %2190 = vmatpush1.xpose.msra.mxu0 0.0
    %2191 = vmatprep.subr.mxu0 0.0
    %2192 = vmatpush1.xpose.msra.mxu0 0.0
    %2193 = vmatprep.subr.mxu0 0.0
    %2194 = vmatpush1.xpose.msra.mxu0 0.0
    %2195 = vmatprep.subr.mxu0 0.0
    %2196 = vmatpush1.xpose.msra.mxu0 0.0
    %2197 = vmatprep.subr.mxu0 0.0
    %2198 = vmatpush1.xpose.msra.mxu0 0.0
    %2199 = vmatprep.subr.mxu0 0.0
    %2200 = vmatpush1.xpose.msra.mxu0 0.0
    %2201 = vmatprep.subr.mxu0 0.0
    %2202 = vmatpush1.xpose.msra.mxu0 0.0
    %2203 = vmatprep.subr.mxu0 0.0
    %2204 = vmatpush1.xpose.msra.mxu0 0.0
    %2205 = vmatprep.subr.mxu0 0.0
    %2206 = vmatpush1.xpose.msra.mxu0 0.0
    %2207 = vmatprep.subr.mxu0 0.0
    %2208 = vmatpush1.xpose.msra.mxu0 0.0
    %2209 = vmatprep.subr.mxu0 0.0
    %2210 = vmatpush1.xpose.msra.mxu0 0.0
    %2211 = vmatprep.subr.mxu0 0.0
    %2212 = vmatpush1.xpose.msra.mxu0 0.0
    %2213 = vmatprep.subr.mxu0 0.0
    %2214 = vmatpush1.xpose.msra.mxu0 0.0
    %2215 = vmatprep.subr.mxu0 0.0
    %2216 = vmatpush1.xpose.msra.mxu0 0.0
    %2217 = vmatprep.subr.mxu0 0.0
    %2218 = vmatpush1.xpose.msra.mxu0 0.0
    %2219 = vmatprep.subr.mxu0 0.0
    %2220 = vmatpush1.xpose.msra.mxu0 0.0
    %2221 = vmatprep.subr.mxu0 0.0
    %2222 = vmatpush1.xpose.msra.mxu0 0.0
    %2223 = vmatprep.subr.mxu0 0.0
    %2224 = vmatpush1.xpose.msra.mxu0 0.0
    %2225 = vmatprep.subr.mxu0 0.0
    %2226 = vmatpush1.xpose.msra.mxu0 0.0
    %2227 = vmatprep.mubr.f32.mxu0 0.0
    %2228 = vmatmul.mubr.f32.gmra.mrb[0].mxu0 %v2158
    %v2229 = vpop.f32.mrb[0].mxu0
    %v2230 = vadd.f32 0.0, %v2229
    %v2231 = vpop.f32.mrb[0].mxu0
    %2232 = vdwg.mxu0
    %v2233 = vsel %vm486, %v2154, -inf
    %2234 = vmax.xlane.f32.xlu0 %v2233
    %v2235 = vpop.xlane.xlu0 %2234
    %v2236 = vsel %vm486, %v2230, -inf
    %2237 = vmax.xlane.f32.xlu0 %v2236
    %v2238 = vpop.xlane.xlu0 %2237
    %v2239 = vsub.f32 %v2154, %v2235
    %v2240 = vsub.f32 %v2230, %v2238
    %v2241 = vmul.f32 %v2239, 1.442695
    %v2242 = vpow.pop %v2241
    %v2243 = vmul.f32 %v2240, 1.442695
    %v2244 = vpow.pop %v2243
    %v2245 = vsel %vm486, %v2242, 0.0
    %2246 = vadd.xlane.f32.xlu0 %v2245
    %v2247 = vpop.xlane.xlu0 %2246
    %v2248 = vsel %vm486, %v2244, 0.0
    %2249 = vadd.xlane.f32.xlu0 %v2248
    %v2250 = vpop.xlane.xlu0 %2249
    %v2251 = vrcp.pop %v2247
    %v2252 = vrcp.pop %v2250
    %v2253 = vmul.f32 %v2242, %v2251
    %v2254 = vmul.f32 %v2244, %v2252
    %v2256 = vsel %vm486, %v2253, 0
    %2258 = vmatprep.subr.mxu0 0.0
    %2259 = vmatpush1.msra.mxu0 %v2071
    %2260 = vmatprep.subr.mxu0 0.0
    %2261 = vmatpush1.msra.mxu0 0.0
    %2262 = vmatprep.subr.mxu0 0.0
    %2263 = vmatpush1.msra.mxu0 0.0
    %2264 = vmatprep.subr.mxu0 0.0
    %2265 = vmatpush1.msra.mxu0 0.0
    %2266 = vmatprep.subr.mxu0 0.0
    %2267 = vmatpush1.msra.mxu0 0.0
    %2268 = vmatprep.subr.mxu0 0.0
    %2269 = vmatpush1.msra.mxu0 0.0
    %2270 = vmatprep.subr.mxu0 0.0
    %2271 = vmatpush1.msra.mxu0 0.0
    %2272 = vmatprep.subr.mxu0 0.0
    %2273 = vmatpush1.msra.mxu0 0.0
    %2274 = vmatprep.subr.mxu0 0.0
    %2275 = vmatpush1.msra.mxu0 0.0
    %2276 = vmatprep.subr.mxu0 0.0
    %2277 = vmatpush1.msra.mxu0 0.0
    %2278 = vmatprep.subr.mxu0 0.0
    %2279 = vmatpush1.msra.mxu0 0.0
    %2280 = vmatprep.subr.mxu0 0.0
    %2281 = vmatpush1.msra.mxu0 0.0
    %2282 = vmatprep.subr.mxu0 0.0
    %2283 = vmatpush1.msra.mxu0 0.0
    %2284 = vmatprep.subr.mxu0 0.0
    %2285 = vmatpush1.msra.mxu0 0.0
    %2286 = vmatprep.subr.mxu0 0.0
    %2287 = vmatpush1.msra.mxu0 0.0
    %2288 = vmatprep.subr.mxu0 0.0
    %2289 = vmatpush1.msra.mxu0 0.0
    %2290 = vmatprep.subr.mxu0 0.0
    %2291 = vmatpush1.msra.mxu0 0.0
    %2292 = vmatprep.subr.mxu0 0.0
    %2293 = vmatpush1.msra.mxu0 0.0
    %2294 = vmatprep.subr.mxu0 0.0
    %2295 = vmatpush1.msra.mxu0 0.0
    %2296 = vmatprep.subr.mxu0 0.0
    %2297 = vmatpush1.msra.mxu0 0.0
    %2298 = vmatprep.subr.mxu0 0.0
    %2299 = vmatpush1.msra.mxu0 0.0
    %2300 = vmatprep.subr.mxu0 0.0
    %2301 = vmatpush1.msra.mxu0 0.0
    %2302 = vmatprep.subr.mxu0 0.0
    %2303 = vmatpush1.msra.mxu0 0.0
    %2304 = vmatprep.subr.mxu0 0.0
    %2305 = vmatpush1.msra.mxu0 0.0
    %2306 = vmatprep.subr.mxu0 0.0
    %2307 = vmatpush1.msra.mxu0 0.0
    %2308 = vmatprep.subr.mxu0 0.0
    %2309 = vmatpush1.msra.mxu0 0.0
    %2310 = vmatprep.subr.mxu0 0.0
    %2311 = vmatpush1.msra.mxu0 0.0
    %2312 = vmatprep.subr.mxu0 0.0
    %2313 = vmatpush1.msra.mxu0 0.0
    %2314 = vmatprep.subr.mxu0 0.0
    %2315 = vmatpush1.msra.mxu0 0.0
    %2316 = vmatprep.subr.mxu0 0.0
    %2317 = vmatpush1.msra.mxu0 0.0
    %2318 = vmatprep.subr.mxu0 0.0
    %2319 = vmatpush1.msra.mxu0 0.0
    %2320 = vmatprep.subr.mxu0 0.0
    %2321 = vmatpush1.msra.mxu0 0.0
    %2322 = vmatprep.mubr.f32.mxu0 0.0
    %2323 = vmatmul.mubr.f32.gmra.mrb[0].mxu0 %v2256
    %v2324 = vpop.f32.mrb[0].mxu0
    %v2325 = vadd.f32 0.0, %v2324
    %v2326 = vpop.f32.mrb[0].mxu0
    %2327 = vdwg.mxu0
    %v2329 = vsel %vm486, %v2254, 0
    %2331 = vmatprep.subr.mxu0 0.0
    %2332 = vmatpush1.msra.mxu0 %v2076
    %2333 = vmatprep.subr.mxu0 0.0
    %2334 = vmatpush1.msra.mxu0 0.0
    %2335 = vmatprep.subr.mxu0 0.0
    %2336 = vmatpush1.msra.mxu0 0.0
    %2337 = vmatprep.subr.mxu0 0.0
    %2338 = vmatpush1.msra.mxu0 0.0
    %2339 = vmatprep.subr.mxu0 0.0
    %2340 = vmatpush1.msra.mxu0 0.0
    %2341 = vmatprep.subr.mxu0 0.0
    %2342 = vmatpush1.msra.mxu0 0.0
    %2343 = vmatprep.subr.mxu0 0.0
    %2344 = vmatpush1.msra.mxu0 0.0
    %2345 = vmatprep.subr.mxu0 0.0
    %2346 = vmatpush1.msra.mxu0 0.0
    %2347 = vmatprep.subr.mxu0 0.0
    %2348 = vmatpush1.msra.mxu0 0.0
    %2349 = vmatprep.subr.mxu0 0.0
    %2350 = vmatpush1.msra.mxu0 0.0
    %2351 = vmatprep.subr.mxu0 0.0
    %2352 = vmatpush1.msra.mxu0 0.0
    %2353 = vmatprep.subr.mxu0 0.0
    %2354 = vmatpush1.msra.mxu0 0.0
    %2355 = vmatprep.subr.mxu0 0.0
    %2356 = vmatpush1.msra.mxu0 0.0
    %2357 = vmatprep.subr.mxu0 0.0
    %2358 = vmatpush1.msra.mxu0 0.0
    %2359 = vmatprep.subr.mxu0 0.0
    %2360 = vmatpush1.msra.mxu0 0.0
    %2361 = vmatprep.subr.mxu0 0.0
    %2362 = vmatpush1.msra.mxu0 0.0
    %2363 = vmatprep.subr.mxu0 0.0
    %2364 = vmatpush1.msra.mxu0 0.0
    %2365 = vmatprep.subr.mxu0 0.0
    %2366 = vmatpush1.msra.mxu0 0.0
    %2367 = vmatprep.subr.mxu0 0.0
    %2368 = vmatpush1.msra.mxu0 0.0
    %2369 = vmatprep.subr.mxu0 0.0
    %2370 = vmatpush1.msra.mxu0 0.0
    %2371 = vmatprep.subr.mxu0 0.0
    %2372 = vmatpush1.msra.mxu0 0.0
    %2373 = vmatprep.subr.mxu0 0.0
    %2374 = vmatpush1.msra.mxu0 0.0
    %2375 = vmatprep.subr.mxu0 0.0
    %2376 = vmatpush1.msra.mxu0 0.0
    %2377 = vmatprep.subr.mxu0 0.0
    %2378 = vmatpush1.msra.mxu0 0.0
    %2379 = vmatprep.subr.mxu0 0.0
    %2380 = vmatpush1.msra.mxu0 0.0
    %2381 = vmatprep.subr.mxu0 0.0
    %2382 = vmatpush1.msra.mxu0 0.0
    %2383 = vmatprep.subr.mxu0 0.0
    %2384 = vmatpush1.msra.mxu0 0.0
    %2385 = vmatprep.subr.mxu0 0.0
    %2386 = vmatpush1.msra.mxu0 0.0
    %2387 = vmatprep.subr.mxu0 0.0
    %2388 = vmatpush1.msra.mxu0 0.0
    %2389 = vmatprep.subr.mxu0 0.0
    %2390 = vmatpush1.msra.mxu0 0.0
    %2391 = vmatprep.subr.mxu0 0.0
    %2392 = vmatpush1.msra.mxu0 0.0
    %2393 = vmatprep.subr.mxu0 0.0
    %2394 = vmatpush1.msra.mxu0 0.0
    %2395 = vmatprep.mubr.f32.mxu0 0.0
    %2396 = vmatmul.mubr.f32.gmra.mrb[0].mxu0 %v2329
    %v2397 = vpop.f32.mrb[0].mxu0
    %v2398 = vadd.f32 0.0, %v2397
    %v2399 = vpop.f32.mrb[0].mxu0
    %2400 = vdwg.mxu0
    %2403 = vrot.lane.b32.xlu0 %v2325, 48
    %v2404 = vpop.permute.xlu0 %2403
    %2405 = vrot.lane.b32.xlu0 %v2398, 48
    %v2406 = vpop.permute.xlu0 %2405
    %vm2409 = vcmask 523648
    %2410 = vst.msk [vmem:[#allocation10] sm:$0xff] %vm2409, %v2404
    %2411 = vst.msk [vmem:[#allocation10 + $0x8] sm:$0xff] %vm2409, %v2406
    // Predicated region
    $region34: #{tpu_custom_call.1} parent=1 // pred_check
      _
    $region35: #{tpu_custom_call.1} parent=1 // pred_check_branch
      %2413 = sbr.rel (0) target = $region37
    $region36: #{tpu_custom_call.1} parent=1 // pred_region
      %s2415 = ssub.s32 256, 256
      %2416 = vsyncadd [#allocation4], %s2415
      %s2417 = sshll.u32 [#allocation10], 4
      %s2418 = int_to_ptr.vmem [resolvable:$true] %s2417
      %2423 = dma.vmem_to_hbm [thread:$0]  %s2418, 256, %s4, [#allocation4], 128, 128, 8
    $region37: #{tpu_custom_call.1} parent=1 // pred_fallthru
      _
    // Predicated region
    $region38: #{tpu_custom_call.1} parent=1 // pred_check
      _
    $region39: #{tpu_custom_call.1} parent=1 // pred_check_branch
      %2425 = sbr.rel (0) target = $region41
    $region40: #{tpu_custom_call.1} parent=1 // pred_region
      %2426 = dma.done [#allocation4], 256
    $region41: #{tpu_custom_call.1} parent=1 // pred_fallthru
      _
    %2427 = vsyncpa [#allocation3], 1
    %2428 = vsyncpa [#allocation6], 1
    %2429 = vsyncpa [#allocation9], 1
    %2430 = vsyncpa [#allocation4], 1

</llo_original>
